<compile_context>
chip_gen: v7x
topology: tpu7x:2x2x1
jax: 0.10.0
libtpu: 0.0.40
codegen_flags: <defaults>
</compile_context>

<pallas_src>
import functools

import jax
import jax.numpy as jnp
from jax import lax
from jax.experimental import pallas as pl
from jax.experimental.pallas import tpu as pltpu


def _round_up(x, m):
    return ((x + m - 1) // m) * m


# -----------------------------------------------------------------------------
# Kernel A: LSTM recurrence.  Input projection hoisted into one bulk MXU matmul;
# only h @ W_hh^T + gate math remain on the T-long serial chain.
# -----------------------------------------------------------------------------
def _lstm_kernel(x_ref, wih_ref, whh_ref, bg_ref, hs_ref, gx_ref,
                 *, seq_len, batch_p, hidden):
    T, Bp, H = seq_len, batch_p, hidden

    # Prologue: (T*Bp, E) @ (E, 4H) in bf16 on the MXU, f32 accumulate, bias folded once.
    gx_ref[...] = (
        jnp.dot(x_ref[...], wih_ref[...], preferred_element_type=jnp.float32)
        + bg_ref[...])                                                # (T*Bp, 4H) f32

    def step(t, carry):
        h, c = carry                                                  # f32 (Bp, H)
        row = pl.multiple_of(t * Bp, Bp)                              # sublane-aligned (Bp % 8 == 0)
        gates = gx_ref[pl.ds(row, Bp), :] + jnp.dot(
            h.astype(jnp.bfloat16), whh_ref[...],
            preferred_element_type=jnp.float32)                       # (Bp, 4H) f32
        # Columns pre-permuted to (i, f, o, g): one sigmoid slab, one tanh slab.
        ifo = jax.nn.sigmoid(gates[:, : 3 * H])
        g = jnp.tanh(gates[:, 3 * H:])
        c_new = ifo[:, H:2 * H] * c + ifo[:, :H] * g
        h_new = ifo[:, 2 * H:] * jnp.tanh(c_new)
        hs_ref[pl.ds(row, Bp), :] = h_new                             # aligned f32 store
        return h_new, c_new

    h0 = jnp.zeros((Bp, H), jnp.float32)
    c0 = jnp.zeros((Bp, H), jnp.float32)
    lax.fori_loop(0, T, step, (h0, c0), unroll=True)


def lstm_recurrence_pallas(x_flat, seq_len, batch_p, w_ih_t, w_hh_t, b_gates):
    """x_flat: (T*Bp, E) bf16, time-major flat (row = t*Bp + b). Returns hs (T*Bp, H) f32."""
    TB, E = x_flat.shape
    H = w_hh_t.shape[0]
    T, Bp = seq_len, batch_p
    assert TB == T * Bp

    vmem = (2 * (TB * E * 2 + E * 4 * H * 2 + H * 4 * H * 2 + 8 * 4 * H * 4 + TB * H * 4)
            + TB * 4 * H * 4 + (4 << 20))

    kernel = functools.partial(_lstm_kernel, seq_len=T, batch_p=Bp, hidden=H)
    return pl.pallas_call(
        kernel,
        out_shape=jax.ShapeDtypeStruct((TB, H), jnp.float32),
        grid_spec=pltpu.PrefetchScalarGridSpec(
            num_scalar_prefetch=0,
            grid=(1,),
            in_specs=[
                pl.BlockSpec((TB, E), lambda i: (0, 0)),        # x (time-major flat, bf16)
                pl.BlockSpec((E, 4 * H), lambda i: (0, 0)),     # W_ih^T (bf16, ifog->ifog perm)
                pl.BlockSpec((H, 4 * H), lambda i: (0, 0)),     # W_hh^T (bf16)
                pl.BlockSpec((1, 4 * H), lambda i: (0, 0)),     # b_ih + b_hh (f32)
            ],
            out_specs=pl.BlockSpec((TB, H), lambda i: (0, 0)),
            scratch_shapes=[pltpu.VMEM((TB, 4 * H), jnp.float32)],   # precomputed input gates
        ),
        compiler_params=pltpu.CompilerParams(
            dimension_semantics=("arbitrary",),
            vmem_limit_bytes=int(min(vmem, 100 << 20))),
    )(x_flat, w_ih_t, w_hh_t, b_gates)


# -----------------------------------------------------------------------------
# Kernel B: FC projection over the vocab, tiled (double-buffered W_fc/out tiles,
# vocab axis "parallel" so v7x's 2 TensorCores split it).
# -----------------------------------------------------------------------------
def _fc_kernel(hs_ref, wfc_ref, bfc_ref, out_ref):
    out_ref[...] = (
        jnp.dot(hs_ref[...], wfc_ref[...], preferred_element_type=jnp.float32)
        + bfc_ref[...]).astype(out_ref.dtype)


def fc_pallas(hs_bm, w_fc_t, b_fc, tile_v):
    """hs_bm: (Bp*T, H) bf16 batch-major flat. Returns logits (Bp*T, Vp) f32."""
    BT, H = hs_bm.shape
    Vp = w_fc_t.shape[1]
    assert Vp % tile_v == 0

    vmem = (2 * (BT * H * 2 + H * tile_v * 2 + 8 * tile_v * 4 + BT * tile_v * 4)
            + (4 << 20))

    return pl.pallas_call(
        _fc_kernel,
        out_shape=jax.ShapeDtypeStruct((BT, Vp), jnp.float32),
        grid_spec=pltpu.PrefetchScalarGridSpec(
            num_scalar_prefetch=0,
            grid=(Vp // tile_v,),
            in_specs=[
                pl.BlockSpec((BT, H), lambda j: (0, 0)),        # hidden states (bf16)
                pl.BlockSpec((H, tile_v), lambda j: (0, j)),    # W_fc^T tile (bf16)
                pl.BlockSpec((1, tile_v), lambda j: (0, j)),    # b_fc tile (f32)
            ],
            out_specs=pl.BlockSpec((BT, tile_v), lambda j: (0, j)),
        ),
        compiler_params=pltpu.CompilerParams(
            dimension_semantics=("parallel",),
            vmem_limit_bytes=int(min(vmem, 100 << 20))),
    )(hs_bm, w_fc_t, b_fc)


# -----------------------------------------------------------------------------
# Wrapper: PyTorch-layout params -> kernel layout (transpose, gate permute, bf16, pad V).
# -----------------------------------------------------------------------------
def convert_params(embed, w_ih, w_hh, b_ih, b_hh, w_fc, b_fc, tile_v=512):
    """PyTorch layout: w_ih (4H,E), w_hh (4H,H), b_* (4H,) gate order (i,f,g,o);
    w_fc (V,H), b_fc (V,)."""
    H = w_hh.shape[1]
    V = w_fc.shape[0]
    # Permute gate columns (i, f, g, o) -> (i, f, o, g): sigmoid gates contiguous.
    perm = jnp.concatenate([jnp.arange(0, 2 * H),
                            jnp.arange(3 * H, 4 * H),
                            jnp.arange(2 * H, 3 * H)])
    Vp = _round_up(V, 128)
    tv = tile_v
    while Vp % tv:
        tv //= 2
    w_fc_t = jnp.zeros((H, Vp), jnp.bfloat16).at[:, :V].set(w_fc.T.astype(jnp.bfloat16))
    b_fc_p = jnp.zeros((1, Vp), jnp.float32).at[:, :V].set(b_fc[None, :].astype(jnp.float32))
    return dict(
        embed=embed.astype(jnp.float32),
        w_ih_t=w_ih.T[:, perm].astype(jnp.bfloat16),      # (E, 4H)
        w_hh_t=w_hh.T[:, perm].astype(jnp.bfloat16),      # (H, 4H)
        b_gates=(b_ih + b_hh)[perm][None, :].astype(jnp.float32),   # (1, 4H)
        w_fc_t=w_fc_t,                                    # (H, Vp) bf16
        b_fc=b_fc_p,                                      # (1, Vp) f32
        vocab=V,
        tile_v=tv,
    )


def decoder_rnn_forward(params, features, captions):
    """features: (B, Tf, E) f32; captions: (B, Tc) int32. Returns (B, Tf+Tc, V) f32."""
    # Glue (embedding gather + concat) stays in plain JAX.
    captions_embed = jnp.take(params["embed"], captions, axis=0)       # (B, Tc, E)
    inputs = jnp.concatenate([features, captions_embed], axis=1)       # (B, T, E)
    B, T, E = inputs.shape
    H = params["w_hh_t"].shape[0]
    V = params["vocab"]

    # Pad batch to a sublane multiple so every per-step row block is 8-aligned.
    Bp = _round_up(B, 8)
    if Bp != B:
        inputs = jnp.pad(inputs, ((0, Bp - B), (0, 0), (0, 0)))

    # Time-major flatten (fused with the pad above); bf16 MXU operands.
    x_flat = jnp.transpose(inputs, (1, 0, 2)).reshape(T * Bp, E).astype(jnp.bfloat16)

    hs_tm = lstm_recurrence_pallas(
        x_flat, T, Bp, params["w_ih_t"], params["w_hh_t"], params["b_gates"])  # (T*Bp, H) f32

    # Re-lay-out only the SMALL hidden-state tensor to batch-major so the FC kernel
    # writes batch-first logits directly (no (B,T,V)-sized transpose anywhere).
    hs_bm = (jnp.transpose(hs_tm.reshape(T, Bp, H), (1, 0, 2))
             .reshape(Bp * T, H).astype(jnp.bfloat16))

    logits = fc_pallas(hs_bm, params["w_fc_t"], params["b_fc"], params["tile_v"])  # (Bp*T, Vp)
    return logits.reshape(Bp, T, -1)[:B, :, :V]                        # free reshape + crop


# -----------------------------------------------------------------------------
# Pure-JAX f32 reference (exact PyTorch semantics) for correctness checking.
# -----------------------------------------------------------------------------
def decoder_rnn_reference(embed, w_ih, w_hh, b_ih, b_hh, w_fc, b_fc, features, captions):
    captions_embed = jnp.take(embed, captions, axis=0)
    inputs = jnp.concatenate([features, captions_embed], axis=1)       # (B, T, E)
    B, T, E = inputs.shape
    H = w_hh.shape[1]

    def step(carry, x_t):
        h, c = carry
        gates = x_t @ w_ih.T + h @ w_hh.T + b_ih + b_hh
        i = jax.nn.sigmoid(gates[:, :H])
        f = jax.nn.sigmoid(gates[:, H:2 * H])
        g = jnp.tanh(gates[:, 2 * H:3 * H])
        o = jax.nn.sigmoid(gates[:, 3 * H:])
        c = f * c + i * g
        h = o * jnp.tanh(c)
        return (h, c), h

    h0 = jnp.zeros((B, H), jnp.float32)
    c0 = jnp.zeros((B, H), jnp.float32)
    _, hs = lax.scan(step, (h0, c0), jnp.transpose(inputs, (1, 0, 2)))
    hs = jnp.transpose(hs, (1, 0, 2))                                  # (B, T, H)
    return hs @ w_fc.T + b_fc


if __name__ == "__main__":
    # Small shapes consistent with the module's forward().
    B, Tf, Tc = 2, 1, 8            # batch, image-feature "tokens", caption length
    E = 128                        # embed_size
    H = 128                        # hidden_size
    V = 1000                       # vocab_size (padded to 1024 inside the wrapper)

    key = jax.random.PRNGKey(0)
    ks = jax.random.split(key, 9)
    s = 0.05

    embed = s * jax.random.normal(ks[0], (V, E), jnp.float32)
    w_ih = s * jax.random.normal(ks[1], (4 * H, E), jnp.float32)   # PyTorch layout (i,f,g,o)
    w_hh = s * jax.random.normal(ks[2], (4 * H, H), jnp.float32)
    b_ih = s * jax.random.normal(ks[3], (4 * H,), jnp.float32)
    b_hh = s * jax.random.normal(ks[4], (4 * H,), jnp.float32)
    w_fc = s * jax.random.normal(ks[5], (V, H), jnp.float32)
    b_fc = s * jax.random.normal(ks[6], (V,), jnp.float32)

    features = s * jax.random.normal(ks[7], (B, Tf, E), jnp.float32)
    captions = jax.random.randint(ks[8], (B, Tc), 0, V, jnp.int32)

    params = convert_params(embed, w_ih, w_hh, b_ih, b_hh, w_fc, b_fc)

    out = jax.block_until_ready(decoder_rnn_forward(params, features, captions))
    ref = decoder_rnn_reference(embed, w_ih, w_hh, b_ih, b_hh, w_fc, b_fc, features, captions)

    assert out.shape == (B, Tf + Tc, V), out.shape
    max_err = float(jnp.max(jnp.abs(out - ref)))
    assert max_err < 2e-2, max_err   # bf16 MXU operands vs f32 reference
    print("KERNEL_OK")
</pallas_src>

<mosaic_0001>
module attributes {stable_mosaic.version = 11 : i64} {
  func.func @_lstm_kernel(%arg0: i32, %arg1: memref<72x128xbf16, #tpu.memory_space<vmem>>, %arg2: memref<128x512xbf16, #tpu.memory_space<vmem>>, %arg3: memref<128x512xbf16, #tpu.memory_space<vmem>>, %arg4: memref<1x512xf32, #tpu.memory_space<vmem>>, %arg5: memref<72x128xf32, #tpu.memory_space<vmem>>, %arg6: memref<72x512xf32, #tpu.memory_space<vmem>>) attributes {dimension_semantics = [#tpu.dimension_semantics<arbitrary>], iteration_bounds = array<i64: 1>, scalar_prefetch = 0 : i64, scratch_operands = 1 : i64, tpu.core_type = #tpu.core_type<tc>, window_params = [{pipeline_mode = #tpu.pipeline_mode<synchronous>, transform_indices = @transform_0, window_bounds = array<i64: 72, 128>}, {pipeline_mode = #tpu.pipeline_mode<synchronous>, transform_indices = @transform_1, window_bounds = array<i64: 128, 512>}, {pipeline_mode = #tpu.pipeline_mode<synchronous>, transform_indices = @transform_2, window_bounds = array<i64: 128, 512>}, {pipeline_mode = #tpu.pipeline_mode<synchronous>, transform_indices = @transform_3, window_bounds = array<i64: 1, 512>}, {pipeline_mode = #tpu.pipeline_mode<synchronous>, transform_indices = @transform_4, window_bounds = array<i64: 72, 128>}]} {
    %c0 = arith.constant 0 : index
    %c0_0 = arith.constant 0 : index
    %0 = vector.load %arg1[%c0, %c0_0] : memref<72x128xbf16, #tpu.memory_space<vmem>>, vector<72x128xbf16>
    %c0_1 = arith.constant 0 : index
    %c0_2 = arith.constant 0 : index
    %1 = vector.load %arg2[%c0_1, %c0_2] : memref<128x512xbf16, #tpu.memory_space<vmem>>, vector<128x512xbf16>
    %cst = arith.constant dense<0.000000e+00> : vector<72x512xf32>
    %2 = tpu.matmul %0, %1, %cst {dimension_numbers = #tpu.dot_dimension_numbers<[1], [0], [0], [1], [0, 0, 1, 1], [], []>} : vector<72x128xbf16>, vector<128x512xbf16>, vector<72x512xf32> -> vector<72x512xf32>
    %c0_3 = arith.constant 0 : index
    %c0_4 = arith.constant 0 : index
    %3 = vector.load %arg4[%c0_3, %c0_4] : memref<1x512xf32, #tpu.memory_space<vmem>>, vector<1x512xf32>
    %4 = vector.broadcast %3 : vector<1x512xf32> to vector<72x512xf32>
    %5 = arith.addf %2, %4 : vector<72x512xf32>
    %c0_5 = arith.constant 0 : index
    %c0_6 = arith.constant 0 : index
    %6 = vector.load %arg6[%c0_5, %c0_6] : memref<72x512xf32, #tpu.memory_space<vmem>>, vector<72x512xf32>
    tpu.vector_store %arg6[%c0_5, %c0_6], %5 {strides = array<i32>} : memref<72x512xf32, #tpu.memory_space<vmem>>, vector<72x512xf32>,
    %cst_7 = arith.constant 0.000000e+00 : f32
    %7 = vector.broadcast %cst_7 : f32 to vector<8x128xf32>
    %cst_8 = arith.constant 0.000000e+00 : f32
    %8 = vector.broadcast %cst_8 : f32 to vector<8x128xf32>
    %c0_i32 = arith.constant 0 : i32
    %c8_i32 = arith.constant 8 : i32
    %9 = arith.muli %c0_i32, %c8_i32 : i32
    %10 = tpu.assume_multiple %9, 8 : i32
    %11 = arith.index_cast %10 : i32 to index
    %c0_9 = arith.constant 0 : index
    %12 = vector.load %arg6[%11, %c0_9] : memref<72x512xf32, #tpu.memory_space<vmem>>, vector<8x512xf32>
    %13 = arith.truncf %7 : vector<8x128xf32> to vector<8x128xbf16>
    %c0_10 = arith.constant 0 : index
    %c0_11 = arith.constant 0 : index
    %14 = vector.load %arg3[%c0_10, %c0_11] : memref<128x512xbf16, #tpu.memory_space<vmem>>, vector<128x512xbf16>
    %cst_12 = arith.constant dense<0.000000e+00> : vector<8x512xf32>
    %15 = tpu.matmul %13, %14, %cst_12 {dimension_numbers = #tpu.dot_dimension_numbers<[1], [0], [0], [1], [0, 0, 1, 1], [], []>} : vector<8x128xbf16>, vector<128x512xbf16>, vector<8x512xf32> -> vector<8x512xf32>
    %16 = arith.addf %12, %15 : vector<8x512xf32>
    %17 = vector.extract_strided_slice %16 {offsets = [0, 0], sizes = [8, 384], strides = [1, 1]} : vector<8x512xf32> to vector<8x384xf32>
    %18 = arith.negf %17 : vector<8x384xf32>
    %19 = math.exp %18 : vector<8x384xf32>
    %cst_13 = arith.constant 1.000000e+00 : f32
    %20 = vector.broadcast %cst_13 : f32 to vector<8x384xf32>
    %21 = arith.addf %20, %19 : vector<8x384xf32>
    %22 = arith.divf %20, %21 : vector<8x384xf32>
    %23 = vector.extract_strided_slice %16 {offsets = [0, 384], sizes = [8, 128], strides = [1, 1]} : vector<8x512xf32> to vector<8x128xf32>
    %24 = math.tanh %23 : vector<8x128xf32>
    %25 = vector.extract_strided_slice %22 {offsets = [0, 128], sizes = [8, 128], strides = [1, 1]} : vector<8x384xf32> to vector<8x128xf32>
    %26 = arith.mulf %25, %8 : vector<8x128xf32>
    %27 = vector.extract_strided_slice %22 {offsets = [0, 0], sizes = [8, 128], strides = [1, 1]} : vector<8x384xf32> to vector<8x128xf32>
    %28 = arith.mulf %27, %24 : vector<8x128xf32>
    %29 = arith.addf %26, %28 : vector<8x128xf32>
    %30 = vector.extract_strided_slice %22 {offsets = [0, 256], sizes = [8, 128], strides = [1, 1]} : vector<8x384xf32> to vector<8x128xf32>
    %31 = math.tanh %29 : vector<8x128xf32>
    %32 = arith.mulf %30, %31 : vector<8x128xf32>
    %33 = arith.index_cast %10 : i32 to index
    %c0_14 = arith.constant 0 : index
    %34 = vector.load %arg5[%33, %c0_14] : memref<72x128xf32, #tpu.memory_space<vmem>>, vector<8x128xf32>
    tpu.vector_store %arg5[%33, %c0_14], %32 {strides = array<i32>} : memref<72x128xf32, #tpu.memory_space<vmem>>, vector<8x128xf32>,
    %c1_i32 = arith.constant 1 : i32
    %c8_i32_15 = arith.constant 8 : i32
    %35 = arith.muli %c1_i32, %c8_i32_15 : i32
    %36 = tpu.assume_multiple %35, 8 : i32
    %37 = arith.index_cast %36 : i32 to index
    %c0_16 = arith.constant 0 : index
    %38 = vector.load %arg6[%37, %c0_16] : memref<72x512xf32, #tpu.memory_space<vmem>>, vector<8x512xf32>
    %39 = arith.truncf %32 : vector<8x128xf32> to vector<8x128xbf16>
    %c0_17 = arith.constant 0 : index
    %c0_18 = arith.constant 0 : index
    %40 = vector.load %arg3[%c0_17, %c0_18] : memref<128x512xbf16, #tpu.memory_space<vmem>>, vector<128x512xbf16>
    %cst_19 = arith.constant dense<0.000000e+00> : vector<8x512xf32>
    %41 = tpu.matmul %39, %40, %cst_19 {dimension_numbers = #tpu.dot_dimension_numbers<[1], [0], [0], [1], [0, 0, 1, 1], [], []>} : vector<8x128xbf16>, vector<128x512xbf16>, vector<8x512xf32> -> vector<8x512xf32>
    %42 = arith.addf %38, %41 : vector<8x512xf32>
    %43 = vector.extract_strided_slice %42 {offsets = [0, 0], sizes = [8, 384], strides = [1, 1]} : vector<8x512xf32> to vector<8x384xf32>
    %44 = arith.negf %43 : vector<8x384xf32>
    %45 = math.exp %44 : vector<8x384xf32>
    %cst_20 = arith.constant 1.000000e+00 : f32
    %46 = vector.broadcast %cst_20 : f32 to vector<8x384xf32>
    %47 = arith.addf %46, %45 : vector<8x384xf32>
    %48 = arith.divf %46, %47 : vector<8x384xf32>
    %49 = vector.extract_strided_slice %42 {offsets = [0, 384], sizes = [8, 128], strides = [1, 1]} : vector<8x512xf32> to vector<8x128xf32>
    %50 = math.tanh %49 : vector<8x128xf32>
    %51 = vector.extract_strided_slice %48 {offsets = [0, 128], sizes = [8, 128], strides = [1, 1]} : vector<8x384xf32> to vector<8x128xf32>
    %52 = arith.mulf %51, %29 : vector<8x128xf32>
    %53 = vector.extract_strided_slice %48 {offsets = [0, 0], sizes = [8, 128], strides = [1, 1]} : vector<8x384xf32> to vector<8x128xf32>
    %54 = arith.mulf %53, %50 : vector<8x128xf32>
    %55 = arith.addf %52, %54 : vector<8x128xf32>
    %56 = vector.extract_strided_slice %48 {offsets = [0, 256], sizes = [8, 128], strides = [1, 1]} : vector<8x384xf32> to vector<8x128xf32>
    %57 = math.tanh %55 : vector<8x128xf32>
    %58 = arith.mulf %56, %57 : vector<8x128xf32>
    %59 = arith.index_cast %36 : i32 to index
    %c0_21 = arith.constant 0 : index
    %60 = vector.load %arg5[%59, %c0_21] : memref<72x128xf32, #tpu.memory_space<vmem>>, vector<8x128xf32>
    tpu.vector_store %arg5[%59, %c0_21], %58 {strides = array<i32>} : memref<72x128xf32, #tpu.memory_space<vmem>>, vector<8x128xf32>,
    %c2_i32 = arith.constant 2 : i32
    %c8_i32_22 = arith.constant 8 : i32
    %61 = arith.muli %c2_i32, %c8_i32_22 : i32
    %62 = tpu.assume_multiple %61, 8 : i32
    %63 = arith.index_cast %62 : i32 to index
    %c0_23 = arith.constant 0 : index
    %64 = vector.load %arg6[%63, %c0_23] : memref<72x512xf32, #tpu.memory_space<vmem>>, vector<8x512xf32>
    %65 = arith.truncf %58 : vector<8x128xf32> to vector<8x128xbf16>
    %c0_24 = arith.constant 0 : index
    %c0_25 = arith.constant 0 : index
    %66 = vector.load %arg3[%c0_24, %c0_25] : memref<128x512xbf16, #tpu.memory_space<vmem>>, vector<128x512xbf16>
    %cst_26 = arith.constant dense<0.000000e+00> : vector<8x512xf32>
    %67 = tpu.matmul %65, %66, %cst_26 {dimension_numbers = #tpu.dot_dimension_numbers<[1], [0], [0], [1], [0, 0, 1, 1], [], []>} : vector<8x128xbf16>, vector<128x512xbf16>, vector<8x512xf32> -> vector<8x512xf32>
    %68 = arith.addf %64, %67 : vector<8x512xf32>
    %69 = vector.extract_strided_slice %68 {offsets = [0, 0], sizes = [8, 384], strides = [1, 1]} : vector<8x512xf32> to vector<8x384xf32>
    %70 = arith.negf %69 : vector<8x384xf32>
    %71 = math.exp %70 : vector<8x384xf32>
    %cst_27 = arith.constant 1.000000e+00 : f32
    %72 = vector.broadcast %cst_27 : f32 to vector<8x384xf32>
    %73 = arith.addf %72, %71 : vector<8x384xf32>
    %74 = arith.divf %72, %73 : vector<8x384xf32>
    %75 = vector.extract_strided_slice %68 {offsets = [0, 384], sizes = [8, 128], strides = [1, 1]} : vector<8x512xf32> to vector<8x128xf32>
    %76 = math.tanh %75 : vector<8x128xf32>
    %77 = vector.extract_strided_slice %74 {offsets = [0, 128], sizes = [8, 128], strides = [1, 1]} : vector<8x384xf32> to vector<8x128xf32>
    %78 = arith.mulf %77, %55 : vector<8x128xf32>
    %79 = vector.extract_strided_slice %74 {offsets = [0, 0], sizes = [8, 128], strides = [1, 1]} : vector<8x384xf32> to vector<8x128xf32>
    %80 = arith.mulf %79, %76 : vector<8x128xf32>
    %81 = arith.addf %78, %80 : vector<8x128xf32>
    %82 = vector.extract_strided_slice %74 {offsets = [0, 256], sizes = [8, 128], strides = [1, 1]} : vector<8x384xf32> to vector<8x128xf32>
    %83 = math.tanh %81 : vector<8x128xf32>
    %84 = arith.mulf %82, %83 : vector<8x128xf32>
    %85 = arith.index_cast %62 : i32 to index
    %c0_28 = arith.constant 0 : index
    %86 = vector.load %arg5[%85, %c0_28] : memref<72x128xf32, #tpu.memory_space<vmem>>, vector<8x128xf32>
    tpu.vector_store %arg5[%85, %c0_28], %84 {strides = array<i32>} : memref<72x128xf32, #tpu.memory_space<vmem>>, vector<8x128xf32>,
    %c3_i32 = arith.constant 3 : i32
    %c8_i32_29 = arith.constant 8 : i32
    %87 = arith.muli %c3_i32, %c8_i32_29 : i32
    %88 = tpu.assume_multiple %87, 8 : i32
    %89 = arith.index_cast %88 : i32 to index
    %c0_30 = arith.constant 0 : index
    %90 = vector.load %arg6[%89, %c0_30] : memref<72x512xf32, #tpu.memory_space<vmem>>, vector<8x512xf32>
    %91 = arith.truncf %84 : vector<8x128xf32> to vector<8x128xbf16>
    %c0_31 = arith.constant 0 : index
    %c0_32 = arith.constant 0 : index
    %92 = vector.load %arg3[%c0_31, %c0_32] : memref<128x512xbf16, #tpu.memory_space<vmem>>, vector<128x512xbf16>
    %cst_33 = arith.constant dense<0.000000e+00> : vector<8x512xf32>
    %93 = tpu.matmul %91, %92, %cst_33 {dimension_numbers = #tpu.dot_dimension_numbers<[1], [0], [0], [1], [0, 0, 1, 1], [], []>} : vector<8x128xbf16>, vector<128x512xbf16>, vector<8x512xf32> -> vector<8x512xf32>
    %94 = arith.addf %90, %93 : vector<8x512xf32>
    %95 = vector.extract_strided_slice %94 {offsets = [0, 0], sizes = [8, 384], strides = [1, 1]} : vector<8x512xf32> to vector<8x384xf32>
    %96 = arith.negf %95 : vector<8x384xf32>
    %97 = math.exp %96 : vector<8x384xf32>
    %cst_34 = arith.constant 1.000000e+00 : f32
    %98 = vector.broadcast %cst_34 : f32 to vector<8x384xf32>
    %99 = arith.addf %98, %97 : vector<8x384xf32>
    %100 = arith.divf %98, %99 : vector<8x384xf32>
    %101 = vector.extract_strided_slice %94 {offsets = [0, 384], sizes = [8, 128], strides = [1, 1]} : vector<8x512xf32> to vector<8x128xf32>
    %102 = math.tanh %101 : vector<8x128xf32>
    %103 = vector.extract_strided_slice %100 {offsets = [0, 128], sizes = [8, 128], strides = [1, 1]} : vector<8x384xf32> to vector<8x128xf32>
    %104 = arith.mulf %103, %81 : vector<8x128xf32>
    %105 = vector.extract_strided_slice %100 {offsets = [0, 0], sizes = [8, 128], strides = [1, 1]} : vector<8x384xf32> to vector<8x128xf32>
    %106 = arith.mulf %105, %102 : vector<8x128xf32>
    %107 = arith.addf %104, %106 : vector<8x128xf32>
    %108 = vector.extract_strided_slice %100 {offsets = [0, 256], sizes = [8, 128], strides = [1, 1]} : vector<8x384xf32> to vector<8x128xf32>
    %109 = math.tanh %107 : vector<8x128xf32>
    %110 = arith.mulf %108, %109 : vector<8x128xf32>
    %111 = arith.index_cast %88 : i32 to index
    %c0_35 = arith.constant 0 : index
    %112 = vector.load %arg5[%111, %c0_35] : memref<72x128xf32, #tpu.memory_space<vmem>>, vector<8x128xf32>
    tpu.vector_store %arg5[%111, %c0_35], %110 {strides = array<i32>} : memref<72x128xf32, #tpu.memory_space<vmem>>, vector<8x128xf32>,
    %c4_i32 = arith.constant 4 : i32
    %c8_i32_36 = arith.constant 8 : i32
    %113 = arith.muli %c4_i32, %c8_i32_36 : i32
    %114 = tpu.assume_multiple %113, 8 : i32
    %115 = arith.index_cast %114 : i32 to index
    %c0_37 = arith.constant 0 : index
    %116 = vector.load %arg6[%115, %c0_37] : memref<72x512xf32, #tpu.memory_space<vmem>>, vector<8x512xf32>
    %117 = arith.truncf %110 : vector<8x128xf32> to vector<8x128xbf16>
    %c0_38 = arith.constant 0 : index
    %c0_39 = arith.constant 0 : index
    %118 = vector.load %arg3[%c0_38, %c0_39] : memref<128x512xbf16, #tpu.memory_space<vmem>>, vector<128x512xbf16>
    %cst_40 = arith.constant dense<0.000000e+00> : vector<8x512xf32>
    %119 = tpu.matmul %117, %118, %cst_40 {dimension_numbers = #tpu.dot_dimension_numbers<[1], [0], [0], [1], [0, 0, 1, 1], [], []>} : vector<8x128xbf16>, vector<128x512xbf16>, vector<8x512xf32> -> vector<8x512xf32>
    %120 = arith.addf %116, %119 : vector<8x512xf32>
    %121 = vector.extract_strided_slice %120 {offsets = [0, 0], sizes = [8, 384], strides = [1, 1]} : vector<8x512xf32> to vector<8x384xf32>
    %122 = arith.negf %121 : vector<8x384xf32>
    %123 = math.exp %122 : vector<8x384xf32>
    %cst_41 = arith.constant 1.000000e+00 : f32
    %124 = vector.broadcast %cst_41 : f32 to vector<8x384xf32>
    %125 = arith.addf %124, %123 : vector<8x384xf32>
    %126 = arith.divf %124, %125 : vector<8x384xf32>
    %127 = vector.extract_strided_slice %120 {offsets = [0, 384], sizes = [8, 128], strides = [1, 1]} : vector<8x512xf32> to vector<8x128xf32>
    %128 = math.tanh %127 : vector<8x128xf32>
    %129 = vector.extract_strided_slice %126 {offsets = [0, 128], sizes = [8, 128], strides = [1, 1]} : vector<8x384xf32> to vector<8x128xf32>
    %130 = arith.mulf %129, %107 : vector<8x128xf32>
    %131 = vector.extract_strided_slice %126 {offsets = [0, 0], sizes = [8, 128], strides = [1, 1]} : vector<8x384xf32> to vector<8x128xf32>
    %132 = arith.mulf %131, %128 : vector<8x128xf32>
    %133 = arith.addf %130, %132 : vector<8x128xf32>
    %134 = vector.extract_strided_slice %126 {offsets = [0, 256], sizes = [8, 128], strides = [1, 1]} : vector<8x384xf32> to vector<8x128xf32>
    %135 = math.tanh %133 : vector<8x128xf32>
    %136 = arith.mulf %134, %135 : vector<8x128xf32>
    %137 = arith.index_cast %114 : i32 to index
    %c0_42 = arith.constant 0 : index
    %138 = vector.load %arg5[%137, %c0_42] : memref<72x128xf32, #tpu.memory_space<vmem>>, vector<8x128xf32>
    tpu.vector_store %arg5[%137, %c0_42], %136 {strides = array<i32>} : memref<72x128xf32, #tpu.memory_space<vmem>>, vector<8x128xf32>,
    %c5_i32 = arith.constant 5 : i32
    %c8_i32_43 = arith.constant 8 : i32
    %139 = arith.muli %c5_i32, %c8_i32_43 : i32
    %140 = tpu.assume_multiple %139, 8 : i32
    %141 = arith.index_cast %140 : i32 to index
    %c0_44 = arith.constant 0 : index
    %142 = vector.load %arg6[%141, %c0_44] : memref<72x512xf32, #tpu.memory_space<vmem>>, vector<8x512xf32>
    %143 = arith.truncf %136 : vector<8x128xf32> to vector<8x128xbf16>
    %c0_45 = arith.constant 0 : index
    %c0_46 = arith.constant 0 : index
    %144 = vector.load %arg3[%c0_45, %c0_46] : memref<128x512xbf16, #tpu.memory_space<vmem>>, vector<128x512xbf16>
    %cst_47 = arith.constant dense<0.000000e+00> : vector<8x512xf32>
    %145 = tpu.matmul %143, %144, %cst_47 {dimension_numbers = #tpu.dot_dimension_numbers<[1], [0], [0], [1], [0, 0, 1, 1], [], []>} : vector<8x128xbf16>, vector<128x512xbf16>, vector<8x512xf32> -> vector<8x512xf32>
    %146 = arith.addf %142, %145 : vector<8x512xf32>
    %147 = vector.extract_strided_slice %146 {offsets = [0, 0], sizes = [8, 384], strides = [1, 1]} : vector<8x512xf32> to vector<8x384xf32>
    %148 = arith.negf %147 : vector<8x384xf32>
    %149 = math.exp %148 : vector<8x384xf32>
    %cst_48 = arith.constant 1.000000e+00 : f32
    %150 = vector.broadcast %cst_48 : f32 to vector<8x384xf32>
    %151 = arith.addf %150, %149 : vector<8x384xf32>
    %152 = arith.divf %150, %151 : vector<8x384xf32>
    %153 = vector.extract_strided_slice %146 {offsets = [0, 384], sizes = [8, 128], strides = [1, 1]} : vector<8x512xf32> to vector<8x128xf32>
    %154 = math.tanh %153 : vector<8x128xf32>
    %155 = vector.extract_strided_slice %152 {offsets = [0, 128], sizes = [8, 128], strides = [1, 1]} : vector<8x384xf32> to vector<8x128xf32>
    %156 = arith.mulf %155, %133 : vector<8x128xf32>
    %157 = vector.extract_strided_slice %152 {offsets = [0, 0], sizes = [8, 128], strides = [1, 1]} : vector<8x384xf32> to vector<8x128xf32>
    %158 = arith.mulf %157, %154 : vector<8x128xf32>
    %159 = arith.addf %156, %158 : vector<8x128xf32>
    %160 = vector.extract_strided_slice %152 {offsets = [0, 256], sizes = [8, 128], strides = [1, 1]} : vector<8x384xf32> to vector<8x128xf32>
    %161 = math.tanh %159 : vector<8x128xf32>
    %162 = arith.mulf %160, %161 : vector<8x128xf32>
    %163 = arith.index_cast %140 : i32 to index
    %c0_49 = arith.constant 0 : index
    %164 = vector.load %arg5[%163, %c0_49] : memref<72x128xf32, #tpu.memory_space<vmem>>, vector<8x128xf32>
    tpu.vector_store %arg5[%163, %c0_49], %162 {strides = array<i32>} : memref<72x128xf32, #tpu.memory_space<vmem>>, vector<8x128xf32>,
    %c6_i32 = arith.constant 6 : i32
    %c8_i32_50 = arith.constant 8 : i32
    %165 = arith.muli %c6_i32, %c8_i32_50 : i32
    %166 = tpu.assume_multiple %165, 8 : i32
    %167 = arith.index_cast %166 : i32 to index
    %c0_51 = arith.constant 0 : index
    %168 = vector.load %arg6[%167, %c0_51] : memref<72x512xf32, #tpu.memory_space<vmem>>, vector<8x512xf32>
    %169 = arith.truncf %162 : vector<8x128xf32> to vector<8x128xbf16>
    %c0_52 = arith.constant 0 : index
    %c0_53 = arith.constant 0 : index
    %170 = vector.load %arg3[%c0_52, %c0_53] : memref<128x512xbf16, #tpu.memory_space<vmem>>, vector<128x512xbf16>
    %cst_54 = arith.constant dense<0.000000e+00> : vector<8x512xf32>
    %171 = tpu.matmul %169, %170, %cst_54 {dimension_numbers = #tpu.dot_dimension_numbers<[1], [0], [0], [1], [0, 0, 1, 1], [], []>} : vector<8x128xbf16>, vector<128x512xbf16>, vector<8x512xf32> -> vector<8x512xf32>
    %172 = arith.addf %168, %171 : vector<8x512xf32>
    %173 = vector.extract_strided_slice %172 {offsets = [0, 0], sizes = [8, 384], strides = [1, 1]} : vector<8x512xf32> to vector<8x384xf32>
    %174 = arith.negf %173 : vector<8x384xf32>
    %175 = math.exp %174 : vector<8x384xf32>
    %cst_55 = arith.constant 1.000000e+00 : f32
    %176 = vector.broadcast %cst_55 : f32 to vector<8x384xf32>
    %177 = arith.addf %176, %175 : vector<8x384xf32>
    %178 = arith.divf %176, %177 : vector<8x384xf32>
    %179 = vector.extract_strided_slice %172 {offsets = [0, 384], sizes = [8, 128], strides = [1, 1]} : vector<8x512xf32> to vector<8x128xf32>
    %180 = math.tanh %179 : vector<8x128xf32>
    %181 = vector.extract_strided_slice %178 {offsets = [0, 128], sizes = [8, 128], strides = [1, 1]} : vector<8x384xf32> to vector<8x128xf32>
    %182 = arith.mulf %181, %159 : vector<8x128xf32>
    %183 = vector.extract_strided_slice %178 {offsets = [0, 0], sizes = [8, 128], strides = [1, 1]} : vector<8x384xf32> to vector<8x128xf32>
    %184 = arith.mulf %183, %180 : vector<8x128xf32>
    %185 = arith.addf %182, %184 : vector<8x128xf32>
    %186 = vector.extract_strided_slice %178 {offsets = [0, 256], sizes = [8, 128], strides = [1, 1]} : vector<8x384xf32> to vector<8x128xf32>
    %187 = math.tanh %185 : vector<8x128xf32>
    %188 = arith.mulf %186, %187 : vector<8x128xf32>
    %189 = arith.index_cast %166 : i32 to index
    %c0_56 = arith.constant 0 : index
    %190 = vector.load %arg5[%189, %c0_56] : memref<72x128xf32, #tpu.memory_space<vmem>>, vector<8x128xf32>
    tpu.vector_store %arg5[%189, %c0_56], %188 {strides = array<i32>} : memref<72x128xf32, #tpu.memory_space<vmem>>, vector<8x128xf32>,
    %c7_i32 = arith.constant 7 : i32
    %c8_i32_57 = arith.constant 8 : i32
    %191 = arith.muli %c7_i32, %c8_i32_57 : i32
    %192 = tpu.assume_multiple %191, 8 : i32
    %193 = arith.index_cast %192 : i32 to index
    %c0_58 = arith.constant 0 : index
    %194 = vector.load %arg6[%193, %c0_58] : memref<72x512xf32, #tpu.memory_space<vmem>>, vector<8x512xf32>
    %195 = arith.truncf %188 : vector<8x128xf32> to vector<8x128xbf16>
    %c0_59 = arith.constant 0 : index
    %c0_60 = arith.constant 0 : index
    %196 = vector.load %arg3[%c0_59, %c0_60] : memref<128x512xbf16, #tpu.memory_space<vmem>>, vector<128x512xbf16>
    %cst_61 = arith.constant dense<0.000000e+00> : vector<8x512xf32>
    %197 = tpu.matmul %195, %196, %cst_61 {dimension_numbers = #tpu.dot_dimension_numbers<[1], [0], [0], [1], [0, 0, 1, 1], [], []>} : vector<8x128xbf16>, vector<128x512xbf16>, vector<8x512xf32> -> vector<8x512xf32>
    %198 = arith.addf %194, %197 : vector<8x512xf32>
    %199 = vector.extract_strided_slice %198 {offsets = [0, 0], sizes = [8, 384], strides = [1, 1]} : vector<8x512xf32> to vector<8x384xf32>
    %200 = arith.negf %199 : vector<8x384xf32>
    %201 = math.exp %200 : vector<8x384xf32>
    %cst_62 = arith.constant 1.000000e+00 : f32
    %202 = vector.broadcast %cst_62 : f32 to vector<8x384xf32>
    %203 = arith.addf %202, %201 : vector<8x384xf32>
    %204 = arith.divf %202, %203 : vector<8x384xf32>
    %205 = vector.extract_strided_slice %198 {offsets = [0, 384], sizes = [8, 128], strides = [1, 1]} : vector<8x512xf32> to vector<8x128xf32>
    %206 = math.tanh %205 : vector<8x128xf32>
    %207 = vector.extract_strided_slice %204 {offsets = [0, 128], sizes = [8, 128], strides = [1, 1]} : vector<8x384xf32> to vector<8x128xf32>
    %208 = arith.mulf %207, %185 : vector<8x128xf32>
    %209 = vector.extract_strided_slice %204 {offsets = [0, 0], sizes = [8, 128], strides = [1, 1]} : vector<8x384xf32> to vector<8x128xf32>
    %210 = arith.mulf %209, %206 : vector<8x128xf32>
    %211 = arith.addf %208, %210 : vector<8x128xf32>
    %212 = vector.extract_strided_slice %204 {offsets = [0, 256], sizes = [8, 128], strides = [1, 1]} : vector<8x384xf32> to vector<8x128xf32>
    %213 = math.tanh %211 : vector<8x128xf32>
    %214 = arith.mulf %212, %213 : vector<8x128xf32>
    %215 = arith.index_cast %192 : i32 to index
    %c0_63 = arith.constant 0 : index
    %216 = vector.load %arg5[%215, %c0_63] : memref<72x128xf32, #tpu.memory_space<vmem>>, vector<8x128xf32>
    tpu.vector_store %arg5[%215, %c0_63], %214 {strides = array<i32>} : memref<72x128xf32, #tpu.memory_space<vmem>>, vector<8x128xf32>,
    %c8_i32_64 = arith.constant 8 : i32
    %c8_i32_65 = arith.constant 8 : i32
    %217 = arith.muli %c8_i32_64, %c8_i32_65 : i32
    %218 = tpu.assume_multiple %217, 8 : i32
    %219 = arith.index_cast %218 : i32 to index
    %c0_66 = arith.constant 0 : index
    %220 = vector.load %arg6[%219, %c0_66] : memref<72x512xf32, #tpu.memory_space<vmem>>, vector<8x512xf32>
    %221 = arith.truncf %214 : vector<8x128xf32> to vector<8x128xbf16>
    %c0_67 = arith.constant 0 : index
    %c0_68 = arith.constant 0 : index
    %222 = vector.load %arg3[%c0_67, %c0_68] : memref<128x512xbf16, #tpu.memory_space<vmem>>, vector<128x512xbf16>
    %cst_69 = arith.constant dense<0.000000e+00> : vector<8x512xf32>
    %223 = tpu.matmul %221, %222, %cst_69 {dimension_numbers = #tpu.dot_dimension_numbers<[1], [0], [0], [1], [0, 0, 1, 1], [], []>} : vector<8x128xbf16>, vector<128x512xbf16>, vector<8x512xf32> -> vector<8x512xf32>
    %224 = arith.addf %220, %223 : vector<8x512xf32>
    %225 = vector.extract_strided_slice %224 {offsets = [0, 0], sizes = [8, 384], strides = [1, 1]} : vector<8x512xf32> to vector<8x384xf32>
    %226 = arith.negf %225 : vector<8x384xf32>
    %227 = math.exp %226 : vector<8x384xf32>
    %cst_70 = arith.constant 1.000000e+00 : f32
    %228 = vector.broadcast %cst_70 : f32 to vector<8x384xf32>
    %229 = arith.addf %228, %227 : vector<8x384xf32>
    %230 = arith.divf %228, %229 : vector<8x384xf32>
    %231 = vector.extract_strided_slice %224 {offsets = [0, 384], sizes = [8, 128], strides = [1, 1]} : vector<8x512xf32> to vector<8x128xf32>
    %232 = math.tanh %231 : vector<8x128xf32>
    %233 = vector.extract_strided_slice %230 {offsets = [0, 128], sizes = [8, 128], strides = [1, 1]} : vector<8x384xf32> to vector<8x128xf32>
    %234 = arith.mulf %233, %211 : vector<8x128xf32>
    %235 = vector.extract_strided_slice %230 {offsets = [0, 0], sizes = [8, 128], strides = [1, 1]} : vector<8x384xf32> to vector<8x128xf32>
    %236 = arith.mulf %235, %232 : vector<8x128xf32>
    %237 = arith.addf %234, %236 : vector<8x128xf32>
    %238 = vector.extract_strided_slice %230 {offsets = [0, 256], sizes = [8, 128], strides = [1, 1]} : vector<8x384xf32> to vector<8x128xf32>
    %239 = math.tanh %237 : vector<8x128xf32>
    %240 = arith.mulf %238, %239 : vector<8x128xf32>
    %241 = arith.index_cast %218 : i32 to index
    %c0_71 = arith.constant 0 : index
    %242 = vector.load %arg5[%241, %c0_71] : memref<72x128xf32, #tpu.memory_space<vmem>>, vector<8x128xf32>
    tpu.vector_store %arg5[%241, %c0_71], %240 {strides = array<i32>} : memref<72x128xf32, #tpu.memory_space<vmem>>, vector<8x128xf32>,
    %c9_i32 = arith.constant 9 : i32
    return
  }
  func.func @transform_0(%arg0: i32) -> (i32, i32) {
    %c0_i32 = arith.constant 0 : i32
    %c0_i32_0 = arith.constant 0 : i32
    %c0_i32_1 = arith.constant 0 : i32
    return %c0_i32, %c0_i32_0 : i32, i32
  }
  func.func @transform_1(%arg0: i32) -> (i32, i32) {
    %c0_i32 = arith.constant 0 : i32
    %c0_i32_0 = arith.constant 0 : i32
    %c0_i32_1 = arith.constant 0 : i32
    return %c0_i32, %c0_i32_0 : i32, i32
  }
  func.func @transform_2(%arg0: i32) -> (i32, i32) {
    %c0_i32 = arith.constant 0 : i32
    %c0_i32_0 = arith.constant 0 : i32
    %c0_i32_1 = arith.constant 0 : i32
    return %c0_i32, %c0_i32_0 : i32, i32
  }
  func.func @transform_3(%arg0: i32) -> (i32, i32) {
    %c0_i32 = arith.constant 0 : i32
    %c0_i32_0 = arith.constant 0 : i32
    %c0_i32_1 = arith.constant 0 : i32
    return %c0_i32, %c0_i32_0 : i32, i32
  }
  func.func @transform_4(%arg0: i32) -> (i32, i32) {
    %c0_i32 = arith.constant 0 : i32
    %c0_i32_0 = arith.constant 0 : i32
    %c0_i32_1 = arith.constant 0 : i32
    return %c0_i32, %c0_i32_0 : i32, i32
  }
}

</mosaic_0001>

<llo_original>
// kernel: tpu_custom_call.1
$region0: #{tpu_custom_call.1}
  #allocation0 [shape = 'u32[]', space=smem, size = 0x4, offset = 0x4, fixed_abs, tag = 'smem constant byte address 0x4 - core index']
  #allocation1 [shape = 'u32[144,128]{1,0:T(1,128)}', space=vmem, size = 0x12000, scoped, tag = 'internal scratch']
  #allocation2 [shape = 'f32[72,512]{1,0:T(8,128)}', space=vmem, size = 0x24000, scoped, tag = 'scratch operand']
  %s0 = inlined_call_operand.hbm [shape: bf16[72,128], index: 0, kind: input, shape index: {}]
  %s1 = inlined_call_operand.hbm [shape: bf16[128,512], index: 1, kind: input, shape index: {}]
  %s2 = inlined_call_operand.hbm [shape: bf16[128,512], index: 2, kind: input, shape index: {}]
  %s3 = inlined_call_operand.vmem [shape: f32[1,512], index: 3, kind: input, shape index: {}]
  %s4 = inlined_call_operand.hbm [shape: f32[72,128], index: 4, kind: output, shape index: {}]
  %s5 = sld [smem:[#allocation0]]
  $region38: #{tpu_custom_call.1} parent=0
    _
  %s7 = ssub.s32 1, %s5
  %s8 = scalar_select 0, %s7, %s5
  $region1: #{tpu_custom_call.1} parent=0
    #allocation3 [shape = 'u8[18432]{0}', space=vmem, size = 0x4800, scoped, tag = 'input window, operand 0, single buffered']
    #allocation4 [shape = 's32[1]{0}', space=sflag, size = 0x4, scoped, tag = 'scoped memory for tpu_custom_call.1']
    #allocation5 [shape = 's32[1]{0}', space=sflag, size = 0x4, scoped, tag = 'scoped memory for tpu_custom_call.1']
    #allocation6 [shape = 'u8[131072]{0}', space=vmem, size = 0x20000, scoped, tag = 'input window, operand 1, single buffered']
    #allocation7 [shape = 's32[1]{0}', space=sflag, size = 0x4, scoped, tag = 'scoped memory for tpu_custom_call.1']
    #allocation8 [shape = 'u8[131072]{0}', space=vmem, size = 0x20000, scoped, tag = 'input window, operand 2, single buffered']
    #allocation9 [shape = 'u8[36864]{0}', space=vmem, size = 0x9000, scoped, tag = 'output window, operand 0, single buffered']
    %9 = vsyncpa [#allocation4], 0
    %10 = vsyncpa [#allocation7], 0
    %11 = vsyncpa [#allocation5], 0
    // Predicated region
    $region2: #{tpu_custom_call.1} parent=1 // pred_check
      _
    $region3: #{tpu_custom_call.1} parent=1 // pred_check_branch
      %13 = sbr.rel (0) target = $region5
    $region4: #{tpu_custom_call.1} parent=1 // pred_region
      %s15 = ssub.s32 576, 576
      %16 = vsyncadd [#allocation4], %s15
      %s17 = sshll.u32 [#allocation3], 4
      %s18 = int_to_ptr.vmem [resolvable:$true] %s17
      %23 = dma.hbm_to_vmem [thread:$0]  %s0, 576, %s18, [#allocation4], 64, 64, 4
    $region5: #{tpu_custom_call.1} parent=1 // pred_fallthru
      _
    // Predicated region
    $region6: #{tpu_custom_call.1} parent=1 // pred_check
      _
    $region7: #{tpu_custom_call.1} parent=1 // pred_check_branch
      %25 = sbr.rel (0) target = $region9
    $region8: #{tpu_custom_call.1} parent=1 // pred_region
      %s27 = ssub.s32 4096, 4096
      %28 = vsyncadd [#allocation7], %s27
      %s29 = sshll.u32 [#allocation6], 4
      %s30 = int_to_ptr.vmem [resolvable:$true] %s29
      %35 = dma.hbm_to_vmem [thread:$0]  %s1, 4096, %s30, [#allocation7], 256, 256, 16
    $region9: #{tpu_custom_call.1} parent=1 // pred_fallthru
      _
    // Predicated region
    $region10: #{tpu_custom_call.1} parent=1 // pred_check
      _
    $region11: #{tpu_custom_call.1} parent=1 // pred_check_branch
      %37 = sbr.rel (0) target = $region13
    $region12: #{tpu_custom_call.1} parent=1 // pred_region
      %s39 = ssub.s32 4096, 4096
      %40 = vsyncadd [#allocation7], %s39
      %s41 = sshll.u32 [#allocation8], 4
      %s42 = int_to_ptr.vmem [resolvable:$true] %s41
      %47 = dma.hbm_to_vmem [thread:$0]  %s2, 4096, %s42, [#allocation7], 256, 256, 16
    $region13: #{tpu_custom_call.1} parent=1 // pred_fallthru
      _
    // Predicated region
    $region14: #{tpu_custom_call.1} parent=1 // pred_check
      _
    $region15: #{tpu_custom_call.1} parent=1 // pred_check_branch
      %49 = sbr.rel (0) target = $region17
    $region16: #{tpu_custom_call.1} parent=1 // pred_region
      _
    $region17: #{tpu_custom_call.1} parent=1 // pred_fallthru
      _
    // Predicated region
    $region18: #{tpu_custom_call.1} parent=1 // pred_check
      _
    $region19: #{tpu_custom_call.1} parent=1 // pred_check_branch
      %51 = sbr.rel (0) target = $region21
    $region20: #{tpu_custom_call.1} parent=1 // pred_region
      %52 = dma.done [#allocation4], 576
    $region21: #{tpu_custom_call.1} parent=1 // pred_fallthru
      _
    // Predicated region
    $region22: #{tpu_custom_call.1} parent=1 // pred_check
      _
    $region23: #{tpu_custom_call.1} parent=1 // pred_check_branch
      %54 = sbr.rel (0) target = $region25
    $region24: #{tpu_custom_call.1} parent=1 // pred_region
      %55 = dma.done [#allocation7], 4096
    $region25: #{tpu_custom_call.1} parent=1 // pred_fallthru
      _
    // Predicated region
    $region26: #{tpu_custom_call.1} parent=1 // pred_check
      _
    $region27: #{tpu_custom_call.1} parent=1 // pred_check_branch
      %57 = sbr.rel (0) target = $region29
    $region28: #{tpu_custom_call.1} parent=1 // pred_region
      %58 = dma.done [#allocation7], 4096
    $region29: #{tpu_custom_call.1} parent=1 // pred_fallthru
      _
    %v60 = vld [vmem:[#allocation3] sm:$0xf]
    %v61 = vld [vmem:[#allocation3 + $0x4] sm:$0xf]
    %v62 = vld [vmem:[#allocation3 + $0x8] sm:$0xf]
    %v63 = vld [vmem:[#allocation3 + $0xc] sm:$0xf]
    %v64 = vld [vmem:[#allocation3 + $0x10] sm:$0xf]
    %v65 = vld [vmem:[#allocation3 + $0x14] sm:$0xf]
    %v66 = vld [vmem:[#allocation3 + $0x18] sm:$0xf]
    %v67 = vld [vmem:[#allocation3 + $0x1c] sm:$0xf]
    %v68 = vld [vmem:[#allocation3 + $0x20] sm:$0xf]
    %v69 = vld [vmem:[#allocation6] sm:$0xff]
    %v70 = vld [vmem:[#allocation6 + $0x8] sm:$0xff]
    %v71 = vld [vmem:[#allocation6 + $0x10] sm:$0xff]
    %v72 = vld [vmem:[#allocation6 + $0x18] sm:$0xff]
    %v73 = vld [vmem:[#allocation6 + $0x20] sm:$0xff]
    %v74 = vld [vmem:[#allocation6 + $0x28] sm:$0xff]
    %v75 = vld [vmem:[#allocation6 + $0x30] sm:$0xff]
    %v76 = vld [vmem:[#allocation6 + $0x38] sm:$0xff]
    %v77 = vld [vmem:[#allocation6 + $0x40] sm:$0xff]
    %v78 = vld [vmem:[#allocation6 + $0x48] sm:$0xff]
    %v79 = vld [vmem:[#allocation6 + $0x50] sm:$0xff]
    %v80 = vld [vmem:[#allocation6 + $0x58] sm:$0xff]
    %v81 = vld [vmem:[#allocation6 + $0x60] sm:$0xff]
    %v82 = vld [vmem:[#allocation6 + $0x68] sm:$0xff]
    %v83 = vld [vmem:[#allocation6 + $0x70] sm:$0xff]
    %v84 = vld [vmem:[#allocation6 + $0x78] sm:$0xff]
    %v85 = vld [vmem:[#allocation6 + $0x80] sm:$0xff]
    %v86 = vld [vmem:[#allocation6 + $0x88] sm:$0xff]
    %v87 = vld [vmem:[#allocation6 + $0x90] sm:$0xff]
    %v88 = vld [vmem:[#allocation6 + $0x98] sm:$0xff]
    %v89 = vld [vmem:[#allocation6 + $0xa0] sm:$0xff]
    %v90 = vld [vmem:[#allocation6 + $0xa8] sm:$0xff]
    %v91 = vld [vmem:[#allocation6 + $0xb0] sm:$0xff]
    %v92 = vld [vmem:[#allocation6 + $0xb8] sm:$0xff]
    %v93 = vld [vmem:[#allocation6 + $0xc0] sm:$0xff]
    %v94 = vld [vmem:[#allocation6 + $0xc8] sm:$0xff]
    %v95 = vld [vmem:[#allocation6 + $0xd0] sm:$0xff]
    %v96 = vld [vmem:[#allocation6 + $0xd8] sm:$0xff]
    %v97 = vld [vmem:[#allocation6 + $0xe0] sm:$0xff]
    %v98 = vld [vmem:[#allocation6 + $0xe8] sm:$0xff]
    %v99 = vld [vmem:[#allocation6 + $0xf0] sm:$0xff]
    %v100 = vld [vmem:[#allocation6 + $0xf8] sm:$0xff]
    %v101 = vld [vmem:[%s3] sm:$0xf]
    %v103 = vlaneseq
    %v104 = vshrl.u32 %v103, 7
    %v105 = vsub.s32 0, %v104
    %v106 = vrot.slane %v101, %v105
    %v107 = vlaneseq
    %v108 = vshrl.u32 %v107, 7
    %v109 = vsub.s32 1, %v108
    %v110 = vrot.slane %v101, %v109
    %v111 = vlaneseq
    %v112 = vshrl.u32 %v111, 7
    %v113 = vsub.s32 2, %v112
    %v114 = vrot.slane %v101, %v113
    %v115 = vlaneseq
    %v116 = vshrl.u32 %v115, 7
    %v117 = vsub.s32 3, %v116
    %v118 = vrot.slane %v101, %v117
    %v132 = vunpack.c.l.b16 %v60
    %v133 = vunpack.c.l.b16 %v61
    %v134 = vunpack.c.l.b16 %v62
    %v135 = vunpack.c.l.b16 %v63
    %v136 = vunpack.c.l.b16 %v64
    %v137 = vunpack.c.l.b16 %v65
    %v138 = vunpack.c.l.b16 %v66
    %v139 = vunpack.c.l.b16 %v67
    %v140 = vunpack.c.l.b16 %v68
    %v141 = vpack.c.b16 %v133, %v132
    %v142 = vpack.c.b16 %v135, %v134
    %v143 = vpack.c.b16 %v137, %v136
    %v144 = vpack.c.b16 %v139, %v138
    %v145 = vpack.c.b16 %v140, %v140
    %v183 = vunpack.c.l.b16 %v69
    %v184 = vunpack.c.h.b16 %v69
    %v185 = vunpack.c.l.b16 %v70
    %v186 = vunpack.c.h.b16 %v70
    %v187 = vunpack.c.l.b16 %v71
    %v188 = vunpack.c.h.b16 %v71
    %v189 = vunpack.c.l.b16 %v72
    %v190 = vunpack.c.h.b16 %v72
    %v191 = vunpack.c.l.b16 %v73
    %v192 = vunpack.c.h.b16 %v73
    %v193 = vunpack.c.l.b16 %v74
    %v194 = vunpack.c.h.b16 %v74
    %v195 = vunpack.c.l.b16 %v75
    %v196 = vunpack.c.h.b16 %v75
    %v197 = vunpack.c.l.b16 %v76
    %v198 = vunpack.c.h.b16 %v76
    %v199 = vunpack.c.l.b16 %v77
    %v200 = vunpack.c.h.b16 %v77
    %v201 = vunpack.c.l.b16 %v78
    %v202 = vunpack.c.h.b16 %v78
    %v203 = vunpack.c.l.b16 %v79
    %v204 = vunpack.c.h.b16 %v79
    %v205 = vunpack.c.l.b16 %v80
    %v206 = vunpack.c.h.b16 %v80
    %v207 = vunpack.c.l.b16 %v81
    %v208 = vunpack.c.h.b16 %v81
    %v209 = vunpack.c.l.b16 %v82
    %v210 = vunpack.c.h.b16 %v82
    %v211 = vunpack.c.l.b16 %v83
    %v212 = vunpack.c.h.b16 %v83
    %v213 = vunpack.c.l.b16 %v84
    %v214 = vunpack.c.h.b16 %v84
    %v215 = vunpack.c.l.b16 %v85
    %v216 = vunpack.c.h.b16 %v85
    %v217 = vunpack.c.l.b16 %v86
    %v218 = vunpack.c.h.b16 %v86
    %v219 = vunpack.c.l.b16 %v87
    %v220 = vunpack.c.h.b16 %v87
    %v221 = vunpack.c.l.b16 %v88
    %v222 = vunpack.c.h.b16 %v88
    %v223 = vunpack.c.l.b16 %v89
    %v224 = vunpack.c.h.b16 %v89
    %v225 = vunpack.c.l.b16 %v90
    %v226 = vunpack.c.h.b16 %v90
    %v227 = vunpack.c.l.b16 %v91
    %v228 = vunpack.c.h.b16 %v91
    %v229 = vunpack.c.l.b16 %v92
    %v230 = vunpack.c.h.b16 %v92
    %v231 = vunpack.c.l.b16 %v93
    %v232 = vunpack.c.h.b16 %v93
    %v233 = vunpack.c.l.b16 %v94
    %v234 = vunpack.c.h.b16 %v94
    %v235 = vunpack.c.l.b16 %v95
    %v236 = vunpack.c.h.b16 %v95
    %v237 = vunpack.c.l.b16 %v96
    %v238 = vunpack.c.h.b16 %v96
    %v239 = vunpack.c.l.b16 %v97
    %v240 = vunpack.c.h.b16 %v97
    %v241 = vunpack.c.l.b16 %v98
    %v242 = vunpack.c.h.b16 %v98
    %v243 = vunpack.c.l.b16 %v99
    %v244 = vunpack.c.h.b16 %v99
    %v245 = vunpack.c.l.b16 %v100
    %v246 = vunpack.c.h.b16 %v100
    %v247 = vpack.c.b16 %v187, %v183
    %v248 = vpack.c.b16 %v188, %v184
    %v249 = vpack.c.b16 %v189, %v185
    %v250 = vpack.c.b16 %v190, %v186
    %v251 = vpack.c.b16 %v195, %v191
    %v252 = vpack.c.b16 %v196, %v192
    %v253 = vpack.c.b16 %v197, %v193
    %v254 = vpack.c.b16 %v198, %v194
    %v255 = vpack.c.b16 %v203, %v199
    %v256 = vpack.c.b16 %v204, %v200
    %v257 = vpack.c.b16 %v205, %v201
    %v258 = vpack.c.b16 %v206, %v202
    %v259 = vpack.c.b16 %v211, %v207
    %v260 = vpack.c.b16 %v212, %v208
    %v261 = vpack.c.b16 %v213, %v209
    %v262 = vpack.c.b16 %v214, %v210
    %v263 = vpack.c.b16 %v219, %v215
    %v264 = vpack.c.b16 %v220, %v216
    %v265 = vpack.c.b16 %v221, %v217
    %v266 = vpack.c.b16 %v222, %v218
    %v267 = vpack.c.b16 %v227, %v223
    %v268 = vpack.c.b16 %v228, %v224
    %v269 = vpack.c.b16 %v229, %v225
    %v270 = vpack.c.b16 %v230, %v226
    %v271 = vpack.c.b16 %v235, %v231
    %v272 = vpack.c.b16 %v236, %v232
    %v273 = vpack.c.b16 %v237, %v233
    %v274 = vpack.c.b16 %v238, %v234
    %v275 = vpack.c.b16 %v243, %v239
    %v276 = vpack.c.b16 %v244, %v240
    %v277 = vpack.c.b16 %v245, %v241
    %v278 = vpack.c.b16 %v246, %v242
    %311 = vmatprep.subr.bf16.mxu0 %v248
    %312 = vmatpush1.bf16.msra.mxu0 %v247
    %313 = vmatprep.subr.bf16.mxu0 %v252
    %314 = vmatpush1.bf16.msra.mxu0 %v251
    %315 = vmatprep.subr.bf16.mxu0 %v256
    %316 = vmatpush1.bf16.msra.mxu0 %v255
    %317 = vmatprep.subr.bf16.mxu0 %v260
    %318 = vmatpush1.bf16.msra.mxu0 %v259
    %319 = vmatprep.subr.bf16.mxu0 %v264
    %320 = vmatpush1.bf16.msra.mxu0 %v263
    %321 = vmatprep.subr.bf16.mxu0 %v268
    %322 = vmatpush1.bf16.msra.mxu0 %v267
    %323 = vmatprep.subr.bf16.mxu0 %v272
    %324 = vmatpush1.bf16.msra.mxu0 %v271
    %325 = vmatprep.subr.bf16.mxu0 %v276
    %326 = vmatpush1.bf16.msra.mxu0 %v275
    %327 = vmatprep.subr.bf16.mxu0 0
    %328 = vmatpush1.bf16.msra.mxu0 0
    %329 = vmatprep.subr.bf16.mxu0 0
    %330 = vmatpush1.bf16.msra.mxu0 0
    %331 = vmatprep.subr.bf16.mxu0 0
    %332 = vmatpush1.bf16.msra.mxu0 0
    %333 = vmatprep.subr.bf16.mxu0 0
    %334 = vmatpush1.bf16.msra.mxu0 0
    %335 = vmatprep.subr.bf16.mxu0 0
    %336 = vmatpush1.bf16.msra.mxu0 0
    %337 = vmatprep.subr.bf16.mxu0 0
    %338 = vmatpush1.bf16.msra.mxu0 0
    %339 = vmatprep.subr.bf16.mxu0 0
    %340 = vmatpush1.bf16.msra.mxu0 0
    %341 = vmatprep.subr.bf16.mxu0 0
    %342 = vmatpush1.bf16.msra.mxu0 0
    %343 = vmatprep.mubr.bf16.mxu0 0
    %344 = vmatmul.mubr.bf16.gmra.mrb[0].mxu0 %v141
    %v345 = vpop.f32.mrb[0].mxu0
    %v346 = vadd.f32 %v106, %v345
    %v347 = vpop.f32.mrb[0].mxu0
    %v348 = vadd.f32 %v110, %v347
    %v349 = vpop.f32.mrb[0].mxu0
    %v350 = vadd.f32 %v106, %v349
    %v351 = vpop.f32.mrb[0].mxu0
    %v352 = vadd.f32 %v110, %v351
    %353 = vmatprep.mubr.bf16.mxu0 0
    %354 = vmatmul.mubr.bf16.gmra.mrb[0].mxu0 %v142
    %v355 = vpop.f32.mrb[0].mxu0
    %v356 = vadd.f32 %v106, %v355
    %v357 = vpop.f32.mrb[0].mxu0
    %v358 = vadd.f32 %v110, %v357
    %v359 = vpop.f32.mrb[0].mxu0
    %v360 = vadd.f32 %v106, %v359
    %v361 = vpop.f32.mrb[0].mxu0
    %v362 = vadd.f32 %v110, %v361
    %363 = vmatprep.mubr.bf16.mxu0 0
    %364 = vmatmul.mubr.bf16.gmra.mrb[0].mxu0 %v143
    %v365 = vpop.f32.mrb[0].mxu0
    %v366 = vadd.f32 %v106, %v365
    %v367 = vpop.f32.mrb[0].mxu0
    %v368 = vadd.f32 %v110, %v367
    %v369 = vpop.f32.mrb[0].mxu0
    %v370 = vadd.f32 %v106, %v369
    %v371 = vpop.f32.mrb[0].mxu0
    %v372 = vadd.f32 %v110, %v371
    %373 = vmatprep.mubr.bf16.mxu0 0
    %374 = vmatmul.mubr.bf16.gmra.mrb[0].mxu0 %v144
    %v375 = vpop.f32.mrb[0].mxu0
    %v376 = vadd.f32 %v106, %v375
    %v377 = vpop.f32.mrb[0].mxu0
    %v378 = vadd.f32 %v110, %v377
    %v379 = vpop.f32.mrb[0].mxu0
    %v380 = vadd.f32 %v106, %v379
    %v381 = vpop.f32.mrb[0].mxu0
    %v382 = vadd.f32 %v110, %v381
    %383 = vmatprep.mubr.bf16.mxu0 0
    %384 = vmatmul.mubr.bf16.gmra.mrb[0].mxu0 %v145
    %v385 = vpop.f32.mrb[0].mxu0
    %v386 = vadd.f32 %v106, %v385
    %v387 = vpop.f32.mrb[0].mxu0
    %v388 = vadd.f32 %v110, %v387
    %v389 = vpop.f32.mrb[0].mxu0
    %v390 = vpop.f32.mrb[0].mxu0
    %391 = vdwg.mxu0
    %392 = vmatprep.subr.bf16.mxu0 %v250
    %393 = vmatpush1.bf16.msra.mxu0 %v249
    %394 = vmatprep.subr.bf16.mxu0 %v254
    %395 = vmatpush1.bf16.msra.mxu0 %v253
    %396 = vmatprep.subr.bf16.mxu0 %v258
    %397 = vmatpush1.bf16.msra.mxu0 %v257
    %398 = vmatprep.subr.bf16.mxu0 %v262
    %399 = vmatpush1.bf16.msra.mxu0 %v261
    %400 = vmatprep.subr.bf16.mxu0 %v266
    %401 = vmatpush1.bf16.msra.mxu0 %v265
    %402 = vmatprep.subr.bf16.mxu0 %v270
    %403 = vmatpush1.bf16.msra.mxu0 %v269
    %404 = vmatprep.subr.bf16.mxu0 %v274
    %405 = vmatpush1.bf16.msra.mxu0 %v273
    %406 = vmatprep.subr.bf16.mxu0 %v278
    %407 = vmatpush1.bf16.msra.mxu0 %v277
    %408 = vmatprep.subr.bf16.mxu0 0
    %409 = vmatpush1.bf16.msra.mxu0 0
    %410 = vmatprep.subr.bf16.mxu0 0
    %411 = vmatpush1.bf16.msra.mxu0 0
    %412 = vmatprep.subr.bf16.mxu0 0
    %413 = vmatpush1.bf16.msra.mxu0 0
    %414 = vmatprep.subr.bf16.mxu0 0
    %415 = vmatpush1.bf16.msra.mxu0 0
    %416 = vmatprep.subr.bf16.mxu0 0
    %417 = vmatpush1.bf16.msra.mxu0 0
    %418 = vmatprep.subr.bf16.mxu0 0
    %419 = vmatpush1.bf16.msra.mxu0 0
    %420 = vmatprep.subr.bf16.mxu0 0
    %421 = vmatpush1.bf16.msra.mxu0 0
    %422 = vmatprep.subr.bf16.mxu0 0
    %423 = vmatpush1.bf16.msra.mxu0 0
    %424 = vmatprep.mubr.bf16.mxu0 0
    %425 = vmatmul.mubr.bf16.gmra.mrb[0].mxu0 %v141
    %v426 = vpop.f32.mrb[0].mxu0
    %v427 = vadd.f32 %v114, %v426
    %v428 = vpop.f32.mrb[0].mxu0
    %v429 = vadd.f32 %v118, %v428
    %v430 = vpop.f32.mrb[0].mxu0
    %v431 = vadd.f32 %v114, %v430
    %v432 = vpop.f32.mrb[0].mxu0
    %v433 = vadd.f32 %v118, %v432
    %434 = vmatprep.mubr.bf16.mxu0 0
    %435 = vmatmul.mubr.bf16.gmra.mrb[0].mxu0 %v142
    %v436 = vpop.f32.mrb[0].mxu0
    %v437 = vadd.f32 %v114, %v436
    %v438 = vpop.f32.mrb[0].mxu0
    %v439 = vadd.f32 %v118, %v438
    %v440 = vpop.f32.mrb[0].mxu0
    %v441 = vadd.f32 %v114, %v440
    %v442 = vpop.f32.mrb[0].mxu0
    %v443 = vadd.f32 %v118, %v442
    %444 = vmatprep.mubr.bf16.mxu0 0
    %445 = vmatmul.mubr.bf16.gmra.mrb[0].mxu0 %v143
    %v446 = vpop.f32.mrb[0].mxu0
    %v447 = vadd.f32 %v114, %v446
    %v448 = vpop.f32.mrb[0].mxu0
    %v449 = vadd.f32 %v118, %v448
    %v450 = vpop.f32.mrb[0].mxu0
    %v451 = vadd.f32 %v114, %v450
    %v452 = vpop.f32.mrb[0].mxu0
    %v453 = vadd.f32 %v118, %v452
    %454 = vmatprep.mubr.bf16.mxu0 0
    %455 = vmatmul.mubr.bf16.gmra.mrb[0].mxu0 %v144
    %v456 = vpop.f32.mrb[0].mxu0
    %v457 = vadd.f32 %v114, %v456
    %v458 = vpop.f32.mrb[0].mxu0
    %v459 = vadd.f32 %v118, %v458
    %v460 = vpop.f32.mrb[0].mxu0
    %v461 = vadd.f32 %v114, %v460
    %v462 = vpop.f32.mrb[0].mxu0
    %v463 = vadd.f32 %v118, %v462
    %464 = vmatprep.mubr.bf16.mxu0 0
    %465 = vmatmul.mubr.bf16.gmra.mrb[0].mxu0 %v145
    %v466 = vpop.f32.mrb[0].mxu0
    %v467 = vadd.f32 %v114, %v466
    %v468 = vpop.f32.mrb[0].mxu0
    %v469 = vadd.f32 %v118, %v468
    %v470 = vpop.f32.mrb[0].mxu0
    %v471 = vpop.f32.mrb[0].mxu0
    %472 = vdwg.mxu0
    %473 = vst [vmem:[#allocation2] sm:$0xff] %v346
    %474 = vst [vmem:[#allocation2 + $0x8] sm:$0xff] %v348
    %475 = vst [vmem:[#allocation2 + $0x10] sm:$0xff] %v427
    %476 = vst [vmem:[#allocation2 + $0x18] sm:$0xff] %v429
    %477 = vst [vmem:[#allocation2 + $0x20] sm:$0xff] %v350
    %478 = vst [vmem:[#allocation2 + $0x28] sm:$0xff] %v352
    %479 = vst [vmem:[#allocation2 + $0x30] sm:$0xff] %v431
    %480 = vst [vmem:[#allocation2 + $0x38] sm:$0xff] %v433
    %481 = vst [vmem:[#allocation2 + $0x40] sm:$0xff] %v356
    %482 = vst [vmem:[#allocation2 + $0x48] sm:$0xff] %v358
    %483 = vst [vmem:[#allocation2 + $0x50] sm:$0xff] %v437
    %484 = vst [vmem:[#allocation2 + $0x58] sm:$0xff] %v439
    %485 = vst [vmem:[#allocation2 + $0x60] sm:$0xff] %v360
    %486 = vst [vmem:[#allocation2 + $0x68] sm:$0xff] %v362
    %487 = vst [vmem:[#allocation2 + $0x70] sm:$0xff] %v441
    %488 = vst [vmem:[#allocation2 + $0x78] sm:$0xff] %v443
    %489 = vst [vmem:[#allocation2 + $0x80] sm:$0xff] %v366
    %490 = vst [vmem:[#allocation2 + $0x88] sm:$0xff] %v368
    %491 = vst [vmem:[#allocation2 + $0x90] sm:$0xff] %v447
    %492 = vst [vmem:[#allocation2 + $0x98] sm:$0xff] %v449
    %493 = vst [vmem:[#allocation2 + $0xa0] sm:$0xff] %v370
    %494 = vst [vmem:[#allocation2 + $0xa8] sm:$0xff] %v372
    %495 = vst [vmem:[#allocation2 + $0xb0] sm:$0xff] %v451
    %496 = vst [vmem:[#allocation2 + $0xb8] sm:$0xff] %v453
    %497 = vst [vmem:[#allocation2 + $0xc0] sm:$0xff] %v376
    %498 = vst [vmem:[#allocation2 + $0xc8] sm:$0xff] %v378
    %499 = vst [vmem:[#allocation2 + $0xd0] sm:$0xff] %v457
    %500 = vst [vmem:[#allocation2 + $0xd8] sm:$0xff] %v459
    %501 = vst [vmem:[#allocation2 + $0xe0] sm:$0xff] %v380
    %502 = vst [vmem:[#allocation2 + $0xe8] sm:$0xff] %v382
    %503 = vst [vmem:[#allocation2 + $0xf0] sm:$0xff] %v461
    %504 = vst [vmem:[#allocation2 + $0xf8] sm:$0xff] %v463
    %505 = vst [vmem:[#allocation2 + $0x100] sm:$0xff] %v386
    %506 = vst [vmem:[#allocation2 + $0x108] sm:$0xff] %v388
    %507 = vst [vmem:[#allocation2 + $0x110] sm:$0xff] %v467
    %508 = vst [vmem:[#allocation2 + $0x118] sm:$0xff] %v469
    %s509 = smul.u32 0, 4
    %s510 = smul.addr %s509, 8
    %s511 = scalar_lea.vmem [#allocation2], %s510
    %v512 = vld [vmem:[%s511] sm:$0xff]
    %v513 = vld [vmem:[%s511 + $0x8] sm:$0xff]
    %v514 = vld [vmem:[%s511 + $0x10] sm:$0xff]
    %v515 = vld [vmem:[%s511 + $0x18] sm:$0xff]
    %v516 = vld [vmem:[#allocation8] sm:$0xff]
    %v517 = vld [vmem:[#allocation8 + $0x8] sm:$0xff]
    %v518 = vld [vmem:[#allocation8 + $0x10] sm:$0xff]
    %v519 = vld [vmem:[#allocation8 + $0x18] sm:$0xff]
    %v520 = vld [vmem:[#allocation8 + $0x20] sm:$0xff]
    %v521 = vld [vmem:[#allocation8 + $0x28] sm:$0xff]
    %v522 = vld [vmem:[#allocation8 + $0x30] sm:$0xff]
    %v523 = vld [vmem:[#allocation8 + $0x38] sm:$0xff]
    %v524 = vld [vmem:[#allocation8 + $0x40] sm:$0xff]
    %v525 = vld [vmem:[#allocation8 + $0x48] sm:$0xff]
    %v526 = vld [vmem:[#allocation8 + $0x50] sm:$0xff]
    %v527 = vld [vmem:[#allocation8 + $0x58] sm:$0xff]
    %v528 = vld [vmem:[#allocation8 + $0x60] sm:$0xff]
    %v529 = vld [vmem:[#allocation8 + $0x68] sm:$0xff]
    %v530 = vld [vmem:[#allocation8 + $0x70] sm:$0xff]
    %v531 = vld [vmem:[#allocation8 + $0x78] sm:$0xff]
    %v532 = vld [vmem:[#allocation8 + $0x80] sm:$0xff]
    %v533 = vld [vmem:[#allocation8 + $0x88] sm:$0xff]
    %v534 = vld [vmem:[#allocation8 + $0x90] sm:$0xff]
    %v535 = vld [vmem:[#allocation8 + $0x98] sm:$0xff]
    %v536 = vld [vmem:[#allocation8 + $0xa0] sm:$0xff]
    %v537 = vld [vmem:[#allocation8 + $0xa8] sm:$0xff]
    %v538 = vld [vmem:[#allocation8 + $0xb0] sm:$0xff]
    %v539 = vld [vmem:[#allocation8 + $0xb8] sm:$0xff]
    %v540 = vld [vmem:[#allocation8 + $0xc0] sm:$0xff]
    %v541 = vld [vmem:[#allocation8 + $0xc8] sm:$0xff]
    %v542 = vld [vmem:[#allocation8 + $0xd0] sm:$0xff]
    %v543 = vld [vmem:[#allocation8 + $0xd8] sm:$0xff]
    %v544 = vld [vmem:[#allocation8 + $0xe0] sm:$0xff]
    %v545 = vld [vmem:[#allocation8 + $0xe8] sm:$0xff]
    %v546 = vld [vmem:[#allocation8 + $0xf0] sm:$0xff]
    %v547 = vld [vmem:[#allocation8 + $0xf8] sm:$0xff]
    %v580 = vunpack.c.l.b16 %v516
    %v581 = vunpack.c.h.b16 %v516
    %v582 = vunpack.c.l.b16 %v517
    %v583 = vunpack.c.h.b16 %v517
    %v584 = vunpack.c.l.b16 %v518
    %v585 = vunpack.c.h.b16 %v518
    %v586 = vunpack.c.l.b16 %v519
    %v587 = vunpack.c.h.b16 %v519
    %v588 = vunpack.c.l.b16 %v520
    %v589 = vunpack.c.h.b16 %v520
    %v590 = vunpack.c.l.b16 %v521
    %v591 = vunpack.c.h.b16 %v521
    %v592 = vunpack.c.l.b16 %v522
    %v593 = vunpack.c.h.b16 %v522
    %v594 = vunpack.c.l.b16 %v523
    %v595 = vunpack.c.h.b16 %v523
    %v596 = vunpack.c.l.b16 %v524
    %v597 = vunpack.c.h.b16 %v524
    %v598 = vunpack.c.l.b16 %v525
    %v599 = vunpack.c.h.b16 %v525
    %v600 = vunpack.c.l.b16 %v526
    %v601 = vunpack.c.h.b16 %v526
    %v602 = vunpack.c.l.b16 %v527
    %v603 = vunpack.c.h.b16 %v527
    %v604 = vunpack.c.l.b16 %v528
    %v605 = vunpack.c.h.b16 %v528
    %v606 = vunpack.c.l.b16 %v529
    %v607 = vunpack.c.h.b16 %v529
    %v608 = vunpack.c.l.b16 %v530
    %v609 = vunpack.c.h.b16 %v530
    %v610 = vunpack.c.l.b16 %v531
    %v611 = vunpack.c.h.b16 %v531
    %v612 = vunpack.c.l.b16 %v532
    %v613 = vunpack.c.h.b16 %v532
    %v614 = vunpack.c.l.b16 %v533
    %v615 = vunpack.c.h.b16 %v533
    %v616 = vunpack.c.l.b16 %v534
    %v617 = vunpack.c.h.b16 %v534
    %v618 = vunpack.c.l.b16 %v535
    %v619 = vunpack.c.h.b16 %v535
    %v620 = vunpack.c.l.b16 %v536
    %v621 = vunpack.c.h.b16 %v536
    %v622 = vunpack.c.l.b16 %v537
    %v623 = vunpack.c.h.b16 %v537
    %v624 = vunpack.c.l.b16 %v538
    %v625 = vunpack.c.h.b16 %v538
    %v626 = vunpack.c.l.b16 %v539
    %v627 = vunpack.c.h.b16 %v539
    %v628 = vunpack.c.l.b16 %v540
    %v629 = vunpack.c.h.b16 %v540
    %v630 = vunpack.c.l.b16 %v541
    %v631 = vunpack.c.h.b16 %v541
    %v632 = vunpack.c.l.b16 %v542
    %v633 = vunpack.c.h.b16 %v542
    %v634 = vunpack.c.l.b16 %v543
    %v635 = vunpack.c.h.b16 %v543
    %v636 = vunpack.c.l.b16 %v544
    %v637 = vunpack.c.h.b16 %v544
    %v638 = vunpack.c.l.b16 %v545
    %v639 = vunpack.c.h.b16 %v545
    %v640 = vunpack.c.l.b16 %v546
    %v641 = vunpack.c.h.b16 %v546
    %v642 = vunpack.c.l.b16 %v547
    %v643 = vunpack.c.h.b16 %v547
    %v644 = vpack.c.b16 %v584, %v580
    %v645 = vpack.c.b16 %v585, %v581
    %v646 = vpack.c.b16 %v586, %v582
    %v647 = vpack.c.b16 %v587, %v583
    %v648 = vpack.c.b16 %v592, %v588
    %v649 = vpack.c.b16 %v593, %v589
    %v650 = vpack.c.b16 %v594, %v590
    %v651 = vpack.c.b16 %v595, %v591
    %v652 = vpack.c.b16 %v600, %v596
    %v653 = vpack.c.b16 %v601, %v597
    %v654 = vpack.c.b16 %v602, %v598
    %v655 = vpack.c.b16 %v603, %v599
    %v656 = vpack.c.b16 %v608, %v604
    %v657 = vpack.c.b16 %v609, %v605
    %v658 = vpack.c.b16 %v610, %v606
    %v659 = vpack.c.b16 %v611, %v607
    %v660 = vpack.c.b16 %v616, %v612
    %v661 = vpack.c.b16 %v617, %v613
    %v662 = vpack.c.b16 %v618, %v614
    %v663 = vpack.c.b16 %v619, %v615
    %v664 = vpack.c.b16 %v624, %v620
    %v665 = vpack.c.b16 %v625, %v621
    %v666 = vpack.c.b16 %v626, %v622
    %v667 = vpack.c.b16 %v627, %v623
    %v668 = vpack.c.b16 %v632, %v628
    %v669 = vpack.c.b16 %v633, %v629
    %v670 = vpack.c.b16 %v634, %v630
    %v671 = vpack.c.b16 %v635, %v631
    %v672 = vpack.c.b16 %v640, %v636
    %v673 = vpack.c.b16 %v641, %v637
    %v674 = vpack.c.b16 %v642, %v638
    %v675 = vpack.c.b16 %v643, %v639
    %708 = vmatprep.subr.bf16.mxu0 %v645
    %709 = vmatpush1.bf16.msra.mxu0 %v644
    %710 = vmatprep.subr.bf16.mxu0 %v649
    %711 = vmatpush1.bf16.msra.mxu0 %v648
    %712 = vmatprep.subr.bf16.mxu0 %v653
    %713 = vmatpush1.bf16.msra.mxu0 %v652
    %714 = vmatprep.subr.bf16.mxu0 %v657
    %715 = vmatpush1.bf16.msra.mxu0 %v656
    %716 = vmatprep.subr.bf16.mxu0 %v661
    %717 = vmatpush1.bf16.msra.mxu0 %v660
    %718 = vmatprep.subr.bf16.mxu0 %v665
    %719 = vmatpush1.bf16.msra.mxu0 %v664
    %720 = vmatprep.subr.bf16.mxu0 %v669
    %721 = vmatpush1.bf16.msra.mxu0 %v668
    %722 = vmatprep.subr.bf16.mxu0 %v673
    %723 = vmatpush1.bf16.msra.mxu0 %v672
    %724 = vmatprep.subr.bf16.mxu0 0
    %725 = vmatpush1.bf16.msra.mxu0 0
    %726 = vmatprep.subr.bf16.mxu0 0
    %727 = vmatpush1.bf16.msra.mxu0 0
    %728 = vmatprep.subr.bf16.mxu0 0
    %729 = vmatpush1.bf16.msra.mxu0 0
    %730 = vmatprep.subr.bf16.mxu0 0
    %731 = vmatpush1.bf16.msra.mxu0 0
    %732 = vmatprep.subr.bf16.mxu0 0
    %733 = vmatpush1.bf16.msra.mxu0 0
    %734 = vmatprep.subr.bf16.mxu0 0
    %735 = vmatpush1.bf16.msra.mxu0 0
    %736 = vmatprep.subr.bf16.mxu0 0
    %737 = vmatpush1.bf16.msra.mxu0 0
    %738 = vmatprep.subr.bf16.mxu0 0
    %739 = vmatpush1.bf16.msra.mxu0 0
    %740 = vmatprep.mubr.bf16.mxu0 0
    %741 = vmatmul.mubr.bf16.gmra.mrb[0].mxu0 0
    %v742 = vpop.f32.mrb[0].mxu0
    %v743 = vadd.f32 0.0, %v742
    %v744 = vpop.f32.mrb[0].mxu0
    %v745 = vadd.f32 0.0, %v744
    %v746 = vpop.f32.mrb[0].mxu0
    %v747 = vpop.f32.mrb[0].mxu0
    %748 = vdwg.mxu0
    %749 = vmatprep.subr.bf16.mxu0 %v647
    %750 = vmatpush1.bf16.msra.mxu0 %v646
    %751 = vmatprep.subr.bf16.mxu0 %v651
    %752 = vmatpush1.bf16.msra.mxu0 %v650
    %753 = vmatprep.subr.bf16.mxu0 %v655
    %754 = vmatpush1.bf16.msra.mxu0 %v654
    %755 = vmatprep.subr.bf16.mxu0 %v659
    %756 = vmatpush1.bf16.msra.mxu0 %v658
    %757 = vmatprep.subr.bf16.mxu0 %v663
    %758 = vmatpush1.bf16.msra.mxu0 %v662
    %759 = vmatprep.subr.bf16.mxu0 %v667
    %760 = vmatpush1.bf16.msra.mxu0 %v666
    %761 = vmatprep.subr.bf16.mxu0 %v671
    %762 = vmatpush1.bf16.msra.mxu0 %v670
    %763 = vmatprep.subr.bf16.mxu0 %v675
    %764 = vmatpush1.bf16.msra.mxu0 %v674
    %765 = vmatprep.subr.bf16.mxu0 0
    %766 = vmatpush1.bf16.msra.mxu0 0
    %767 = vmatprep.subr.bf16.mxu0 0
    %768 = vmatpush1.bf16.msra.mxu0 0
    %769 = vmatprep.subr.bf16.mxu0 0
    %770 = vmatpush1.bf16.msra.mxu0 0
    %771 = vmatprep.subr.bf16.mxu0 0
    %772 = vmatpush1.bf16.msra.mxu0 0
    %773 = vmatprep.subr.bf16.mxu0 0
    %774 = vmatpush1.bf16.msra.mxu0 0
    %775 = vmatprep.subr.bf16.mxu0 0
    %776 = vmatpush1.bf16.msra.mxu0 0
    %777 = vmatprep.subr.bf16.mxu0 0
    %778 = vmatpush1.bf16.msra.mxu0 0
    %779 = vmatprep.subr.bf16.mxu0 0
    %780 = vmatpush1.bf16.msra.mxu0 0
    %781 = vmatprep.mubr.bf16.mxu0 0
    %782 = vmatmul.mubr.bf16.gmra.mrb[0].mxu0 0
    %v783 = vpop.f32.mrb[0].mxu0
    %v784 = vadd.f32 0.0, %v783
    %v785 = vpop.f32.mrb[0].mxu0
    %v786 = vadd.f32 0.0, %v785
    %v787 = vpop.f32.mrb[0].mxu0
    %v788 = vpop.f32.mrb[0].mxu0
    %789 = vdwg.mxu0
    %v790 = vadd.f32 %v512, %v743
    %v791 = vadd.f32 %v513, %v745
    %v792 = vadd.f32 %v514, %v784
    %v793 = vadd.f32 %v515, %v786
    %v794 = vxor.u32 %v790, 2147483648
    %v795 = vxor.u32 %v791, 2147483648
    %v796 = vxor.u32 %v792, 2147483648
    %v797 = vmul.f32 %v794, 1.442695
    %v798 = vpow.pop %v797
    %v799 = vmul.f32 %v795, 1.442695
    %v800 = vpow.pop %v799
    %v801 = vmul.f32 %v796, 1.442695
    %v802 = vpow.pop %v801
    %v803 = vadd.f32 %v798, 1.0
    %v804 = vadd.f32 %v800, 1.0
    %v805 = vadd.f32 %v802, 1.0
    %v806 = vrcp.pop %v803
    %v807 = vmul.f32 1.0, %v806
    %v808 = vrcp.pop %v804
    %v809 = vmul.f32 1.0, %v808
    %v810 = vrcp.pop %v805
    %v811 = vmul.f32 1.0, %v810
    %v812 = vtanh.pop %v793
    %v813 = vmul.f32 %v809, 0.0
    %v814 = vmul.f32 %v807, %v812
    %v815 = vadd.f32 %v813, %v814
    %v816 = vtanh.pop %v815
    %v817 = vmul.f32 %v811, %v816
    %818 = vst [vmem:[#allocation9] sm:$0xff] %v817
    %s819 = smul.u32 1, 4
    %s820 = smul.addr %s819, 8
    %s821 = scalar_lea.vmem [#allocation2], %s820
    %v822 = vld [vmem:[%s821] sm:$0xff]
    %v823 = vld [vmem:[%s821 + $0x8] sm:$0xff]
    %v824 = vld [vmem:[%s821 + $0x10] sm:$0xff]
    %v825 = vld [vmem:[%s821 + $0x18] sm:$0xff]
    %v826 = vpack.c.bf16 %v817, %v817
    %v827 = vld [vmem:[#allocation8] sm:$0xff]
    %v828 = vld [vmem:[#allocation8 + $0x8] sm:$0xff]
    %v829 = vld [vmem:[#allocation8 + $0x10] sm:$0xff]
    %v830 = vld [vmem:[#allocation8 + $0x18] sm:$0xff]
    %v831 = vld [vmem:[#allocation8 + $0x20] sm:$0xff]
    %v832 = vld [vmem:[#allocation8 + $0x28] sm:$0xff]
    %v833 = vld [vmem:[#allocation8 + $0x30] sm:$0xff]
    %v834 = vld [vmem:[#allocation8 + $0x38] sm:$0xff]
    %v835 = vld [vmem:[#allocation8 + $0x40] sm:$0xff]
    %v836 = vld [vmem:[#allocation8 + $0x48] sm:$0xff]
    %v837 = vld [vmem:[#allocation8 + $0x50] sm:$0xff]
    %v838 = vld [vmem:[#allocation8 + $0x58] sm:$0xff]
    %v839 = vld [vmem:[#allocation8 + $0x60] sm:$0xff]
    %v840 = vld [vmem:[#allocation8 + $0x68] sm:$0xff]
    %v841 = vld [vmem:[#allocation8 + $0x70] sm:$0xff]
    %v842 = vld [vmem:[#allocation8 + $0x78] sm:$0xff]
    %v843 = vld [vmem:[#allocation8 + $0x80] sm:$0xff]
    %v844 = vld [vmem:[#allocation8 + $0x88] sm:$0xff]
    %v845 = vld [vmem:[#allocation8 + $0x90] sm:$0xff]
    %v846 = vld [vmem:[#allocation8 + $0x98] sm:$0xff]
    %v847 = vld [vmem:[#allocation8 + $0xa0] sm:$0xff]
    %v848 = vld [vmem:[#allocation8 + $0xa8] sm:$0xff]
    %v849 = vld [vmem:[#allocation8 + $0xb0] sm:$0xff]
    %v850 = vld [vmem:[#allocation8 + $0xb8] sm:$0xff]
    %v851 = vld [vmem:[#allocation8 + $0xc0] sm:$0xff]
    %v852 = vld [vmem:[#allocation8 + $0xc8] sm:$0xff]
    %v853 = vld [vmem:[#allocation8 + $0xd0] sm:$0xff]
    %v854 = vld [vmem:[#allocation8 + $0xd8] sm:$0xff]
    %v855 = vld [vmem:[#allocation8 + $0xe0] sm:$0xff]
    %v856 = vld [vmem:[#allocation8 + $0xe8] sm:$0xff]
    %v857 = vld [vmem:[#allocation8 + $0xf0] sm:$0xff]
    %v858 = vld [vmem:[#allocation8 + $0xf8] sm:$0xff]
    %v891 = vunpack.c.l.b16 %v827
    %v892 = vunpack.c.h.b16 %v827
    %v893 = vunpack.c.l.b16 %v828
    %v894 = vunpack.c.h.b16 %v828
    %v895 = vunpack.c.l.b16 %v829
    %v896 = vunpack.c.h.b16 %v829
    %v897 = vunpack.c.l.b16 %v830
    %v898 = vunpack.c.h.b16 %v830
    %v899 = vunpack.c.l.b16 %v831
    %v900 = vunpack.c.h.b16 %v831
    %v901 = vunpack.c.l.b16 %v832
    %v902 = vunpack.c.h.b16 %v832
    %v903 = vunpack.c.l.b16 %v833
    %v904 = vunpack.c.h.b16 %v833
    %v905 = vunpack.c.l.b16 %v834
    %v906 = vunpack.c.h.b16 %v834
    %v907 = vunpack.c.l.b16 %v835
    %v908 = vunpack.c.h.b16 %v835
    %v909 = vunpack.c.l.b16 %v836
    %v910 = vunpack.c.h.b16 %v836
    %v911 = vunpack.c.l.b16 %v837
    %v912 = vunpack.c.h.b16 %v837
    %v913 = vunpack.c.l.b16 %v838
    %v914 = vunpack.c.h.b16 %v838
    %v915 = vunpack.c.l.b16 %v839
    %v916 = vunpack.c.h.b16 %v839
    %v917 = vunpack.c.l.b16 %v840
    %v918 = vunpack.c.h.b16 %v840
    %v919 = vunpack.c.l.b16 %v841
    %v920 = vunpack.c.h.b16 %v841
    %v921 = vunpack.c.l.b16 %v842
    %v922 = vunpack.c.h.b16 %v842
    %v923 = vunpack.c.l.b16 %v843
    %v924 = vunpack.c.h.b16 %v843
    %v925 = vunpack.c.l.b16 %v844
    %v926 = vunpack.c.h.b16 %v844
    %v927 = vunpack.c.l.b16 %v845
    %v928 = vunpack.c.h.b16 %v845
    %v929 = vunpack.c.l.b16 %v846
    %v930 = vunpack.c.h.b16 %v846
    %v931 = vunpack.c.l.b16 %v847
    %v932 = vunpack.c.h.b16 %v847
    %v933 = vunpack.c.l.b16 %v848
    %v934 = vunpack.c.h.b16 %v848
    %v935 = vunpack.c.l.b16 %v849
    %v936 = vunpack.c.h.b16 %v849
    %v937 = vunpack.c.l.b16 %v850
    %v938 = vunpack.c.h.b16 %v850
    %v939 = vunpack.c.l.b16 %v851
    %v940 = vunpack.c.h.b16 %v851
    %v941 = vunpack.c.l.b16 %v852
    %v942 = vunpack.c.h.b16 %v852
    %v943 = vunpack.c.l.b16 %v853
    %v944 = vunpack.c.h.b16 %v853
    %v945 = vunpack.c.l.b16 %v854
    %v946 = vunpack.c.h.b16 %v854
    %v947 = vunpack.c.l.b16 %v855
    %v948 = vunpack.c.h.b16 %v855
    %v949 = vunpack.c.l.b16 %v856
    %v950 = vunpack.c.h.b16 %v856
    %v951 = vunpack.c.l.b16 %v857
    %v952 = vunpack.c.h.b16 %v857
    %v953 = vunpack.c.l.b16 %v858
    %v954 = vunpack.c.h.b16 %v858
    %v955 = vpack.c.b16 %v895, %v891
    %v956 = vpack.c.b16 %v896, %v892
    %v957 = vpack.c.b16 %v897, %v893
    %v958 = vpack.c.b16 %v898, %v894
    %v959 = vpack.c.b16 %v903, %v899
    %v960 = vpack.c.b16 %v904, %v900
    %v961 = vpack.c.b16 %v905, %v901
    %v962 = vpack.c.b16 %v906, %v902
    %v963 = vpack.c.b16 %v911, %v907
    %v964 = vpack.c.b16 %v912, %v908
    %v965 = vpack.c.b16 %v913, %v909
    %v966 = vpack.c.b16 %v914, %v910
    %v967 = vpack.c.b16 %v919, %v915
    %v968 = vpack.c.b16 %v920, %v916
    %v969 = vpack.c.b16 %v921, %v917
    %v970 = vpack.c.b16 %v922, %v918
    %v971 = vpack.c.b16 %v927, %v923
    %v972 = vpack.c.b16 %v928, %v924
    %v973 = vpack.c.b16 %v929, %v925
    %v974 = vpack.c.b16 %v930, %v926
    %v975 = vpack.c.b16 %v935, %v931
    %v976 = vpack.c.b16 %v936, %v932
    %v977 = vpack.c.b16 %v937, %v933
    %v978 = vpack.c.b16 %v938, %v934
    %v979 = vpack.c.b16 %v943, %v939
    %v980 = vpack.c.b16 %v944, %v940
    %v981 = vpack.c.b16 %v945, %v941
    %v982 = vpack.c.b16 %v946, %v942
    %v983 = vpack.c.b16 %v951, %v947
    %v984 = vpack.c.b16 %v952, %v948
    %v985 = vpack.c.b16 %v953, %v949
    %v986 = vpack.c.b16 %v954, %v950
    %1019 = vmatprep.subr.bf16.mxu0 %v956
    %1020 = vmatpush1.bf16.msra.mxu0 %v955
    %1021 = vmatprep.subr.bf16.mxu0 %v960
    %1022 = vmatpush1.bf16.msra.mxu0 %v959
    %1023 = vmatprep.subr.bf16.mxu0 %v964
    %1024 = vmatpush1.bf16.msra.mxu0 %v963
    %1025 = vmatprep.subr.bf16.mxu0 %v968
    %1026 = vmatpush1.bf16.msra.mxu0 %v967
    %1027 = vmatprep.subr.bf16.mxu0 %v972
    %1028 = vmatpush1.bf16.msra.mxu0 %v971
    %1029 = vmatprep.subr.bf16.mxu0 %v976
    %1030 = vmatpush1.bf16.msra.mxu0 %v975
    %1031 = vmatprep.subr.bf16.mxu0 %v980
    %1032 = vmatpush1.bf16.msra.mxu0 %v979
    %1033 = vmatprep.subr.bf16.mxu0 %v984
    %1034 = vmatpush1.bf16.msra.mxu0 %v983
    %1035 = vmatprep.subr.bf16.mxu0 0
    %1036 = vmatpush1.bf16.msra.mxu0 0
    %1037 = vmatprep.subr.bf16.mxu0 0
    %1038 = vmatpush1.bf16.msra.mxu0 0
    %1039 = vmatprep.subr.bf16.mxu0 0
    %1040 = vmatpush1.bf16.msra.mxu0 0
    %1041 = vmatprep.subr.bf16.mxu0 0
    %1042 = vmatpush1.bf16.msra.mxu0 0
    %1043 = vmatprep.subr.bf16.mxu0 0
    %1044 = vmatpush1.bf16.msra.mxu0 0
    %1045 = vmatprep.subr.bf16.mxu0 0
    %1046 = vmatpush1.bf16.msra.mxu0 0
    %1047 = vmatprep.subr.bf16.mxu0 0
    %1048 = vmatpush1.bf16.msra.mxu0 0
    %1049 = vmatprep.subr.bf16.mxu0 0
    %1050 = vmatpush1.bf16.msra.mxu0 0
    %1051 = vmatprep.mubr.bf16.mxu0 0
    %1052 = vmatmul.mubr.bf16.gmra.mrb[0].mxu0 %v826
    %v1053 = vpop.f32.mrb[0].mxu0
    %v1054 = vadd.f32 0.0, %v1053
    %v1055 = vpop.f32.mrb[0].mxu0
    %v1056 = vadd.f32 0.0, %v1055
    %v1057 = vpop.f32.mrb[0].mxu0
    %v1058 = vpop.f32.mrb[0].mxu0
    %1059 = vdwg.mxu0
    %1060 = vmatprep.subr.bf16.mxu0 %v958
    %1061 = vmatpush1.bf16.msra.mxu0 %v957
    %1062 = vmatprep.subr.bf16.mxu0 %v962
    %1063 = vmatpush1.bf16.msra.mxu0 %v961
    %1064 = vmatprep.subr.bf16.mxu0 %v966
    %1065 = vmatpush1.bf16.msra.mxu0 %v965
    %1066 = vmatprep.subr.bf16.mxu0 %v970
    %1067 = vmatpush1.bf16.msra.mxu0 %v969
    %1068 = vmatprep.subr.bf16.mxu0 %v974
    %1069 = vmatpush1.bf16.msra.mxu0 %v973
    %1070 = vmatprep.subr.bf16.mxu0 %v978
    %1071 = vmatpush1.bf16.msra.mxu0 %v977
    %1072 = vmatprep.subr.bf16.mxu0 %v982
    %1073 = vmatpush1.bf16.msra.mxu0 %v981
    %1074 = vmatprep.subr.bf16.mxu0 %v986
    %1075 = vmatpush1.bf16.msra.mxu0 %v985
    %1076 = vmatprep.subr.bf16.mxu0 0
    %1077 = vmatpush1.bf16.msra.mxu0 0
    %1078 = vmatprep.subr.bf16.mxu0 0
    %1079 = vmatpush1.bf16.msra.mxu0 0
    %1080 = vmatprep.subr.bf16.mxu0 0
    %1081 = vmatpush1.bf16.msra.mxu0 0
    %1082 = vmatprep.subr.bf16.mxu0 0
    %1083 = vmatpush1.bf16.msra.mxu0 0
    %1084 = vmatprep.subr.bf16.mxu0 0
    %1085 = vmatpush1.bf16.msra.mxu0 0
    %1086 = vmatprep.subr.bf16.mxu0 0
    %1087 = vmatpush1.bf16.msra.mxu0 0
    %1088 = vmatprep.subr.bf16.mxu0 0
    %1089 = vmatpush1.bf16.msra.mxu0 0
    %1090 = vmatprep.subr.bf16.mxu0 0
    %1091 = vmatpush1.bf16.msra.mxu0 0
    %1092 = vmatprep.mubr.bf16.mxu0 0
    %1093 = vmatmul.mubr.bf16.gmra.mrb[0].mxu0 %v826
    %v1094 = vpop.f32.mrb[0].mxu0
    %v1095 = vadd.f32 0.0, %v1094
    %v1096 = vpop.f32.mrb[0].mxu0
    %v1097 = vadd.f32 0.0, %v1096
    %v1098 = vpop.f32.mrb[0].mxu0
    %v1099 = vpop.f32.mrb[0].mxu0
    %1100 = vdwg.mxu0
    %v1101 = vadd.f32 %v822, %v1054
    %v1102 = vadd.f32 %v823, %v1056
    %v1103 = vadd.f32 %v824, %v1095
    %v1104 = vadd.f32 %v825, %v1097
    %v1105 = vxor.u32 %v1101, 2147483648
    %v1106 = vxor.u32 %v1102, 2147483648
    %v1107 = vxor.u32 %v1103, 2147483648
    %v1108 = vmul.f32 %v1105, 1.442695
    %v1109 = vpow.pop %v1108
    %v1110 = vmul.f32 %v1106, 1.442695
    %v1111 = vpow.pop %v1110
    %v1112 = vmul.f32 %v1107, 1.442695
    %v1113 = vpow.pop %v1112
    %v1114 = vadd.f32 %v1109, 1.0
    %v1115 = vadd.f32 %v1111, 1.0
    %v1116 = vadd.f32 %v1113, 1.0
    %v1117 = vrcp.pop %v1114
    %v1118 = vmul.f32 1.0, %v1117
    %v1119 = vrcp.pop %v1115
    %v1120 = vmul.f32 1.0, %v1119
    %v1121 = vrcp.pop %v1116
    %v1122 = vmul.f32 1.0, %v1121
    %v1123 = vtanh.pop %v1104
    %v1124 = vmul.f32 %v1120, %v815
    %v1125 = vmul.f32 %v1118, %v1123
    %v1126 = vadd.f32 %v1124, %v1125
    %v1127 = vtanh.pop %v1126
    %v1128 = vmul.f32 %v1122, %v1127
    %s1129 = scalar_lea.vmem [#allocation9], 8
    %1130 = vst [vmem:[%s1129] sm:$0xff] %v1128
    %s1131 = smul.u32 2, 4
    %s1132 = smul.addr %s1131, 8
    %s1133 = scalar_lea.vmem [#allocation2], %s1132
    %v1134 = vld [vmem:[%s1133] sm:$0xff]
    %v1135 = vld [vmem:[%s1133 + $0x8] sm:$0xff]
    %v1136 = vld [vmem:[%s1133 + $0x10] sm:$0xff]
    %v1137 = vld [vmem:[%s1133 + $0x18] sm:$0xff]
    %v1138 = vpack.c.bf16 %v1128, %v1128
    %v1139 = vld [vmem:[#allocation8] sm:$0xff]
    %v1140 = vld [vmem:[#allocation8 + $0x8] sm:$0xff]
    %v1141 = vld [vmem:[#allocation8 + $0x10] sm:$0xff]
    %v1142 = vld [vmem:[#allocation8 + $0x18] sm:$0xff]
    %v1143 = vld [vmem:[#allocation8 + $0x20] sm:$0xff]
    %v1144 = vld [vmem:[#allocation8 + $0x28] sm:$0xff]
    %v1145 = vld [vmem:[#allocation8 + $0x30] sm:$0xff]
    %v1146 = vld [vmem:[#allocation8 + $0x38] sm:$0xff]
    %v1147 = vld [vmem:[#allocation8 + $0x40] sm:$0xff]
    %v1148 = vld [vmem:[#allocation8 + $0x48] sm:$0xff]
    %v1149 = vld [vmem:[#allocation8 + $0x50] sm:$0xff]
    %v1150 = vld [vmem:[#allocation8 + $0x58] sm:$0xff]
    %v1151 = vld [vmem:[#allocation8 + $0x60] sm:$0xff]
    %v1152 = vld [vmem:[#allocation8 + $0x68] sm:$0xff]
    %v1153 = vld [vmem:[#allocation8 + $0x70] sm:$0xff]
    %v1154 = vld [vmem:[#allocation8 + $0x78] sm:$0xff]
    %v1155 = vld [vmem:[#allocation8 + $0x80] sm:$0xff]
    %v1156 = vld [vmem:[#allocation8 + $0x88] sm:$0xff]
    %v1157 = vld [vmem:[#allocation8 + $0x90] sm:$0xff]
    %v1158 = vld [vmem:[#allocation8 + $0x98] sm:$0xff]
    %v1159 = vld [vmem:[#allocation8 + $0xa0] sm:$0xff]
    %v1160 = vld [vmem:[#allocation8 + $0xa8] sm:$0xff]
    %v1161 = vld [vmem:[#allocation8 + $0xb0] sm:$0xff]
    %v1162 = vld [vmem:[#allocation8 + $0xb8] sm:$0xff]
    %v1163 = vld [vmem:[#allocation8 + $0xc0] sm:$0xff]
    %v1164 = vld [vmem:[#allocation8 + $0xc8] sm:$0xff]
    %v1165 = vld [vmem:[#allocation8 + $0xd0] sm:$0xff]
    %v1166 = vld [vmem:[#allocation8 + $0xd8] sm:$0xff]
    %v1167 = vld [vmem:[#allocation8 + $0xe0] sm:$0xff]
    %v1168 = vld [vmem:[#allocation8 + $0xe8] sm:$0xff]
    %v1169 = vld [vmem:[#allocation8 + $0xf0] sm:$0xff]
    %v1170 = vld [vmem:[#allocation8 + $0xf8] sm:$0xff]
    %v1203 = vunpack.c.l.b16 %v1139
    %v1204 = vunpack.c.h.b16 %v1139
    %v1205 = vunpack.c.l.b16 %v1140
    %v1206 = vunpack.c.h.b16 %v1140
    %v1207 = vunpack.c.l.b16 %v1141
    %v1208 = vunpack.c.h.b16 %v1141
    %v1209 = vunpack.c.l.b16 %v1142
    %v1210 = vunpack.c.h.b16 %v1142
    %v1211 = vunpack.c.l.b16 %v1143
    %v1212 = vunpack.c.h.b16 %v1143
    %v1213 = vunpack.c.l.b16 %v1144
    %v1214 = vunpack.c.h.b16 %v1144
    %v1215 = vunpack.c.l.b16 %v1145
    %v1216 = vunpack.c.h.b16 %v1145
    %v1217 = vunpack.c.l.b16 %v1146
    %v1218 = vunpack.c.h.b16 %v1146
    %v1219 = vunpack.c.l.b16 %v1147
    %v1220 = vunpack.c.h.b16 %v1147
    %v1221 = vunpack.c.l.b16 %v1148
    %v1222 = vunpack.c.h.b16 %v1148
    %v1223 = vunpack.c.l.b16 %v1149
    %v1224 = vunpack.c.h.b16 %v1149
    %v1225 = vunpack.c.l.b16 %v1150
    %v1226 = vunpack.c.h.b16 %v1150
    %v1227 = vunpack.c.l.b16 %v1151
    %v1228 = vunpack.c.h.b16 %v1151
    %v1229 = vunpack.c.l.b16 %v1152
    %v1230 = vunpack.c.h.b16 %v1152
    %v1231 = vunpack.c.l.b16 %v1153
    %v1232 = vunpack.c.h.b16 %v1153
    %v1233 = vunpack.c.l.b16 %v1154
    %v1234 = vunpack.c.h.b16 %v1154
    %v1235 = vunpack.c.l.b16 %v1155
    %v1236 = vunpack.c.h.b16 %v1155
    %v1237 = vunpack.c.l.b16 %v1156
    %v1238 = vunpack.c.h.b16 %v1156
    %v1239 = vunpack.c.l.b16 %v1157
    %v1240 = vunpack.c.h.b16 %v1157
    %v1241 = vunpack.c.l.b16 %v1158
    %v1242 = vunpack.c.h.b16 %v1158
    %v1243 = vunpack.c.l.b16 %v1159
    %v1244 = vunpack.c.h.b16 %v1159
    %v1245 = vunpack.c.l.b16 %v1160
    %v1246 = vunpack.c.h.b16 %v1160
    %v1247 = vunpack.c.l.b16 %v1161
    %v1248 = vunpack.c.h.b16 %v1161
    %v1249 = vunpack.c.l.b16 %v1162
    %v1250 = vunpack.c.h.b16 %v1162
    %v1251 = vunpack.c.l.b16 %v1163
    %v1252 = vunpack.c.h.b16 %v1163
    %v1253 = vunpack.c.l.b16 %v1164
    %v1254 = vunpack.c.h.b16 %v1164
    %v1255 = vunpack.c.l.b16 %v1165
    %v1256 = vunpack.c.h.b16 %v1165
    %v1257 = vunpack.c.l.b16 %v1166
    %v1258 = vunpack.c.h.b16 %v1166
    %v1259 = vunpack.c.l.b16 %v1167
    %v1260 = vunpack.c.h.b16 %v1167
    %v1261 = vunpack.c.l.b16 %v1168
    %v1262 = vunpack.c.h.b16 %v1168
    %v1263 = vunpack.c.l.b16 %v1169
    %v1264 = vunpack.c.h.b16 %v1169
    %v1265 = vunpack.c.l.b16 %v1170
    %v1266 = vunpack.c.h.b16 %v1170
    %v1267 = vpack.c.b16 %v1207, %v1203
    %v1268 = vpack.c.b16 %v1208, %v1204
    %v1269 = vpack.c.b16 %v1209, %v1205
    %v1270 = vpack.c.b16 %v1210, %v1206
    %v1271 = vpack.c.b16 %v1215, %v1211
    %v1272 = vpack.c.b16 %v1216, %v1212
    %v1273 = vpack.c.b16 %v1217, %v1213
    %v1274 = vpack.c.b16 %v1218, %v1214
    %v1275 = vpack.c.b16 %v1223, %v1219
    %v1276 = vpack.c.b16 %v1224, %v1220
    %v1277 = vpack.c.b16 %v1225, %v1221
    %v1278 = vpack.c.b16 %v1226, %v1222
    %v1279 = vpack.c.b16 %v1231, %v1227
    %v1280 = vpack.c.b16 %v1232, %v1228
    %v1281 = vpack.c.b16 %v1233, %v1229
    %v1282 = vpack.c.b16 %v1234, %v1230
    %v1283 = vpack.c.b16 %v1239, %v1235
    %v1284 = vpack.c.b16 %v1240, %v1236
    %v1285 = vpack.c.b16 %v1241, %v1237
    %v1286 = vpack.c.b16 %v1242, %v1238
    %v1287 = vpack.c.b16 %v1247, %v1243
    %v1288 = vpack.c.b16 %v1248, %v1244
    %v1289 = vpack.c.b16 %v1249, %v1245
    %v1290 = vpack.c.b16 %v1250, %v1246
    %v1291 = vpack.c.b16 %v1255, %v1251
    %v1292 = vpack.c.b16 %v1256, %v1252
    %v1293 = vpack.c.b16 %v1257, %v1253
    %v1294 = vpack.c.b16 %v1258, %v1254
    %v1295 = vpack.c.b16 %v1263, %v1259
    %v1296 = vpack.c.b16 %v1264, %v1260
    %v1297 = vpack.c.b16 %v1265, %v1261
    %v1298 = vpack.c.b16 %v1266, %v1262
    %1331 = vmatprep.subr.bf16.mxu0 %v1268
    %1332 = vmatpush1.bf16.msra.mxu0 %v1267
    %1333 = vmatprep.subr.bf16.mxu0 %v1272
    %1334 = vmatpush1.bf16.msra.mxu0 %v1271
    %1335 = vmatprep.subr.bf16.mxu0 %v1276
    %1336 = vmatpush1.bf16.msra.mxu0 %v1275
    %1337 = vmatprep.subr.bf16.mxu0 %v1280
    %1338 = vmatpush1.bf16.msra.mxu0 %v1279
    %1339 = vmatprep.subr.bf16.mxu0 %v1284
    %1340 = vmatpush1.bf16.msra.mxu0 %v1283
    %1341 = vmatprep.subr.bf16.mxu0 %v1288
    %1342 = vmatpush1.bf16.msra.mxu0 %v1287
    %1343 = vmatprep.subr.bf16.mxu0 %v1292
    %1344 = vmatpush1.bf16.msra.mxu0 %v1291
    %1345 = vmatprep.subr.bf16.mxu0 %v1296
    %1346 = vmatpush1.bf16.msra.mxu0 %v1295
    %1347 = vmatprep.subr.bf16.mxu0 0
    %1348 = vmatpush1.bf16.msra.mxu0 0
    %1349 = vmatprep.subr.bf16.mxu0 0
    %1350 = vmatpush1.bf16.msra.mxu0 0
    %1351 = vmatprep.subr.bf16.mxu0 0
    %1352 = vmatpush1.bf16.msra.mxu0 0
    %1353 = vmatprep.subr.bf16.mxu0 0
    %1354 = vmatpush1.bf16.msra.mxu0 0
    %1355 = vmatprep.subr.bf16.mxu0 0
    %1356 = vmatpush1.bf16.msra.mxu0 0
    %1357 = vmatprep.subr.bf16.mxu0 0
    %1358 = vmatpush1.bf16.msra.mxu0 0
    %1359 = vmatprep.subr.bf16.mxu0 0
    %1360 = vmatpush1.bf16.msra.mxu0 0
    %1361 = vmatprep.subr.bf16.mxu0 0
    %1362 = vmatpush1.bf16.msra.mxu0 0
    %1363 = vmatprep.mubr.bf16.mxu0 0
    %1364 = vmatmul.mubr.bf16.gmra.mrb[0].mxu0 %v1138
    %v1365 = vpop.f32.mrb[0].mxu0
    %v1366 = vadd.f32 0.0, %v1365
    %v1367 = vpop.f32.mrb[0].mxu0
    %v1368 = vadd.f32 0.0, %v1367
    %v1369 = vpop.f32.mrb[0].mxu0
    %v1370 = vpop.f32.mrb[0].mxu0
    %1371 = vdwg.mxu0
    %1372 = vmatprep.subr.bf16.mxu0 %v1270
    %1373 = vmatpush1.bf16.msra.mxu0 %v1269
    %1374 = vmatprep.subr.bf16.mxu0 %v1274
    %1375 = vmatpush1.bf16.msra.mxu0 %v1273
    %1376 = vmatprep.subr.bf16.mxu0 %v1278
    %1377 = vmatpush1.bf16.msra.mxu0 %v1277
    %1378 = vmatprep.subr.bf16.mxu0 %v1282
    %1379 = vmatpush1.bf16.msra.mxu0 %v1281
    %1380 = vmatprep.subr.bf16.mxu0 %v1286
    %1381 = vmatpush1.bf16.msra.mxu0 %v1285
    %1382 = vmatprep.subr.bf16.mxu0 %v1290
    %1383 = vmatpush1.bf16.msra.mxu0 %v1289
    %1384 = vmatprep.subr.bf16.mxu0 %v1294
    %1385 = vmatpush1.bf16.msra.mxu0 %v1293
    %1386 = vmatprep.subr.bf16.mxu0 %v1298
    %1387 = vmatpush1.bf16.msra.mxu0 %v1297
    %1388 = vmatprep.subr.bf16.mxu0 0
    %1389 = vmatpush1.bf16.msra.mxu0 0
    %1390 = vmatprep.subr.bf16.mxu0 0
    %1391 = vmatpush1.bf16.msra.mxu0 0
    %1392 = vmatprep.subr.bf16.mxu0 0
    %1393 = vmatpush1.bf16.msra.mxu0 0
    %1394 = vmatprep.subr.bf16.mxu0 0
    %1395 = vmatpush1.bf16.msra.mxu0 0
    %1396 = vmatprep.subr.bf16.mxu0 0
    %1397 = vmatpush1.bf16.msra.mxu0 0
    %1398 = vmatprep.subr.bf16.mxu0 0
    %1399 = vmatpush1.bf16.msra.mxu0 0
    %1400 = vmatprep.subr.bf16.mxu0 0
    %1401 = vmatpush1.bf16.msra.mxu0 0
    %1402 = vmatprep.subr.bf16.mxu0 0
    %1403 = vmatpush1.bf16.msra.mxu0 0
    %1404 = vmatprep.mubr.bf16.mxu0 0
    %1405 = vmatmul.mubr.bf16.gmra.mrb[0].mxu0 %v1138
    %v1406 = vpop.f32.mrb[0].mxu0
    %v1407 = vadd.f32 0.0, %v1406
    %v1408 = vpop.f32.mrb[0].mxu0
    %v1409 = vadd.f32 0.0, %v1408
    %v1410 = vpop.f32.mrb[0].mxu0
    %v1411 = vpop.f32.mrb[0].mxu0
    %1412 = vdwg.mxu0
    %v1413 = vadd.f32 %v1134, %v1366
    %v1414 = vadd.f32 %v1135, %v1368
    %v1415 = vadd.f32 %v1136, %v1407
    %v1416 = vadd.f32 %v1137, %v1409
    %v1417 = vxor.u32 %v1413, 2147483648
    %v1418 = vxor.u32 %v1414, 2147483648
    %v1419 = vxor.u32 %v1415, 2147483648
    %v1420 = vmul.f32 %v1417, 1.442695
    %v1421 = vpow.pop %v1420
    %v1422 = vmul.f32 %v1418, 1.442695
    %v1423 = vpow.pop %v1422
    %v1424 = vmul.f32 %v1419, 1.442695
    %v1425 = vpow.pop %v1424
    %v1426 = vadd.f32 %v1421, 1.0
    %v1427 = vadd.f32 %v1423, 1.0
    %v1428 = vadd.f32 %v1425, 1.0
    %v1429 = vrcp.pop %v1426
    %v1430 = vmul.f32 1.0, %v1429
    %v1431 = vrcp.pop %v1427
    %v1432 = vmul.f32 1.0, %v1431
    %v1433 = vrcp.pop %v1428
    %v1434 = vmul.f32 1.0, %v1433
    %v1435 = vtanh.pop %v1416
    %v1436 = vmul.f32 %v1432, %v1126
    %v1437 = vmul.f32 %v1430, %v1435
    %v1438 = vadd.f32 %v1436, %v1437
    %v1439 = vtanh.pop %v1438
    %v1440 = vmul.f32 %v1434, %v1439
    %s1441 = scalar_lea.vmem [#allocation9], 16
    %1442 = vst [vmem:[%s1441] sm:$0xff] %v1440
    %s1443 = smul.u32 3, 4
    %s1444 = smul.addr %s1443, 8
    %s1445 = scalar_lea.vmem [#allocation2], %s1444
    %v1446 = vld [vmem:[%s1445] sm:$0xff]
    %v1447 = vld [vmem:[%s1445 + $0x8] sm:$0xff]
    %v1448 = vld [vmem:[%s1445 + $0x10] sm:$0xff]
    %v1449 = vld [vmem:[%s1445 + $0x18] sm:$0xff]
    %v1450 = vpack.c.bf16 %v1440, %v1440
    %v1451 = vld [vmem:[#allocation8] sm:$0xff]
    %v1452 = vld [vmem:[#allocation8 + $0x8] sm:$0xff]
    %v1453 = vld [vmem:[#allocation8 + $0x10] sm:$0xff]
    %v1454 = vld [vmem:[#allocation8 + $0x18] sm:$0xff]
    %v1455 = vld [vmem:[#allocation8 + $0x20] sm:$0xff]
    %v1456 = vld [vmem:[#allocation8 + $0x28] sm:$0xff]
    %v1457 = vld [vmem:[#allocation8 + $0x30] sm:$0xff]
    %v1458 = vld [vmem:[#allocation8 + $0x38] sm:$0xff]
    %v1459 = vld [vmem:[#allocation8 + $0x40] sm:$0xff]
    %v1460 = vld [vmem:[#allocation8 + $0x48] sm:$0xff]
    %v1461 = vld [vmem:[#allocation8 + $0x50] sm:$0xff]
    %v1462 = vld [vmem:[#allocation8 + $0x58] sm:$0xff]
    %v1463 = vld [vmem:[#allocation8 + $0x60] sm:$0xff]
    %v1464 = vld [vmem:[#allocation8 + $0x68] sm:$0xff]
    %v1465 = vld [vmem:[#allocation8 + $0x70] sm:$0xff]
    %v1466 = vld [vmem:[#allocation8 + $0x78] sm:$0xff]
    %v1467 = vld [vmem:[#allocation8 + $0x80] sm:$0xff]
    %v1468 = vld [vmem:[#allocation8 + $0x88] sm:$0xff]
    %v1469 = vld [vmem:[#allocation8 + $0x90] sm:$0xff]
    %v1470 = vld [vmem:[#allocation8 + $0x98] sm:$0xff]
    %v1471 = vld [vmem:[#allocation8 + $0xa0] sm:$0xff]
    %v1472 = vld [vmem:[#allocation8 + $0xa8] sm:$0xff]
    %v1473 = vld [vmem:[#allocation8 + $0xb0] sm:$0xff]
    %v1474 = vld [vmem:[#allocation8 + $0xb8] sm:$0xff]
    %v1475 = vld [vmem:[#allocation8 + $0xc0] sm:$0xff]
    %v1476 = vld [vmem:[#allocation8 + $0xc8] sm:$0xff]
    %v1477 = vld [vmem:[#allocation8 + $0xd0] sm:$0xff]
    %v1478 = vld [vmem:[#allocation8 + $0xd8] sm:$0xff]
    %v1479 = vld [vmem:[#allocation8 + $0xe0] sm:$0xff]
    %v1480 = vld [vmem:[#allocation8 + $0xe8] sm:$0xff]
    %v1481 = vld [vmem:[#allocation8 + $0xf0] sm:$0xff]
    %v1482 = vld [vmem:[#allocation8 + $0xf8] sm:$0xff]
    %v1515 = vunpack.c.l.b16 %v1451
    %v1516 = vunpack.c.h.b16 %v1451
    %v1517 = vunpack.c.l.b16 %v1452
    %v1518 = vunpack.c.h.b16 %v1452
    %v1519 = vunpack.c.l.b16 %v1453
    %v1520 = vunpack.c.h.b16 %v1453
    %v1521 = vunpack.c.l.b16 %v1454
    %v1522 = vunpack.c.h.b16 %v1454
    %v1523 = vunpack.c.l.b16 %v1455
    %v1524 = vunpack.c.h.b16 %v1455
    %v1525 = vunpack.c.l.b16 %v1456
    %v1526 = vunpack.c.h.b16 %v1456
    %v1527 = vunpack.c.l.b16 %v1457
    %v1528 = vunpack.c.h.b16 %v1457
    %v1529 = vunpack.c.l.b16 %v1458
    %v1530 = vunpack.c.h.b16 %v1458
    %v1531 = vunpack.c.l.b16 %v1459
    %v1532 = vunpack.c.h.b16 %v1459
    %v1533 = vunpack.c.l.b16 %v1460
    %v1534 = vunpack.c.h.b16 %v1460
    %v1535 = vunpack.c.l.b16 %v1461
    %v1536 = vunpack.c.h.b16 %v1461
    %v1537 = vunpack.c.l.b16 %v1462
    %v1538 = vunpack.c.h.b16 %v1462
    %v1539 = vunpack.c.l.b16 %v1463
    %v1540 = vunpack.c.h.b16 %v1463
    %v1541 = vunpack.c.l.b16 %v1464
    %v1542 = vunpack.c.h.b16 %v1464
    %v1543 = vunpack.c.l.b16 %v1465
    %v1544 = vunpack.c.h.b16 %v1465
    %v1545 = vunpack.c.l.b16 %v1466
    %v1546 = vunpack.c.h.b16 %v1466
    %v1547 = vunpack.c.l.b16 %v1467
    %v1548 = vunpack.c.h.b16 %v1467
    %v1549 = vunpack.c.l.b16 %v1468
    %v1550 = vunpack.c.h.b16 %v1468
    %v1551 = vunpack.c.l.b16 %v1469
    %v1552 = vunpack.c.h.b16 %v1469
    %v1553 = vunpack.c.l.b16 %v1470
    %v1554 = vunpack.c.h.b16 %v1470
    %v1555 = vunpack.c.l.b16 %v1471
    %v1556 = vunpack.c.h.b16 %v1471
    %v1557 = vunpack.c.l.b16 %v1472
    %v1558 = vunpack.c.h.b16 %v1472
    %v1559 = vunpack.c.l.b16 %v1473
    %v1560 = vunpack.c.h.b16 %v1473
    %v1561 = vunpack.c.l.b16 %v1474
    %v1562 = vunpack.c.h.b16 %v1474
    %v1563 = vunpack.c.l.b16 %v1475
    %v1564 = vunpack.c.h.b16 %v1475
    %v1565 = vunpack.c.l.b16 %v1476
    %v1566 = vunpack.c.h.b16 %v1476
    %v1567 = vunpack.c.l.b16 %v1477
    %v1568 = vunpack.c.h.b16 %v1477
    %v1569 = vunpack.c.l.b16 %v1478
    %v1570 = vunpack.c.h.b16 %v1478
    %v1571 = vunpack.c.l.b16 %v1479
    %v1572 = vunpack.c.h.b16 %v1479
    %v1573 = vunpack.c.l.b16 %v1480
    %v1574 = vunpack.c.h.b16 %v1480
    %v1575 = vunpack.c.l.b16 %v1481
    %v1576 = vunpack.c.h.b16 %v1481
    %v1577 = vunpack.c.l.b16 %v1482
    %v1578 = vunpack.c.h.b16 %v1482
    %v1579 = vpack.c.b16 %v1519, %v1515
    %v1580 = vpack.c.b16 %v1520, %v1516
    %v1581 = vpack.c.b16 %v1521, %v1517
    %v1582 = vpack.c.b16 %v1522, %v1518
    %v1583 = vpack.c.b16 %v1527, %v1523
    %v1584 = vpack.c.b16 %v1528, %v1524
    %v1585 = vpack.c.b16 %v1529, %v1525
    %v1586 = vpack.c.b16 %v1530, %v1526
    %v1587 = vpack.c.b16 %v1535, %v1531
    %v1588 = vpack.c.b16 %v1536, %v1532
    %v1589 = vpack.c.b16 %v1537, %v1533
    %v1590 = vpack.c.b16 %v1538, %v1534
    %v1591 = vpack.c.b16 %v1543, %v1539
    %v1592 = vpack.c.b16 %v1544, %v1540
    %v1593 = vpack.c.b16 %v1545, %v1541
    %v1594 = vpack.c.b16 %v1546, %v1542
    %v1595 = vpack.c.b16 %v1551, %v1547
    %v1596 = vpack.c.b16 %v1552, %v1548
    %v1597 = vpack.c.b16 %v1553, %v1549
    %v1598 = vpack.c.b16 %v1554, %v1550
    %v1599 = vpack.c.b16 %v1559, %v1555
    %v1600 = vpack.c.b16 %v1560, %v1556
    %v1601 = vpack.c.b16 %v1561, %v1557
    %v1602 = vpack.c.b16 %v1562, %v1558
    %v1603 = vpack.c.b16 %v1567, %v1563
    %v1604 = vpack.c.b16 %v1568, %v1564
    %v1605 = vpack.c.b16 %v1569, %v1565
    %v1606 = vpack.c.b16 %v1570, %v1566
    %v1607 = vpack.c.b16 %v1575, %v1571
    %v1608 = vpack.c.b16 %v1576, %v1572
    %v1609 = vpack.c.b16 %v1577, %v1573
    %v1610 = vpack.c.b16 %v1578, %v1574
    %1643 = vmatprep.subr.bf16.mxu0 %v1580
    %1644 = vmatpush1.bf16.msra.mxu0 %v1579
    %1645 = vmatprep.subr.bf16.mxu0 %v1584
    %1646 = vmatpush1.bf16.msra.mxu0 %v1583
    %1647 = vmatprep.subr.bf16.mxu0 %v1588
    %1648 = vmatpush1.bf16.msra.mxu0 %v1587
    %1649 = vmatprep.subr.bf16.mxu0 %v1592
    %1650 = vmatpush1.bf16.msra.mxu0 %v1591
    %1651 = vmatprep.subr.bf16.mxu0 %v1596
    %1652 = vmatpush1.bf16.msra.mxu0 %v1595
    %1653 = vmatprep.subr.bf16.mxu0 %v1600
    %1654 = vmatpush1.bf16.msra.mxu0 %v1599
    %1655 = vmatprep.subr.bf16.mxu0 %v1604
    %1656 = vmatpush1.bf16.msra.mxu0 %v1603
    %1657 = vmatprep.subr.bf16.mxu0 %v1608
    %1658 = vmatpush1.bf16.msra.mxu0 %v1607
    %1659 = vmatprep.subr.bf16.mxu0 0
    %1660 = vmatpush1.bf16.msra.mxu0 0
    %1661 = vmatprep.subr.bf16.mxu0 0
    %1662 = vmatpush1.bf16.msra.mxu0 0
    %1663 = vmatprep.subr.bf16.mxu0 0
    %1664 = vmatpush1.bf16.msra.mxu0 0
    %1665 = vmatprep.subr.bf16.mxu0 0
    %1666 = vmatpush1.bf16.msra.mxu0 0
    %1667 = vmatprep.subr.bf16.mxu0 0
    %1668 = vmatpush1.bf16.msra.mxu0 0
    %1669 = vmatprep.subr.bf16.mxu0 0
    %1670 = vmatpush1.bf16.msra.mxu0 0
    %1671 = vmatprep.subr.bf16.mxu0 0
    %1672 = vmatpush1.bf16.msra.mxu0 0
    %1673 = vmatprep.subr.bf16.mxu0 0
    %1674 = vmatpush1.bf16.msra.mxu0 0
    %1675 = vmatprep.mubr.bf16.mxu0 0
    %1676 = vmatmul.mubr.bf16.gmra.mrb[0].mxu0 %v1450
    %v1677 = vpop.f32.mrb[0].mxu0
    %v1678 = vadd.f32 0.0, %v1677
    %v1679 = vpop.f32.mrb[0].mxu0
    %v1680 = vadd.f32 0.0, %v1679
    %v1681 = vpop.f32.mrb[0].mxu0
    %v1682 = vpop.f32.mrb[0].mxu0
    %1683 = vdwg.mxu0
    %1684 = vmatprep.subr.bf16.mxu0 %v1582
    %1685 = vmatpush1.bf16.msra.mxu0 %v1581
    %1686 = vmatprep.subr.bf16.mxu0 %v1586
    %1687 = vmatpush1.bf16.msra.mxu0 %v1585
    %1688 = vmatprep.subr.bf16.mxu0 %v1590
    %1689 = vmatpush1.bf16.msra.mxu0 %v1589
    %1690 = vmatprep.subr.bf16.mxu0 %v1594
    %1691 = vmatpush1.bf16.msra.mxu0 %v1593
    %1692 = vmatprep.subr.bf16.mxu0 %v1598
    %1693 = vmatpush1.bf16.msra.mxu0 %v1597
    %1694 = vmatprep.subr.bf16.mxu0 %v1602
    %1695 = vmatpush1.bf16.msra.mxu0 %v1601
    %1696 = vmatprep.subr.bf16.mxu0 %v1606
    %1697 = vmatpush1.bf16.msra.mxu0 %v1605
    %1698 = vmatprep.subr.bf16.mxu0 %v1610
    %1699 = vmatpush1.bf16.msra.mxu0 %v1609
    %1700 = vmatprep.subr.bf16.mxu0 0
    %1701 = vmatpush1.bf16.msra.mxu0 0
    %1702 = vmatprep.subr.bf16.mxu0 0
    %1703 = vmatpush1.bf16.msra.mxu0 0
    %1704 = vmatprep.subr.bf16.mxu0 0
    %1705 = vmatpush1.bf16.msra.mxu0 0
    %1706 = vmatprep.subr.bf16.mxu0 0
    %1707 = vmatpush1.bf16.msra.mxu0 0
    %1708 = vmatprep.subr.bf16.mxu0 0
    %1709 = vmatpush1.bf16.msra.mxu0 0
    %1710 = vmatprep.subr.bf16.mxu0 0
    %1711 = vmatpush1.bf16.msra.mxu0 0
    %1712 = vmatprep.subr.bf16.mxu0 0
    %1713 = vmatpush1.bf16.msra.mxu0 0
    %1714 = vmatprep.subr.bf16.mxu0 0
    %1715 = vmatpush1.bf16.msra.mxu0 0
    %1716 = vmatprep.mubr.bf16.mxu0 0
    %1717 = vmatmul.mubr.bf16.gmra.mrb[0].mxu0 %v1450
    %v1718 = vpop.f32.mrb[0].mxu0
    %v1719 = vadd.f32 0.0, %v1718
    %v1720 = vpop.f32.mrb[0].mxu0
    %v1721 = vadd.f32 0.0, %v1720
    %v1722 = vpop.f32.mrb[0].mxu0
    %v1723 = vpop.f32.mrb[0].mxu0
    %1724 = vdwg.mxu0
    %v1725 = vadd.f32 %v1446, %v1678
    %v1726 = vadd.f32 %v1447, %v1680
    %v1727 = vadd.f32 %v1448, %v1719
    %v1728 = vadd.f32 %v1449, %v1721
    %v1729 = vxor.u32 %v1725, 2147483648
    %v1730 = vxor.u32 %v1726, 2147483648
    %v1731 = vxor.u32 %v1727, 2147483648
    %v1732 = vmul.f32 %v1729, 1.442695
    %v1733 = vpow.pop %v1732
    %v1734 = vmul.f32 %v1730, 1.442695
    %v1735 = vpow.pop %v1734
    %v1736 = vmul.f32 %v1731, 1.442695
    %v1737 = vpow.pop %v1736
    %v1738 = vadd.f32 %v1733, 1.0
    %v1739 = vadd.f32 %v1735, 1.0
    %v1740 = vadd.f32 %v1737, 1.0
    %v1741 = vrcp.pop %v1738
    %v1742 = vmul.f32 1.0, %v1741
    %v1743 = vrcp.pop %v1739
    %v1744 = vmul.f32 1.0, %v1743
    %v1745 = vrcp.pop %v1740
    %v1746 = vmul.f32 1.0, %v1745
    %v1747 = vtanh.pop %v1728
    %v1748 = vmul.f32 %v1744, %v1438
    %v1749 = vmul.f32 %v1742, %v1747
    %v1750 = vadd.f32 %v1748, %v1749
    %v1751 = vtanh.pop %v1750
    %v1752 = vmul.f32 %v1746, %v1751
    %s1753 = scalar_lea.vmem [#allocation9], 24
    %1754 = vst [vmem:[%s1753] sm:$0xff] %v1752
    %s1755 = smul.u32 4, 4
    %s1756 = smul.addr %s1755, 8
    %s1757 = scalar_lea.vmem [#allocation2], %s1756
    %v1758 = vld [vmem:[%s1757] sm:$0xff]
    %v1759 = vld [vmem:[%s1757 + $0x8] sm:$0xff]
    %v1760 = vld [vmem:[%s1757 + $0x10] sm:$0xff]
    %v1761 = vld [vmem:[%s1757 + $0x18] sm:$0xff]
    %v1762 = vpack.c.bf16 %v1752, %v1752
    %v1763 = vld [vmem:[#allocation8] sm:$0xff]
    %v1764 = vld [vmem:[#allocation8 + $0x8] sm:$0xff]
    %v1765 = vld [vmem:[#allocation8 + $0x10] sm:$0xff]
    %v1766 = vld [vmem:[#allocation8 + $0x18] sm:$0xff]
    %v1767 = vld [vmem:[#allocation8 + $0x20] sm:$0xff]
    %v1768 = vld [vmem:[#allocation8 + $0x28] sm:$0xff]
    %v1769 = vld [vmem:[#allocation8 + $0x30] sm:$0xff]
    %v1770 = vld [vmem:[#allocation8 + $0x38] sm:$0xff]
    %v1771 = vld [vmem:[#allocation8 + $0x40] sm:$0xff]
    %v1772 = vld [vmem:[#allocation8 + $0x48] sm:$0xff]
    %v1773 = vld [vmem:[#allocation8 + $0x50] sm:$0xff]
    %v1774 = vld [vmem:[#allocation8 + $0x58] sm:$0xff]
    %v1775 = vld [vmem:[#allocation8 + $0x60] sm:$0xff]
    %v1776 = vld [vmem:[#allocation8 + $0x68] sm:$0xff]
    %v1777 = vld [vmem:[#allocation8 + $0x70] sm:$0xff]
    %v1778 = vld [vmem:[#allocation8 + $0x78] sm:$0xff]
    %v1779 = vld [vmem:[#allocation8 + $0x80] sm:$0xff]
    %v1780 = vld [vmem:[#allocation8 + $0x88] sm:$0xff]
    %v1781 = vld [vmem:[#allocation8 + $0x90] sm:$0xff]
    %v1782 = vld [vmem:[#allocation8 + $0x98] sm:$0xff]
    %v1783 = vld [vmem:[#allocation8 + $0xa0] sm:$0xff]
    %v1784 = vld [vmem:[#allocation8 + $0xa8] sm:$0xff]
    %v1785 = vld [vmem:[#allocation8 + $0xb0] sm:$0xff]
    %v1786 = vld [vmem:[#allocation8 + $0xb8] sm:$0xff]
    %v1787 = vld [vmem:[#allocation8 + $0xc0] sm:$0xff]
    %v1788 = vld [vmem:[#allocation8 + $0xc8] sm:$0xff]
    %v1789 = vld [vmem:[#allocation8 + $0xd0] sm:$0xff]
    %v1790 = vld [vmem:[#allocation8 + $0xd8] sm:$0xff]
    %v1791 = vld [vmem:[#allocation8 + $0xe0] sm:$0xff]
    %v1792 = vld [vmem:[#allocation8 + $0xe8] sm:$0xff]
    %v1793 = vld [vmem:[#allocation8 + $0xf0] sm:$0xff]
    %v1794 = vld [vmem:[#allocation8 + $0xf8] sm:$0xff]
    %v1827 = vunpack.c.l.b16 %v1763
    %v1828 = vunpack.c.h.b16 %v1763
    %v1829 = vunpack.c.l.b16 %v1764
    %v1830 = vunpack.c.h.b16 %v1764
    %v1831 = vunpack.c.l.b16 %v1765
    %v1832 = vunpack.c.h.b16 %v1765
    %v1833 = vunpack.c.l.b16 %v1766
    %v1834 = vunpack.c.h.b16 %v1766
    %v1835 = vunpack.c.l.b16 %v1767
    %v1836 = vunpack.c.h.b16 %v1767
    %v1837 = vunpack.c.l.b16 %v1768
    %v1838 = vunpack.c.h.b16 %v1768
    %v1839 = vunpack.c.l.b16 %v1769
    %v1840 = vunpack.c.h.b16 %v1769
    %v1841 = vunpack.c.l.b16 %v1770
    %v1842 = vunpack.c.h.b16 %v1770
    %v1843 = vunpack.c.l.b16 %v1771
    %v1844 = vunpack.c.h.b16 %v1771
    %v1845 = vunpack.c.l.b16 %v1772
    %v1846 = vunpack.c.h.b16 %v1772
    %v1847 = vunpack.c.l.b16 %v1773
    %v1848 = vunpack.c.h.b16 %v1773
    %v1849 = vunpack.c.l.b16 %v1774
    %v1850 = vunpack.c.h.b16 %v1774
    %v1851 = vunpack.c.l.b16 %v1775
    %v1852 = vunpack.c.h.b16 %v1775
    %v1853 = vunpack.c.l.b16 %v1776
    %v1854 = vunpack.c.h.b16 %v1776
    %v1855 = vunpack.c.l.b16 %v1777
    %v1856 = vunpack.c.h.b16 %v1777
    %v1857 = vunpack.c.l.b16 %v1778
    %v1858 = vunpack.c.h.b16 %v1778
    %v1859 = vunpack.c.l.b16 %v1779
    %v1860 = vunpack.c.h.b16 %v1779
    %v1861 = vunpack.c.l.b16 %v1780
    %v1862 = vunpack.c.h.b16 %v1780
    %v1863 = vunpack.c.l.b16 %v1781
    %v1864 = vunpack.c.h.b16 %v1781
    %v1865 = vunpack.c.l.b16 %v1782
    %v1866 = vunpack.c.h.b16 %v1782
    %v1867 = vunpack.c.l.b16 %v1783
    %v1868 = vunpack.c.h.b16 %v1783
    %v1869 = vunpack.c.l.b16 %v1784
    %v1870 = vunpack.c.h.b16 %v1784
    %v1871 = vunpack.c.l.b16 %v1785
    %v1872 = vunpack.c.h.b16 %v1785
    %v1873 = vunpack.c.l.b16 %v1786
    %v1874 = vunpack.c.h.b16 %v1786
    %v1875 = vunpack.c.l.b16 %v1787
    %v1876 = vunpack.c.h.b16 %v1787
    %v1877 = vunpack.c.l.b16 %v1788
    %v1878 = vunpack.c.h.b16 %v1788
    %v1879 = vunpack.c.l.b16 %v1789
    %v1880 = vunpack.c.h.b16 %v1789
    %v1881 = vunpack.c.l.b16 %v1790
    %v1882 = vunpack.c.h.b16 %v1790
    %v1883 = vunpack.c.l.b16 %v1791
    %v1884 = vunpack.c.h.b16 %v1791
    %v1885 = vunpack.c.l.b16 %v1792
    %v1886 = vunpack.c.h.b16 %v1792
    %v1887 = vunpack.c.l.b16 %v1793
    %v1888 = vunpack.c.h.b16 %v1793
    %v1889 = vunpack.c.l.b16 %v1794
    %v1890 = vunpack.c.h.b16 %v1794
    %v1891 = vpack.c.b16 %v1831, %v1827
    %v1892 = vpack.c.b16 %v1832, %v1828
    %v1893 = vpack.c.b16 %v1833, %v1829
    %v1894 = vpack.c.b16 %v1834, %v1830
    %v1895 = vpack.c.b16 %v1839, %v1835
    %v1896 = vpack.c.b16 %v1840, %v1836
    %v1897 = vpack.c.b16 %v1841, %v1837
    %v1898 = vpack.c.b16 %v1842, %v1838
    %v1899 = vpack.c.b16 %v1847, %v1843
    %v1900 = vpack.c.b16 %v1848, %v1844
    %v1901 = vpack.c.b16 %v1849, %v1845
    %v1902 = vpack.c.b16 %v1850, %v1846
    %v1903 = vpack.c.b16 %v1855, %v1851
    %v1904 = vpack.c.b16 %v1856, %v1852
    %v1905 = vpack.c.b16 %v1857, %v1853
    %v1906 = vpack.c.b16 %v1858, %v1854
    %v1907 = vpack.c.b16 %v1863, %v1859
    %v1908 = vpack.c.b16 %v1864, %v1860
    %v1909 = vpack.c.b16 %v1865, %v1861
    %v1910 = vpack.c.b16 %v1866, %v1862
    %v1911 = vpack.c.b16 %v1871, %v1867
    %v1912 = vpack.c.b16 %v1872, %v1868
    %v1913 = vpack.c.b16 %v1873, %v1869
    %v1914 = vpack.c.b16 %v1874, %v1870
    %v1915 = vpack.c.b16 %v1879, %v1875
    %v1916 = vpack.c.b16 %v1880, %v1876
    %v1917 = vpack.c.b16 %v1881, %v1877
    %v1918 = vpack.c.b16 %v1882, %v1878
    %v1919 = vpack.c.b16 %v1887, %v1883
    %v1920 = vpack.c.b16 %v1888, %v1884
    %v1921 = vpack.c.b16 %v1889, %v1885
    %v1922 = vpack.c.b16 %v1890, %v1886
    %1955 = vmatprep.subr.bf16.mxu0 %v1892
    %1956 = vmatpush1.bf16.msra.mxu0 %v1891
    %1957 = vmatprep.subr.bf16.mxu0 %v1896
    %1958 = vmatpush1.bf16.msra.mxu0 %v1895
    %1959 = vmatprep.subr.bf16.mxu0 %v1900
    %1960 = vmatpush1.bf16.msra.mxu0 %v1899
    %1961 = vmatprep.subr.bf16.mxu0 %v1904
    %1962 = vmatpush1.bf16.msra.mxu0 %v1903
    %1963 = vmatprep.subr.bf16.mxu0 %v1908
    %1964 = vmatpush1.bf16.msra.mxu0 %v1907
    %1965 = vmatprep.subr.bf16.mxu0 %v1912
    %1966 = vmatpush1.bf16.msra.mxu0 %v1911
    %1967 = vmatprep.subr.bf16.mxu0 %v1916
    %1968 = vmatpush1.bf16.msra.mxu0 %v1915
    %1969 = vmatprep.subr.bf16.mxu0 %v1920
    %1970 = vmatpush1.bf16.msra.mxu0 %v1919
    %1971 = vmatprep.subr.bf16.mxu0 0
    %1972 = vmatpush1.bf16.msra.mxu0 0
    %1973 = vmatprep.subr.bf16.mxu0 0
    %1974 = vmatpush1.bf16.msra.mxu0 0
    %1975 = vmatprep.subr.bf16.mxu0 0
    %1976 = vmatpush1.bf16.msra.mxu0 0
    %1977 = vmatprep.subr.bf16.mxu0 0
    %1978 = vmatpush1.bf16.msra.mxu0 0
    %1979 = vmatprep.subr.bf16.mxu0 0
    %1980 = vmatpush1.bf16.msra.mxu0 0
    %1981 = vmatprep.subr.bf16.mxu0 0
    %1982 = vmatpush1.bf16.msra.mxu0 0
    %1983 = vmatprep.subr.bf16.mxu0 0
    %1984 = vmatpush1.bf16.msra.mxu0 0
    %1985 = vmatprep.subr.bf16.mxu0 0
    %1986 = vmatpush1.bf16.msra.mxu0 0
    %1987 = vmatprep.mubr.bf16.mxu0 0
    %1988 = vmatmul.mubr.bf16.gmra.mrb[0].mxu0 %v1762
    %v1989 = vpop.f32.mrb[0].mxu0
    %v1990 = vadd.f32 0.0, %v1989
    %v1991 = vpop.f32.mrb[0].mxu0
    %v1992 = vadd.f32 0.0, %v1991
    %v1993 = vpop.f32.mrb[0].mxu0
    %v1994 = vpop.f32.mrb[0].mxu0
    %1995 = vdwg.mxu0
    %1996 = vmatprep.subr.bf16.mxu0 %v1894
    %1997 = vmatpush1.bf16.msra.mxu0 %v1893
    %1998 = vmatprep.subr.bf16.mxu0 %v1898
    %1999 = vmatpush1.bf16.msra.mxu0 %v1897
    %2000 = vmatprep.subr.bf16.mxu0 %v1902
    %2001 = vmatpush1.bf16.msra.mxu0 %v1901
    %2002 = vmatprep.subr.bf16.mxu0 %v1906
    %2003 = vmatpush1.bf16.msra.mxu0 %v1905
    %2004 = vmatprep.subr.bf16.mxu0 %v1910
    %2005 = vmatpush1.bf16.msra.mxu0 %v1909
    %2006 = vmatprep.subr.bf16.mxu0 %v1914
    %2007 = vmatpush1.bf16.msra.mxu0 %v1913
    %2008 = vmatprep.subr.bf16.mxu0 %v1918
    %2009 = vmatpush1.bf16.msra.mxu0 %v1917
    %2010 = vmatprep.subr.bf16.mxu0 %v1922
    %2011 = vmatpush1.bf16.msra.mxu0 %v1921
    %2012 = vmatprep.subr.bf16.mxu0 0
    %2013 = vmatpush1.bf16.msra.mxu0 0
    %2014 = vmatprep.subr.bf16.mxu0 0
    %2015 = vmatpush1.bf16.msra.mxu0 0
    %2016 = vmatprep.subr.bf16.mxu0 0
    %2017 = vmatpush1.bf16.msra.mxu0 0
    %2018 = vmatprep.subr.bf16.mxu0 0
    %2019 = vmatpush1.bf16.msra.mxu0 0
    %2020 = vmatprep.subr.bf16.mxu0 0
    %2021 = vmatpush1.bf16.msra.mxu0 0
    %2022 = vmatprep.subr.bf16.mxu0 0
    %2023 = vmatpush1.bf16.msra.mxu0 0
    %2024 = vmatprep.subr.bf16.mxu0 0
    %2025 = vmatpush1.bf16.msra.mxu0 0
    %2026 = vmatprep.subr.bf16.mxu0 0
    %2027 = vmatpush1.bf16.msra.mxu0 0
    %2028 = vmatprep.mubr.bf16.mxu0 0
    %2029 = vmatmul.mubr.bf16.gmra.mrb[0].mxu0 %v1762
    %v2030 = vpop.f32.mrb[0].mxu0
    %v2031 = vadd.f32 0.0, %v2030
    %v2032 = vpop.f32.mrb[0].mxu0
    %v2033 = vadd.f32 0.0, %v2032
    %v2034 = vpop.f32.mrb[0].mxu0
    %v2035 = vpop.f32.mrb[0].mxu0
    %2036 = vdwg.mxu0
    %v2037 = vadd.f32 %v1758, %v1990
    %v2038 = vadd.f32 %v1759, %v1992
    %v2039 = vadd.f32 %v1760, %v2031
    %v2040 = vadd.f32 %v1761, %v2033
    %v2041 = vxor.u32 %v2037, 2147483648
    %v2042 = vxor.u32 %v2038, 2147483648
    %v2043 = vxor.u32 %v2039, 2147483648
    %v2044 = vmul.f32 %v2041, 1.442695
    %v2045 = vpow.pop %v2044
    %v2046 = vmul.f32 %v2042, 1.442695
    %v2047 = vpow.pop %v2046
    %v2048 = vmul.f32 %v2043, 1.442695
    %v2049 = vpow.pop %v2048
    %v2050 = vadd.f32 %v2045, 1.0
    %v2051 = vadd.f32 %v2047, 1.0
    %v2052 = vadd.f32 %v2049, 1.0
    %v2053 = vrcp.pop %v2050
    %v2054 = vmul.f32 1.0, %v2053
    %v2055 = vrcp.pop %v2051
    %v2056 = vmul.f32 1.0, %v2055
    %v2057 = vrcp.pop %v2052
    %v2058 = vmul.f32 1.0, %v2057
    %v2059 = vtanh.pop %v2040
    %v2060 = vmul.f32 %v2056, %v1750
    %v2061 = vmul.f32 %v2054, %v2059
    %v2062 = vadd.f32 %v2060, %v2061
    %v2063 = vtanh.pop %v2062
    %v2064 = vmul.f32 %v2058, %v2063
    %s2065 = scalar_lea.vmem [#allocation9], 32
    %2066 = vst [vmem:[%s2065] sm:$0xff] %v2064
    %s2067 = smul.u32 5, 4
    %s2068 = smul.addr %s2067, 8
    %s2069 = scalar_lea.vmem [#allocation2], %s2068
    %v2070 = vld [vmem:[%s2069] sm:$0xff]
    %v2071 = vld [vmem:[%s2069 + $0x8] sm:$0xff]
    %v2072 = vld [vmem:[%s2069 + $0x10] sm:$0xff]
    %v2073 = vld [vmem:[%s2069 + $0x18] sm:$0xff]
    %v2074 = vpack.c.bf16 %v2064, %v2064
    %v2075 = vld [vmem:[#allocation8] sm:$0xff]
    %v2076 = vld [vmem:[#allocation8 + $0x8] sm:$0xff]
    %v2077 = vld [vmem:[#allocation8 + $0x10] sm:$0xff]
    %v2078 = vld [vmem:[#allocation8 + $0x18] sm:$0xff]
    %v2079 = vld [vmem:[#allocation8 + $0x20] sm:$0xff]
    %v2080 = vld [vmem:[#allocation8 + $0x28] sm:$0xff]
    %v2081 = vld [vmem:[#allocation8 + $0x30] sm:$0xff]
    %v2082 = vld [vmem:[#allocation8 + $0x38] sm:$0xff]
    %v2083 = vld [vmem:[#allocation8 + $0x40] sm:$0xff]
    %v2084 = vld [vmem:[#allocation8 + $0x48] sm:$0xff]
    %v2085 = vld [vmem:[#allocation8 + $0x50] sm:$0xff]
    %v2086 = vld [vmem:[#allocation8 + $0x58] sm:$0xff]
    %v2087 = vld [vmem:[#allocation8 + $0x60] sm:$0xff]
    %v2088 = vld [vmem:[#allocation8 + $0x68] sm:$0xff]
    %v2089 = vld [vmem:[#allocation8 + $0x70] sm:$0xff]
    %v2090 = vld [vmem:[#allocation8 + $0x78] sm:$0xff]
    %v2091 = vld [vmem:[#allocation8 + $0x80] sm:$0xff]
    %v2092 = vld [vmem:[#allocation8 + $0x88] sm:$0xff]
    %v2093 = vld [vmem:[#allocation8 + $0x90] sm:$0xff]
    %v2094 = vld [vmem:[#allocation8 + $0x98] sm:$0xff]
    %v2095 = vld [vmem:[#allocation8 + $0xa0] sm:$0xff]
    %v2096 = vld [vmem:[#allocation8 + $0xa8] sm:$0xff]
    %v2097 = vld [vmem:[#allocation8 + $0xb0] sm:$0xff]
    %v2098 = vld [vmem:[#allocation8 + $0xb8] sm:$0xff]
    %v2099 = vld [vmem:[#allocation8 + $0xc0] sm:$0xff]
    %v2100 = vld [vmem:[#allocation8 + $0xc8] sm:$0xff]
    %v2101 = vld [vmem:[#allocation8 + $0xd0] sm:$0xff]
    %v2102 = vld [vmem:[#allocation8 + $0xd8] sm:$0xff]
    %v2103 = vld [vmem:[#allocation8 + $0xe0] sm:$0xff]
    %v2104 = vld [vmem:[#allocation8 + $0xe8] sm:$0xff]
    %v2105 = vld [vmem:[#allocation8 + $0xf0] sm:$0xff]
    %v2106 = vld [vmem:[#allocation8 + $0xf8] sm:$0xff]
    %v2139 = vunpack.c.l.b16 %v2075
    %v2140 = vunpack.c.h.b16 %v2075
    %v2141 = vunpack.c.l.b16 %v2076
    %v2142 = vunpack.c.h.b16 %v2076
    %v2143 = vunpack.c.l.b16 %v2077
    %v2144 = vunpack.c.h.b16 %v2077
    %v2145 = vunpack.c.l.b16 %v2078
    %v2146 = vunpack.c.h.b16 %v2078
    %v2147 = vunpack.c.l.b16 %v2079
    %v2148 = vunpack.c.h.b16 %v2079
    %v2149 = vunpack.c.l.b16 %v2080
    %v2150 = vunpack.c.h.b16 %v2080
    %v2151 = vunpack.c.l.b16 %v2081
    %v2152 = vunpack.c.h.b16 %v2081
    %v2153 = vunpack.c.l.b16 %v2082
    %v2154 = vunpack.c.h.b16 %v2082
    %v2155 = vunpack.c.l.b16 %v2083
    %v2156 = vunpack.c.h.b16 %v2083
    %v2157 = vunpack.c.l.b16 %v2084
    %v2158 = vunpack.c.h.b16 %v2084
    %v2159 = vunpack.c.l.b16 %v2085
    %v2160 = vunpack.c.h.b16 %v2085
    %v2161 = vunpack.c.l.b16 %v2086
    %v2162 = vunpack.c.h.b16 %v2086
    %v2163 = vunpack.c.l.b16 %v2087
    %v2164 = vunpack.c.h.b16 %v2087
    %v2165 = vunpack.c.l.b16 %v2088
    %v2166 = vunpack.c.h.b16 %v2088
    %v2167 = vunpack.c.l.b16 %v2089
    %v2168 = vunpack.c.h.b16 %v2089
    %v2169 = vunpack.c.l.b16 %v2090
    %v2170 = vunpack.c.h.b16 %v2090
    %v2171 = vunpack.c.l.b16 %v2091
    %v2172 = vunpack.c.h.b16 %v2091
    %v2173 = vunpack.c.l.b16 %v2092
    %v2174 = vunpack.c.h.b16 %v2092
    %v2175 = vunpack.c.l.b16 %v2093
    %v2176 = vunpack.c.h.b16 %v2093
    %v2177 = vunpack.c.l.b16 %v2094
    %v2178 = vunpack.c.h.b16 %v2094
    %v2179 = vunpack.c.l.b16 %v2095
    %v2180 = vunpack.c.h.b16 %v2095
    %v2181 = vunpack.c.l.b16 %v2096
    %v2182 = vunpack.c.h.b16 %v2096
    %v2183 = vunpack.c.l.b16 %v2097
    %v2184 = vunpack.c.h.b16 %v2097
    %v2185 = vunpack.c.l.b16 %v2098
    %v2186 = vunpack.c.h.b16 %v2098
    %v2187 = vunpack.c.l.b16 %v2099
    %v2188 = vunpack.c.h.b16 %v2099
    %v2189 = vunpack.c.l.b16 %v2100
    %v2190 = vunpack.c.h.b16 %v2100
    %v2191 = vunpack.c.l.b16 %v2101
    %v2192 = vunpack.c.h.b16 %v2101
    %v2193 = vunpack.c.l.b16 %v2102
    %v2194 = vunpack.c.h.b16 %v2102
    %v2195 = vunpack.c.l.b16 %v2103
    %v2196 = vunpack.c.h.b16 %v2103
    %v2197 = vunpack.c.l.b16 %v2104
    %v2198 = vunpack.c.h.b16 %v2104
    %v2199 = vunpack.c.l.b16 %v2105
    %v2200 = vunpack.c.h.b16 %v2105
    %v2201 = vunpack.c.l.b16 %v2106
    %v2202 = vunpack.c.h.b16 %v2106
    %v2203 = vpack.c.b16 %v2143, %v2139
    %v2204 = vpack.c.b16 %v2144, %v2140
    %v2205 = vpack.c.b16 %v2145, %v2141
    %v2206 = vpack.c.b16 %v2146, %v2142
    %v2207 = vpack.c.b16 %v2151, %v2147
    %v2208 = vpack.c.b16 %v2152, %v2148
    %v2209 = vpack.c.b16 %v2153, %v2149
    %v2210 = vpack.c.b16 %v2154, %v2150
    %v2211 = vpack.c.b16 %v2159, %v2155
    %v2212 = vpack.c.b16 %v2160, %v2156
    %v2213 = vpack.c.b16 %v2161, %v2157
    %v2214 = vpack.c.b16 %v2162, %v2158
    %v2215 = vpack.c.b16 %v2167, %v2163
    %v2216 = vpack.c.b16 %v2168, %v2164
    %v2217 = vpack.c.b16 %v2169, %v2165
    %v2218 = vpack.c.b16 %v2170, %v2166
    %v2219 = vpack.c.b16 %v2175, %v2171
    %v2220 = vpack.c.b16 %v2176, %v2172
    %v2221 = vpack.c.b16 %v2177, %v2173
    %v2222 = vpack.c.b16 %v2178, %v2174
    %v2223 = vpack.c.b16 %v2183, %v2179
    %v2224 = vpack.c.b16 %v2184, %v2180
    %v2225 = vpack.c.b16 %v2185, %v2181
    %v2226 = vpack.c.b16 %v2186, %v2182
    %v2227 = vpack.c.b16 %v2191, %v2187
    %v2228 = vpack.c.b16 %v2192, %v2188
    %v2229 = vpack.c.b16 %v2193, %v2189
    %v2230 = vpack.c.b16 %v2194, %v2190
    %v2231 = vpack.c.b16 %v2199, %v2195
    %v2232 = vpack.c.b16 %v2200, %v2196
    %v2233 = vpack.c.b16 %v2201, %v2197
    %v2234 = vpack.c.b16 %v2202, %v2198
    %2267 = vmatprep.subr.bf16.mxu0 %v2204
    %2268 = vmatpush1.bf16.msra.mxu0 %v2203
    %2269 = vmatprep.subr.bf16.mxu0 %v2208
    %2270 = vmatpush1.bf16.msra.mxu0 %v2207
    %2271 = vmatprep.subr.bf16.mxu0 %v2212
    %2272 = vmatpush1.bf16.msra.mxu0 %v2211
    %2273 = vmatprep.subr.bf16.mxu0 %v2216
    %2274 = vmatpush1.bf16.msra.mxu0 %v2215
    %2275 = vmatprep.subr.bf16.mxu0 %v2220
    %2276 = vmatpush1.bf16.msra.mxu0 %v2219
    %2277 = vmatprep.subr.bf16.mxu0 %v2224
    %2278 = vmatpush1.bf16.msra.mxu0 %v2223
    %2279 = vmatprep.subr.bf16.mxu0 %v2228
    %2280 = vmatpush1.bf16.msra.mxu0 %v2227
    %2281 = vmatprep.subr.bf16.mxu0 %v2232
    %2282 = vmatpush1.bf16.msra.mxu0 %v2231
    %2283 = vmatprep.subr.bf16.mxu0 0
    %2284 = vmatpush1.bf16.msra.mxu0 0
    %2285 = vmatprep.subr.bf16.mxu0 0
    %2286 = vmatpush1.bf16.msra.mxu0 0
    %2287 = vmatprep.subr.bf16.mxu0 0
    %2288 = vmatpush1.bf16.msra.mxu0 0
    %2289 = vmatprep.subr.bf16.mxu0 0
    %2290 = vmatpush1.bf16.msra.mxu0 0
    %2291 = vmatprep.subr.bf16.mxu0 0
    %2292 = vmatpush1.bf16.msra.mxu0 0
    %2293 = vmatprep.subr.bf16.mxu0 0
    %2294 = vmatpush1.bf16.msra.mxu0 0
    %2295 = vmatprep.subr.bf16.mxu0 0
    %2296 = vmatpush1.bf16.msra.mxu0 0
    %2297 = vmatprep.subr.bf16.mxu0 0
    %2298 = vmatpush1.bf16.msra.mxu0 0
    %2299 = vmatprep.mubr.bf16.mxu0 0
    %2300 = vmatmul.mubr.bf16.gmra.mrb[0].mxu0 %v2074
    %v2301 = vpop.f32.mrb[0].mxu0
    %v2302 = vadd.f32 0.0, %v2301
    %v2303 = vpop.f32.mrb[0].mxu0
    %v2304 = vadd.f32 0.0, %v2303
    %v2305 = vpop.f32.mrb[0].mxu0
    %v2306 = vpop.f32.mrb[0].mxu0
    %2307 = vdwg.mxu0
    %2308 = vmatprep.subr.bf16.mxu0 %v2206
    %2309 = vmatpush1.bf16.msra.mxu0 %v2205
    %2310 = vmatprep.subr.bf16.mxu0 %v2210
    %2311 = vmatpush1.bf16.msra.mxu0 %v2209
    %2312 = vmatprep.subr.bf16.mxu0 %v2214
    %2313 = vmatpush1.bf16.msra.mxu0 %v2213
    %2314 = vmatprep.subr.bf16.mxu0 %v2218
    %2315 = vmatpush1.bf16.msra.mxu0 %v2217
    %2316 = vmatprep.subr.bf16.mxu0 %v2222
    %2317 = vmatpush1.bf16.msra.mxu0 %v2221
    %2318 = vmatprep.subr.bf16.mxu0 %v2226
    %2319 = vmatpush1.bf16.msra.mxu0 %v2225
    %2320 = vmatprep.subr.bf16.mxu0 %v2230
    %2321 = vmatpush1.bf16.msra.mxu0 %v2229
    %2322 = vmatprep.subr.bf16.mxu0 %v2234
    %2323 = vmatpush1.bf16.msra.mxu0 %v2233
    %2324 = vmatprep.subr.bf16.mxu0 0
    %2325 = vmatpush1.bf16.msra.mxu0 0
    %2326 = vmatprep.subr.bf16.mxu0 0
    %2327 = vmatpush1.bf16.msra.mxu0 0
    %2328 = vmatprep.subr.bf16.mxu0 0
    %2329 = vmatpush1.bf16.msra.mxu0 0
    %2330 = vmatprep.subr.bf16.mxu0 0
    %2331 = vmatpush1.bf16.msra.mxu0 0
    %2332 = vmatprep.subr.bf16.mxu0 0
    %2333 = vmatpush1.bf16.msra.mxu0 0
    %2334 = vmatprep.subr.bf16.mxu0 0
    %2335 = vmatpush1.bf16.msra.mxu0 0
    %2336 = vmatprep.subr.bf16.mxu0 0
    %2337 = vmatpush1.bf16.msra.mxu0 0
    %2338 = vmatprep.subr.bf16.mxu0 0
    %2339 = vmatpush1.bf16.msra.mxu0 0
    %2340 = vmatprep.mubr.bf16.mxu0 0
    %2341 = vmatmul.mubr.bf16.gmra.mrb[0].mxu0 %v2074
    %v2342 = vpop.f32.mrb[0].mxu0
    %v2343 = vadd.f32 0.0, %v2342
    %v2344 = vpop.f32.mrb[0].mxu0
    %v2345 = vadd.f32 0.0, %v2344
    %v2346 = vpop.f32.mrb[0].mxu0
    %v2347 = vpop.f32.mrb[0].mxu0
    %2348 = vdwg.mxu0
    %v2349 = vadd.f32 %v2070, %v2302
    %v2350 = vadd.f32 %v2071, %v2304
    %v2351 = vadd.f32 %v2072, %v2343
    %v2352 = vadd.f32 %v2073, %v2345
    %v2353 = vxor.u32 %v2349, 2147483648
    %v2354 = vxor.u32 %v2350, 2147483648
    %v2355 = vxor.u32 %v2351, 2147483648
    %v2356 = vmul.f32 %v2353, 1.442695
    %v2357 = vpow.pop %v2356
    %v2358 = vmul.f32 %v2354, 1.442695
    %v2359 = vpow.pop %v2358
    %v2360 = vmul.f32 %v2355, 1.442695
    %v2361 = vpow.pop %v2360
    %v2362 = vadd.f32 %v2357, 1.0
    %v2363 = vadd.f32 %v2359, 1.0
    %v2364 = vadd.f32 %v2361, 1.0
    %v2365 = vrcp.pop %v2362
    %v2366 = vmul.f32 1.0, %v2365
    %v2367 = vrcp.pop %v2363
    %v2368 = vmul.f32 1.0, %v2367
    %v2369 = vrcp.pop %v2364
    %v2370 = vmul.f32 1.0, %v2369
    %v2371 = vtanh.pop %v2352
    %v2372 = vmul.f32 %v2368, %v2062
    %v2373 = vmul.f32 %v2366, %v2371
    %v2374 = vadd.f32 %v2372, %v2373
    %v2375 = vtanh.pop %v2374
    %v2376 = vmul.f32 %v2370, %v2375
    %s2377 = scalar_lea.vmem [#allocation9], 40
    %2378 = vst [vmem:[%s2377] sm:$0xff] %v2376
    %s2379 = smul.u32 6, 4
    %s2380 = smul.addr %s2379, 8
    %s2381 = scalar_lea.vmem [#allocation2], %s2380
    %v2382 = vld [vmem:[%s2381] sm:$0xff]
    %v2383 = vld [vmem:[%s2381 + $0x8] sm:$0xff]
    %v2384 = vld [vmem:[%s2381 + $0x10] sm:$0xff]
    %v2385 = vld [vmem:[%s2381 + $0x18] sm:$0xff]
    %v2386 = vpack.c.bf16 %v2376, %v2376
    %v2387 = vld [vmem:[#allocation8] sm:$0xff]
    %v2388 = vld [vmem:[#allocation8 + $0x8] sm:$0xff]
    %v2389 = vld [vmem:[#allocation8 + $0x10] sm:$0xff]
    %v2390 = vld [vmem:[#allocation8 + $0x18] sm:$0xff]
    %v2391 = vld [vmem:[#allocation8 + $0x20] sm:$0xff]
    %v2392 = vld [vmem:[#allocation8 + $0x28] sm:$0xff]
    %v2393 = vld [vmem:[#allocation8 + $0x30] sm:$0xff]
    %v2394 = vld [vmem:[#allocation8 + $0x38] sm:$0xff]
    %v2395 = vld [vmem:[#allocation8 + $0x40] sm:$0xff]
    %v2396 = vld [vmem:[#allocation8 + $0x48] sm:$0xff]
    %v2397 = vld [vmem:[#allocation8 + $0x50] sm:$0xff]
    %v2398 = vld [vmem:[#allocation8 + $0x58] sm:$0xff]
    %v2399 = vld [vmem:[#allocation8 + $0x60] sm:$0xff]
    %v2400 = vld [vmem:[#allocation8 + $0x68] sm:$0xff]
    %v2401 = vld [vmem:[#allocation8 + $0x70] sm:$0xff]
    %v2402 = vld [vmem:[#allocation8 + $0x78] sm:$0xff]
    %v2403 = vld [vmem:[#allocation8 + $0x80] sm:$0xff]
    %v2404 = vld [vmem:[#allocation8 + $0x88] sm:$0xff]
    %v2405 = vld [vmem:[#allocation8 + $0x90] sm:$0xff]
    %v2406 = vld [vmem:[#allocation8 + $0x98] sm:$0xff]
    %v2407 = vld [vmem:[#allocation8 + $0xa0] sm:$0xff]
    %v2408 = vld [vmem:[#allocation8 + $0xa8] sm:$0xff]
    %v2409 = vld [vmem:[#allocation8 + $0xb0] sm:$0xff]
    %v2410 = vld [vmem:[#allocation8 + $0xb8] sm:$0xff]
    %v2411 = vld [vmem:[#allocation8 + $0xc0] sm:$0xff]
    %v2412 = vld [vmem:[#allocation8 + $0xc8] sm:$0xff]
    %v2413 = vld [vmem:[#allocation8 + $0xd0] sm:$0xff]
    %v2414 = vld [vmem:[#allocation8 + $0xd8] sm:$0xff]
    %v2415 = vld [vmem:[#allocation8 + $0xe0] sm:$0xff]
    %v2416 = vld [vmem:[#allocation8 + $0xe8] sm:$0xff]
    %v2417 = vld [vmem:[#allocation8 + $0xf0] sm:$0xff]
    %v2418 = vld [vmem:[#allocation8 + $0xf8] sm:$0xff]
    %v2451 = vunpack.c.l.b16 %v2387
    %v2452 = vunpack.c.h.b16 %v2387
    %v2453 = vunpack.c.l.b16 %v2388
    %v2454 = vunpack.c.h.b16 %v2388
    %v2455 = vunpack.c.l.b16 %v2389
    %v2456 = vunpack.c.h.b16 %v2389
    %v2457 = vunpack.c.l.b16 %v2390
    %v2458 = vunpack.c.h.b16 %v2390
    %v2459 = vunpack.c.l.b16 %v2391
    %v2460 = vunpack.c.h.b16 %v2391
    %v2461 = vunpack.c.l.b16 %v2392
    %v2462 = vunpack.c.h.b16 %v2392
    %v2463 = vunpack.c.l.b16 %v2393
    %v2464 = vunpack.c.h.b16 %v2393
    %v2465 = vunpack.c.l.b16 %v2394
    %v2466 = vunpack.c.h.b16 %v2394
    %v2467 = vunpack.c.l.b16 %v2395
    %v2468 = vunpack.c.h.b16 %v2395
    %v2469 = vunpack.c.l.b16 %v2396
    %v2470 = vunpack.c.h.b16 %v2396
    %v2471 = vunpack.c.l.b16 %v2397
    %v2472 = vunpack.c.h.b16 %v2397
    %v2473 = vunpack.c.l.b16 %v2398
    %v2474 = vunpack.c.h.b16 %v2398
    %v2475 = vunpack.c.l.b16 %v2399
    %v2476 = vunpack.c.h.b16 %v2399
    %v2477 = vunpack.c.l.b16 %v2400
    %v2478 = vunpack.c.h.b16 %v2400
    %v2479 = vunpack.c.l.b16 %v2401
    %v2480 = vunpack.c.h.b16 %v2401
    %v2481 = vunpack.c.l.b16 %v2402
    %v2482 = vunpack.c.h.b16 %v2402
    %v2483 = vunpack.c.l.b16 %v2403
    %v2484 = vunpack.c.h.b16 %v2403
    %v2485 = vunpack.c.l.b16 %v2404
    %v2486 = vunpack.c.h.b16 %v2404
    %v2487 = vunpack.c.l.b16 %v2405
    %v2488 = vunpack.c.h.b16 %v2405
    %v2489 = vunpack.c.l.b16 %v2406
    %v2490 = vunpack.c.h.b16 %v2406
    %v2491 = vunpack.c.l.b16 %v2407
    %v2492 = vunpack.c.h.b16 %v2407
    %v2493 = vunpack.c.l.b16 %v2408
    %v2494 = vunpack.c.h.b16 %v2408
    %v2495 = vunpack.c.l.b16 %v2409
    %v2496 = vunpack.c.h.b16 %v2409
    %v2497 = vunpack.c.l.b16 %v2410
    %v2498 = vunpack.c.h.b16 %v2410
    %v2499 = vunpack.c.l.b16 %v2411
    %v2500 = vunpack.c.h.b16 %v2411
    %v2501 = vunpack.c.l.b16 %v2412
    %v2502 = vunpack.c.h.b16 %v2412
    %v2503 = vunpack.c.l.b16 %v2413
    %v2504 = vunpack.c.h.b16 %v2413
    %v2505 = vunpack.c.l.b16 %v2414
    %v2506 = vunpack.c.h.b16 %v2414
    %v2507 = vunpack.c.l.b16 %v2415
    %v2508 = vunpack.c.h.b16 %v2415
    %v2509 = vunpack.c.l.b16 %v2416
    %v2510 = vunpack.c.h.b16 %v2416
    %v2511 = vunpack.c.l.b16 %v2417
    %v2512 = vunpack.c.h.b16 %v2417
    %v2513 = vunpack.c.l.b16 %v2418
    %v2514 = vunpack.c.h.b16 %v2418
    %v2515 = vpack.c.b16 %v2455, %v2451
    %v2516 = vpack.c.b16 %v2456, %v2452
    %v2517 = vpack.c.b16 %v2457, %v2453
    %v2518 = vpack.c.b16 %v2458, %v2454
    %v2519 = vpack.c.b16 %v2463, %v2459
    %v2520 = vpack.c.b16 %v2464, %v2460
    %v2521 = vpack.c.b16 %v2465, %v2461
    %v2522 = vpack.c.b16 %v2466, %v2462
    %v2523 = vpack.c.b16 %v2471, %v2467
    %v2524 = vpack.c.b16 %v2472, %v2468
    %v2525 = vpack.c.b16 %v2473, %v2469
    %v2526 = vpack.c.b16 %v2474, %v2470
    %v2527 = vpack.c.b16 %v2479, %v2475
    %v2528 = vpack.c.b16 %v2480, %v2476
    %v2529 = vpack.c.b16 %v2481, %v2477
    %v2530 = vpack.c.b16 %v2482, %v2478
    %v2531 = vpack.c.b16 %v2487, %v2483
    %v2532 = vpack.c.b16 %v2488, %v2484
    %v2533 = vpack.c.b16 %v2489, %v2485
    %v2534 = vpack.c.b16 %v2490, %v2486
    %v2535 = vpack.c.b16 %v2495, %v2491
    %v2536 = vpack.c.b16 %v2496, %v2492
    %v2537 = vpack.c.b16 %v2497, %v2493
    %v2538 = vpack.c.b16 %v2498, %v2494
    %v2539 = vpack.c.b16 %v2503, %v2499
    %v2540 = vpack.c.b16 %v2504, %v2500
    %v2541 = vpack.c.b16 %v2505, %v2501
    %v2542 = vpack.c.b16 %v2506, %v2502
    %v2543 = vpack.c.b16 %v2511, %v2507
    %v2544 = vpack.c.b16 %v2512, %v2508
    %v2545 = vpack.c.b16 %v2513, %v2509
    %v2546 = vpack.c.b16 %v2514, %v2510
    %2579 = vmatprep.subr.bf16.mxu0 %v2516
    %2580 = vmatpush1.bf16.msra.mxu0 %v2515
    %2581 = vmatprep.subr.bf16.mxu0 %v2520
    %2582 = vmatpush1.bf16.msra.mxu0 %v2519
    %2583 = vmatprep.subr.bf16.mxu0 %v2524
    %2584 = vmatpush1.bf16.msra.mxu0 %v2523
    %2585 = vmatprep.subr.bf16.mxu0 %v2528
    %2586 = vmatpush1.bf16.msra.mxu0 %v2527
    %2587 = vmatprep.subr.bf16.mxu0 %v2532
    %2588 = vmatpush1.bf16.msra.mxu0 %v2531
    %2589 = vmatprep.subr.bf16.mxu0 %v2536
    %2590 = vmatpush1.bf16.msra.mxu0 %v2535
    %2591 = vmatprep.subr.bf16.mxu0 %v2540
    %2592 = vmatpush1.bf16.msra.mxu0 %v2539
    %2593 = vmatprep.subr.bf16.mxu0 %v2544
    %2594 = vmatpush1.bf16.msra.mxu0 %v2543
    %2595 = vmatprep.subr.bf16.mxu0 0
    %2596 = vmatpush1.bf16.msra.mxu0 0
    %2597 = vmatprep.subr.bf16.mxu0 0
    %2598 = vmatpush1.bf16.msra.mxu0 0
    %2599 = vmatprep.subr.bf16.mxu0 0
    %2600 = vmatpush1.bf16.msra.mxu0 0
    %2601 = vmatprep.subr.bf16.mxu0 0
    %2602 = vmatpush1.bf16.msra.mxu0 0
    %2603 = vmatprep.subr.bf16.mxu0 0
    %2604 = vmatpush1.bf16.msra.mxu0 0
    %2605 = vmatprep.subr.bf16.mxu0 0
    %2606 = vmatpush1.bf16.msra.mxu0 0
    %2607 = vmatprep.subr.bf16.mxu0 0
    %2608 = vmatpush1.bf16.msra.mxu0 0
    %2609 = vmatprep.subr.bf16.mxu0 0
    %2610 = vmatpush1.bf16.msra.mxu0 0
    %2611 = vmatprep.mubr.bf16.mxu0 0
    %2612 = vmatmul.mubr.bf16.gmra.mrb[0].mxu0 %v2386
    %v2613 = vpop.f32.mrb[0].mxu0
    %v2614 = vadd.f32 0.0, %v2613
    %v2615 = vpop.f32.mrb[0].mxu0
    %v2616 = vadd.f32 0.0, %v2615
    %v2617 = vpop.f32.mrb[0].mxu0
    %v2618 = vpop.f32.mrb[0].mxu0
    %2619 = vdwg.mxu0
    %2620 = vmatprep.subr.bf16.mxu0 %v2518
    %2621 = vmatpush1.bf16.msra.mxu0 %v2517
    %2622 = vmatprep.subr.bf16.mxu0 %v2522
    %2623 = vmatpush1.bf16.msra.mxu0 %v2521
    %2624 = vmatprep.subr.bf16.mxu0 %v2526
    %2625 = vmatpush1.bf16.msra.mxu0 %v2525
    %2626 = vmatprep.subr.bf16.mxu0 %v2530
    %2627 = vmatpush1.bf16.msra.mxu0 %v2529
    %2628 = vmatprep.subr.bf16.mxu0 %v2534
    %2629 = vmatpush1.bf16.msra.mxu0 %v2533
    %2630 = vmatprep.subr.bf16.mxu0 %v2538
    %2631 = vmatpush1.bf16.msra.mxu0 %v2537
    %2632 = vmatprep.subr.bf16.mxu0 %v2542
    %2633 = vmatpush1.bf16.msra.mxu0 %v2541
    %2634 = vmatprep.subr.bf16.mxu0 %v2546
    %2635 = vmatpush1.bf16.msra.mxu0 %v2545
    %2636 = vmatprep.subr.bf16.mxu0 0
    %2637 = vmatpush1.bf16.msra.mxu0 0
    %2638 = vmatprep.subr.bf16.mxu0 0
    %2639 = vmatpush1.bf16.msra.mxu0 0
    %2640 = vmatprep.subr.bf16.mxu0 0
    %2641 = vmatpush1.bf16.msra.mxu0 0
    %2642 = vmatprep.subr.bf16.mxu0 0
    %2643 = vmatpush1.bf16.msra.mxu0 0
    %2644 = vmatprep.subr.bf16.mxu0 0
    %2645 = vmatpush1.bf16.msra.mxu0 0
    %2646 = vmatprep.subr.bf16.mxu0 0
    %2647 = vmatpush1.bf16.msra.mxu0 0
    %2648 = vmatprep.subr.bf16.mxu0 0
    %2649 = vmatpush1.bf16.msra.mxu0 0
    %2650 = vmatprep.subr.bf16.mxu0 0
    %2651 = vmatpush1.bf16.msra.mxu0 0
    %2652 = vmatprep.mubr.bf16.mxu0 0
    %2653 = vmatmul.mubr.bf16.gmra.mrb[0].mxu0 %v2386
    %v2654 = vpop.f32.mrb[0].mxu0
    %v2655 = vadd.f32 0.0, %v2654
    %v2656 = vpop.f32.mrb[0].mxu0
    %v2657 = vadd.f32 0.0, %v2656
    %v2658 = vpop.f32.mrb[0].mxu0
    %v2659 = vpop.f32.mrb[0].mxu0
    %2660 = vdwg.mxu0
    %v2661 = vadd.f32 %v2382, %v2614
    %v2662 = vadd.f32 %v2383, %v2616
    %v2663 = vadd.f32 %v2384, %v2655
    %v2664 = vadd.f32 %v2385, %v2657
    %v2665 = vxor.u32 %v2661, 2147483648
    %v2666 = vxor.u32 %v2662, 2147483648
    %v2667 = vxor.u32 %v2663, 2147483648
    %v2668 = vmul.f32 %v2665, 1.442695
    %v2669 = vpow.pop %v2668
    %v2670 = vmul.f32 %v2666, 1.442695
    %v2671 = vpow.pop %v2670
    %v2672 = vmul.f32 %v2667, 1.442695
    %v2673 = vpow.pop %v2672
    %v2674 = vadd.f32 %v2669, 1.0
    %v2675 = vadd.f32 %v2671, 1.0
    %v2676 = vadd.f32 %v2673, 1.0
    %v2677 = vrcp.pop %v2674
    %v2678 = vmul.f32 1.0, %v2677
    %v2679 = vrcp.pop %v2675
    %v2680 = vmul.f32 1.0, %v2679
    %v2681 = vrcp.pop %v2676
    %v2682 = vmul.f32 1.0, %v2681
    %v2683 = vtanh.pop %v2664
    %v2684 = vmul.f32 %v2680, %v2374
    %v2685 = vmul.f32 %v2678, %v2683
    %v2686 = vadd.f32 %v2684, %v2685
    %v2687 = vtanh.pop %v2686
    %v2688 = vmul.f32 %v2682, %v2687
    %s2689 = scalar_lea.vmem [#allocation9], 48
    %2690 = vst [vmem:[%s2689] sm:$0xff] %v2688
    %s2691 = smul.u32 7, 4
    %s2692 = smul.addr %s2691, 8
    %s2693 = scalar_lea.vmem [#allocation2], %s2692
    %v2694 = vld [vmem:[%s2693] sm:$0xff]
    %v2695 = vld [vmem:[%s2693 + $0x8] sm:$0xff]
    %v2696 = vld [vmem:[%s2693 + $0x10] sm:$0xff]
    %v2697 = vld [vmem:[%s2693 + $0x18] sm:$0xff]
    %v2698 = vpack.c.bf16 %v2688, %v2688
    %v2699 = vld [vmem:[#allocation8] sm:$0xff]
    %v2700 = vld [vmem:[#allocation8 + $0x8] sm:$0xff]
    %v2701 = vld [vmem:[#allocation8 + $0x10] sm:$0xff]
    %v2702 = vld [vmem:[#allocation8 + $0x18] sm:$0xff]
    %v2703 = vld [vmem:[#allocation8 + $0x20] sm:$0xff]
    %v2704 = vld [vmem:[#allocation8 + $0x28] sm:$0xff]
    %v2705 = vld [vmem:[#allocation8 + $0x30] sm:$0xff]
    %v2706 = vld [vmem:[#allocation8 + $0x38] sm:$0xff]
    %v2707 = vld [vmem:[#allocation8 + $0x40] sm:$0xff]
    %v2708 = vld [vmem:[#allocation8 + $0x48] sm:$0xff]
    %v2709 = vld [vmem:[#allocation8 + $0x50] sm:$0xff]
    %v2710 = vld [vmem:[#allocation8 + $0x58] sm:$0xff]
    %v2711 = vld [vmem:[#allocation8 + $0x60] sm:$0xff]
    %v2712 = vld [vmem:[#allocation8 + $0x68] sm:$0xff]
    %v2713 = vld [vmem:[#allocation8 + $0x70] sm:$0xff]
    %v2714 = vld [vmem:[#allocation8 + $0x78] sm:$0xff]
    %v2715 = vld [vmem:[#allocation8 + $0x80] sm:$0xff]
    %v2716 = vld [vmem:[#allocation8 + $0x88] sm:$0xff]
    %v2717 = vld [vmem:[#allocation8 + $0x90] sm:$0xff]
    %v2718 = vld [vmem:[#allocation8 + $0x98] sm:$0xff]
    %v2719 = vld [vmem:[#allocation8 + $0xa0] sm:$0xff]
    %v2720 = vld [vmem:[#allocation8 + $0xa8] sm:$0xff]
    %v2721 = vld [vmem:[#allocation8 + $0xb0] sm:$0xff]
    %v2722 = vld [vmem:[#allocation8 + $0xb8] sm:$0xff]
    %v2723 = vld [vmem:[#allocation8 + $0xc0] sm:$0xff]
    %v2724 = vld [vmem:[#allocation8 + $0xc8] sm:$0xff]
    %v2725 = vld [vmem:[#allocation8 + $0xd0] sm:$0xff]
    %v2726 = vld [vmem:[#allocation8 + $0xd8] sm:$0xff]
    %v2727 = vld [vmem:[#allocation8 + $0xe0] sm:$0xff]
    %v2728 = vld [vmem:[#allocation8 + $0xe8] sm:$0xff]
    %v2729 = vld [vmem:[#allocation8 + $0xf0] sm:$0xff]
    %v2730 = vld [vmem:[#allocation8 + $0xf8] sm:$0xff]
    %v2763 = vunpack.c.l.b16 %v2699
    %v2764 = vunpack.c.h.b16 %v2699
    %v2765 = vunpack.c.l.b16 %v2700
    %v2766 = vunpack.c.h.b16 %v2700
    %v2767 = vunpack.c.l.b16 %v2701
    %v2768 = vunpack.c.h.b16 %v2701
    %v2769 = vunpack.c.l.b16 %v2702
    %v2770 = vunpack.c.h.b16 %v2702
    %v2771 = vunpack.c.l.b16 %v2703
    %v2772 = vunpack.c.h.b16 %v2703
    %v2773 = vunpack.c.l.b16 %v2704
    %v2774 = vunpack.c.h.b16 %v2704
    %v2775 = vunpack.c.l.b16 %v2705
    %v2776 = vunpack.c.h.b16 %v2705
    %v2777 = vunpack.c.l.b16 %v2706
    %v2778 = vunpack.c.h.b16 %v2706
    %v2779 = vunpack.c.l.b16 %v2707
    %v2780 = vunpack.c.h.b16 %v2707
    %v2781 = vunpack.c.l.b16 %v2708
    %v2782 = vunpack.c.h.b16 %v2708
    %v2783 = vunpack.c.l.b16 %v2709
    %v2784 = vunpack.c.h.b16 %v2709
    %v2785 = vunpack.c.l.b16 %v2710
    %v2786 = vunpack.c.h.b16 %v2710
    %v2787 = vunpack.c.l.b16 %v2711
    %v2788 = vunpack.c.h.b16 %v2711
    %v2789 = vunpack.c.l.b16 %v2712
    %v2790 = vunpack.c.h.b16 %v2712
    %v2791 = vunpack.c.l.b16 %v2713
    %v2792 = vunpack.c.h.b16 %v2713
    %v2793 = vunpack.c.l.b16 %v2714
    %v2794 = vunpack.c.h.b16 %v2714
    %v2795 = vunpack.c.l.b16 %v2715
    %v2796 = vunpack.c.h.b16 %v2715
    %v2797 = vunpack.c.l.b16 %v2716
    %v2798 = vunpack.c.h.b16 %v2716
    %v2799 = vunpack.c.l.b16 %v2717
    %v2800 = vunpack.c.h.b16 %v2717
    %v2801 = vunpack.c.l.b16 %v2718
    %v2802 = vunpack.c.h.b16 %v2718
    %v2803 = vunpack.c.l.b16 %v2719
    %v2804 = vunpack.c.h.b16 %v2719
    %v2805 = vunpack.c.l.b16 %v2720
    %v2806 = vunpack.c.h.b16 %v2720
    %v2807 = vunpack.c.l.b16 %v2721
    %v2808 = vunpack.c.h.b16 %v2721
    %v2809 = vunpack.c.l.b16 %v2722
    %v2810 = vunpack.c.h.b16 %v2722
    %v2811 = vunpack.c.l.b16 %v2723
    %v2812 = vunpack.c.h.b16 %v2723
    %v2813 = vunpack.c.l.b16 %v2724
    %v2814 = vunpack.c.h.b16 %v2724
    %v2815 = vunpack.c.l.b16 %v2725
    %v2816 = vunpack.c.h.b16 %v2725
    %v2817 = vunpack.c.l.b16 %v2726
    %v2818 = vunpack.c.h.b16 %v2726
    %v2819 = vunpack.c.l.b16 %v2727
    %v2820 = vunpack.c.h.b16 %v2727
    %v2821 = vunpack.c.l.b16 %v2728
    %v2822 = vunpack.c.h.b16 %v2728
    %v2823 = vunpack.c.l.b16 %v2729
    %v2824 = vunpack.c.h.b16 %v2729
    %v2825 = vunpack.c.l.b16 %v2730
    %v2826 = vunpack.c.h.b16 %v2730
    %v2827 = vpack.c.b16 %v2767, %v2763
    %v2828 = vpack.c.b16 %v2768, %v2764
    %v2829 = vpack.c.b16 %v2769, %v2765
    %v2830 = vpack.c.b16 %v2770, %v2766
    %v2831 = vpack.c.b16 %v2775, %v2771
    %v2832 = vpack.c.b16 %v2776, %v2772
    %v2833 = vpack.c.b16 %v2777, %v2773
    %v2834 = vpack.c.b16 %v2778, %v2774
    %v2835 = vpack.c.b16 %v2783, %v2779
    %v2836 = vpack.c.b16 %v2784, %v2780
    %v2837 = vpack.c.b16 %v2785, %v2781
    %v2838 = vpack.c.b16 %v2786, %v2782
    %v2839 = vpack.c.b16 %v2791, %v2787
    %v2840 = vpack.c.b16 %v2792, %v2788
    %v2841 = vpack.c.b16 %v2793, %v2789
    %v2842 = vpack.c.b16 %v2794, %v2790
    %v2843 = vpack.c.b16 %v2799, %v2795
    %v2844 = vpack.c.b16 %v2800, %v2796
    %v2845 = vpack.c.b16 %v2801, %v2797
    %v2846 = vpack.c.b16 %v2802, %v2798
    %v2847 = vpack.c.b16 %v2807, %v2803
    %v2848 = vpack.c.b16 %v2808, %v2804
    %v2849 = vpack.c.b16 %v2809, %v2805
    %v2850 = vpack.c.b16 %v2810, %v2806
    %v2851 = vpack.c.b16 %v2815, %v2811
    %v2852 = vpack.c.b16 %v2816, %v2812
    %v2853 = vpack.c.b16 %v2817, %v2813
    %v2854 = vpack.c.b16 %v2818, %v2814
    %v2855 = vpack.c.b16 %v2823, %v2819
    %v2856 = vpack.c.b16 %v2824, %v2820
    %v2857 = vpack.c.b16 %v2825, %v2821
    %v2858 = vpack.c.b16 %v2826, %v2822
    %2891 = vmatprep.subr.bf16.mxu0 %v2828
    %2892 = vmatpush1.bf16.msra.mxu0 %v2827
    %2893 = vmatprep.subr.bf16.mxu0 %v2832
    %2894 = vmatpush1.bf16.msra.mxu0 %v2831
    %2895 = vmatprep.subr.bf16.mxu0 %v2836
    %2896 = vmatpush1.bf16.msra.mxu0 %v2835
    %2897 = vmatprep.subr.bf16.mxu0 %v2840
    %2898 = vmatpush1.bf16.msra.mxu0 %v2839
    %2899 = vmatprep.subr.bf16.mxu0 %v2844
    %2900 = vmatpush1.bf16.msra.mxu0 %v2843
    %2901 = vmatprep.subr.bf16.mxu0 %v2848
    %2902 = vmatpush1.bf16.msra.mxu0 %v2847
    %2903 = vmatprep.subr.bf16.mxu0 %v2852
    %2904 = vmatpush1.bf16.msra.mxu0 %v2851
    %2905 = vmatprep.subr.bf16.mxu0 %v2856
    %2906 = vmatpush1.bf16.msra.mxu0 %v2855
    %2907 = vmatprep.subr.bf16.mxu0 0
    %2908 = vmatpush1.bf16.msra.mxu0 0
    %2909 = vmatprep.subr.bf16.mxu0 0
    %2910 = vmatpush1.bf16.msra.mxu0 0
    %2911 = vmatprep.subr.bf16.mxu0 0
    %2912 = vmatpush1.bf16.msra.mxu0 0
    %2913 = vmatprep.subr.bf16.mxu0 0
    %2914 = vmatpush1.bf16.msra.mxu0 0
    %2915 = vmatprep.subr.bf16.mxu0 0
    %2916 = vmatpush1.bf16.msra.mxu0 0
    %2917 = vmatprep.subr.bf16.mxu0 0
    %2918 = vmatpush1.bf16.msra.mxu0 0
    %2919 = vmatprep.subr.bf16.mxu0 0
    %2920 = vmatpush1.bf16.msra.mxu0 0
    %2921 = vmatprep.subr.bf16.mxu0 0
    %2922 = vmatpush1.bf16.msra.mxu0 0
    %2923 = vmatprep.mubr.bf16.mxu0 0
    %2924 = vmatmul.mubr.bf16.gmra.mrb[0].mxu0 %v2698
    %v2925 = vpop.f32.mrb[0].mxu0
    %v2926 = vadd.f32 0.0, %v2925
    %v2927 = vpop.f32.mrb[0].mxu0
    %v2928 = vadd.f32 0.0, %v2927
    %v2929 = vpop.f32.mrb[0].mxu0
    %v2930 = vpop.f32.mrb[0].mxu0
    %2931 = vdwg.mxu0
    %2932 = vmatprep.subr.bf16.mxu0 %v2830
    %2933 = vmatpush1.bf16.msra.mxu0 %v2829
    %2934 = vmatprep.subr.bf16.mxu0 %v2834
    %2935 = vmatpush1.bf16.msra.mxu0 %v2833
    %2936 = vmatprep.subr.bf16.mxu0 %v2838
    %2937 = vmatpush1.bf16.msra.mxu0 %v2837
    %2938 = vmatprep.subr.bf16.mxu0 %v2842
    %2939 = vmatpush1.bf16.msra.mxu0 %v2841
    %2940 = vmatprep.subr.bf16.mxu0 %v2846
    %2941 = vmatpush1.bf16.msra.mxu0 %v2845
    %2942 = vmatprep.subr.bf16.mxu0 %v2850
    %2943 = vmatpush1.bf16.msra.mxu0 %v2849
    %2944 = vmatprep.subr.bf16.mxu0 %v2854
    %2945 = vmatpush1.bf16.msra.mxu0 %v2853
    %2946 = vmatprep.subr.bf16.mxu0 %v2858
    %2947 = vmatpush1.bf16.msra.mxu0 %v2857
    %2948 = vmatprep.subr.bf16.mxu0 0
    %2949 = vmatpush1.bf16.msra.mxu0 0
    %2950 = vmatprep.subr.bf16.mxu0 0
    %2951 = vmatpush1.bf16.msra.mxu0 0
    %2952 = vmatprep.subr.bf16.mxu0 0
    %2953 = vmatpush1.bf16.msra.mxu0 0
    %2954 = vmatprep.subr.bf16.mxu0 0
    %2955 = vmatpush1.bf16.msra.mxu0 0
    %2956 = vmatprep.subr.bf16.mxu0 0
    %2957 = vmatpush1.bf16.msra.mxu0 0
    %2958 = vmatprep.subr.bf16.mxu0 0
    %2959 = vmatpush1.bf16.msra.mxu0 0
    %2960 = vmatprep.subr.bf16.mxu0 0
    %2961 = vmatpush1.bf16.msra.mxu0 0
    %2962 = vmatprep.subr.bf16.mxu0 0
    %2963 = vmatpush1.bf16.msra.mxu0 0
    %2964 = vmatprep.mubr.bf16.mxu0 0
    %2965 = vmatmul.mubr.bf16.gmra.mrb[0].mxu0 %v2698
    %v2966 = vpop.f32.mrb[0].mxu0
    %v2967 = vadd.f32 0.0, %v2966
    %v2968 = vpop.f32.mrb[0].mxu0
    %v2969 = vadd.f32 0.0, %v2968
    %v2970 = vpop.f32.mrb[0].mxu0
    %v2971 = vpop.f32.mrb[0].mxu0
    %2972 = vdwg.mxu0
    %v2973 = vadd.f32 %v2694, %v2926
    %v2974 = vadd.f32 %v2695, %v2928
    %v2975 = vadd.f32 %v2696, %v2967
    %v2976 = vadd.f32 %v2697, %v2969
    %v2977 = vxor.u32 %v2973, 2147483648
    %v2978 = vxor.u32 %v2974, 2147483648
    %v2979 = vxor.u32 %v2975, 2147483648
    %v2980 = vmul.f32 %v2977, 1.442695
    %v2981 = vpow.pop %v2980
    %v2982 = vmul.f32 %v2978, 1.442695
    %v2983 = vpow.pop %v2982
    %v2984 = vmul.f32 %v2979, 1.442695
    %v2985 = vpow.pop %v2984
    %v2986 = vadd.f32 %v2981, 1.0
    %v2987 = vadd.f32 %v2983, 1.0
    %v2988 = vadd.f32 %v2985, 1.0
    %v2989 = vrcp.pop %v2986
    %v2990 = vmul.f32 1.0, %v2989
    %v2991 = vrcp.pop %v2987
    %v2992 = vmul.f32 1.0, %v2991
    %v2993 = vrcp.pop %v2988
    %v2994 = vmul.f32 1.0, %v2993
    %v2995 = vtanh.pop %v2976
    %v2996 = vmul.f32 %v2992, %v2686
    %v2997 = vmul.f32 %v2990, %v2995
    %v2998 = vadd.f32 %v2996, %v2997
    %v2999 = vtanh.pop %v2998
    %v3000 = vmul.f32 %v2994, %v2999
    %s3001 = scalar_lea.vmem [#allocation9], 56
    %3002 = vst [vmem:[%s3001] sm:$0xff] %v3000
    %s3003 = smul.u32 8, 4
    %s3004 = smul.addr %s3003, 8
    %s3005 = scalar_lea.vmem [#allocation2], %s3004
    %v3006 = vld [vmem:[%s3005] sm:$0xff]
    %v3007 = vld [vmem:[%s3005 + $0x8] sm:$0xff]
    %v3008 = vld [vmem:[%s3005 + $0x10] sm:$0xff]
    %v3009 = vld [vmem:[%s3005 + $0x18] sm:$0xff]
    %v3010 = vpack.c.bf16 %v3000, %v3000
    %v3011 = vld [vmem:[#allocation8] sm:$0xff]
    %v3012 = vld [vmem:[#allocation8 + $0x8] sm:$0xff]
    %v3013 = vld [vmem:[#allocation8 + $0x10] sm:$0xff]
    %v3014 = vld [vmem:[#allocation8 + $0x18] sm:$0xff]
    %v3015 = vld [vmem:[#allocation8 + $0x20] sm:$0xff]
    %v3016 = vld [vmem:[#allocation8 + $0x28] sm:$0xff]
    %v3017 = vld [vmem:[#allocation8 + $0x30] sm:$0xff]
    %v3018 = vld [vmem:[#allocation8 + $0x38] sm:$0xff]
    %v3019 = vld [vmem:[#allocation8 + $0x40] sm:$0xff]
    %v3020 = vld [vmem:[#allocation8 + $0x48] sm:$0xff]
    %v3021 = vld [vmem:[#allocation8 + $0x50] sm:$0xff]
    %v3022 = vld [vmem:[#allocation8 + $0x58] sm:$0xff]
    %v3023 = vld [vmem:[#allocation8 + $0x60] sm:$0xff]
    %v3024 = vld [vmem:[#allocation8 + $0x68] sm:$0xff]
    %v3025 = vld [vmem:[#allocation8 + $0x70] sm:$0xff]
    %v3026 = vld [vmem:[#allocation8 + $0x78] sm:$0xff]
    %v3027 = vld [vmem:[#allocation8 + $0x80] sm:$0xff]
    %v3028 = vld [vmem:[#allocation8 + $0x88] sm:$0xff]
    %v3029 = vld [vmem:[#allocation8 + $0x90] sm:$0xff]
    %v3030 = vld [vmem:[#allocation8 + $0x98] sm:$0xff]
    %v3031 = vld [vmem:[#allocation8 + $0xa0] sm:$0xff]
    %v3032 = vld [vmem:[#allocation8 + $0xa8] sm:$0xff]
    %v3033 = vld [vmem:[#allocation8 + $0xb0] sm:$0xff]
    %v3034 = vld [vmem:[#allocation8 + $0xb8] sm:$0xff]
    %v3035 = vld [vmem:[#allocation8 + $0xc0] sm:$0xff]
    %v3036 = vld [vmem:[#allocation8 + $0xc8] sm:$0xff]
    %v3037 = vld [vmem:[#allocation8 + $0xd0] sm:$0xff]
    %v3038 = vld [vmem:[#allocation8 + $0xd8] sm:$0xff]
    %v3039 = vld [vmem:[#allocation8 + $0xe0] sm:$0xff]
    %v3040 = vld [vmem:[#allocation8 + $0xe8] sm:$0xff]
    %v3041 = vld [vmem:[#allocation8 + $0xf0] sm:$0xff]
    %v3042 = vld [vmem:[#allocation8 + $0xf8] sm:$0xff]
    %v3075 = vunpack.c.l.b16 %v3011
    %v3076 = vunpack.c.h.b16 %v3011
    %v3077 = vunpack.c.l.b16 %v3012
    %v3078 = vunpack.c.h.b16 %v3012
    %v3079 = vunpack.c.l.b16 %v3013
    %v3080 = vunpack.c.h.b16 %v3013
    %v3081 = vunpack.c.l.b16 %v3014
    %v3082 = vunpack.c.h.b16 %v3014
    %v3083 = vunpack.c.l.b16 %v3015
    %v3084 = vunpack.c.h.b16 %v3015
    %v3085 = vunpack.c.l.b16 %v3016
    %v3086 = vunpack.c.h.b16 %v3016
    %v3087 = vunpack.c.l.b16 %v3017
    %v3088 = vunpack.c.h.b16 %v3017
    %v3089 = vunpack.c.l.b16 %v3018
    %v3090 = vunpack.c.h.b16 %v3018
    %v3091 = vunpack.c.l.b16 %v3019
    %v3092 = vunpack.c.h.b16 %v3019
    %v3093 = vunpack.c.l.b16 %v3020
    %v3094 = vunpack.c.h.b16 %v3020
    %v3095 = vunpack.c.l.b16 %v3021
    %v3096 = vunpack.c.h.b16 %v3021
    %v3097 = vunpack.c.l.b16 %v3022
    %v3098 = vunpack.c.h.b16 %v3022
    %v3099 = vunpack.c.l.b16 %v3023
    %v3100 = vunpack.c.h.b16 %v3023
    %v3101 = vunpack.c.l.b16 %v3024
    %v3102 = vunpack.c.h.b16 %v3024
    %v3103 = vunpack.c.l.b16 %v3025
    %v3104 = vunpack.c.h.b16 %v3025
    %v3105 = vunpack.c.l.b16 %v3026
    %v3106 = vunpack.c.h.b16 %v3026
    %v3107 = vunpack.c.l.b16 %v3027
    %v3108 = vunpack.c.h.b16 %v3027
    %v3109 = vunpack.c.l.b16 %v3028
    %v3110 = vunpack.c.h.b16 %v3028
    %v3111 = vunpack.c.l.b16 %v3029
    %v3112 = vunpack.c.h.b16 %v3029
    %v3113 = vunpack.c.l.b16 %v3030
    %v3114 = vunpack.c.h.b16 %v3030
    %v3115 = vunpack.c.l.b16 %v3031
    %v3116 = vunpack.c.h.b16 %v3031
    %v3117 = vunpack.c.l.b16 %v3032
    %v3118 = vunpack.c.h.b16 %v3032
    %v3119 = vunpack.c.l.b16 %v3033
    %v3120 = vunpack.c.h.b16 %v3033
    %v3121 = vunpack.c.l.b16 %v3034
    %v3122 = vunpack.c.h.b16 %v3034
    %v3123 = vunpack.c.l.b16 %v3035
    %v3124 = vunpack.c.h.b16 %v3035
    %v3125 = vunpack.c.l.b16 %v3036
    %v3126 = vunpack.c.h.b16 %v3036
    %v3127 = vunpack.c.l.b16 %v3037
    %v3128 = vunpack.c.h.b16 %v3037
    %v3129 = vunpack.c.l.b16 %v3038
    %v3130 = vunpack.c.h.b16 %v3038
    %v3131 = vunpack.c.l.b16 %v3039
    %v3132 = vunpack.c.h.b16 %v3039
    %v3133 = vunpack.c.l.b16 %v3040
    %v3134 = vunpack.c.h.b16 %v3040
    %v3135 = vunpack.c.l.b16 %v3041
    %v3136 = vunpack.c.h.b16 %v3041
    %v3137 = vunpack.c.l.b16 %v3042
    %v3138 = vunpack.c.h.b16 %v3042
    %v3139 = vpack.c.b16 %v3079, %v3075
    %v3140 = vpack.c.b16 %v3080, %v3076
    %v3141 = vpack.c.b16 %v3081, %v3077
    %v3142 = vpack.c.b16 %v3082, %v3078
    %v3143 = vpack.c.b16 %v3087, %v3083
    %v3144 = vpack.c.b16 %v3088, %v3084
    %v3145 = vpack.c.b16 %v3089, %v3085
    %v3146 = vpack.c.b16 %v3090, %v3086
    %v3147 = vpack.c.b16 %v3095, %v3091
    %v3148 = vpack.c.b16 %v3096, %v3092
    %v3149 = vpack.c.b16 %v3097, %v3093
    %v3150 = vpack.c.b16 %v3098, %v3094
    %v3151 = vpack.c.b16 %v3103, %v3099
    %v3152 = vpack.c.b16 %v3104, %v3100
    %v3153 = vpack.c.b16 %v3105, %v3101
    %v3154 = vpack.c.b16 %v3106, %v3102
    %v3155 = vpack.c.b16 %v3111, %v3107
    %v3156 = vpack.c.b16 %v3112, %v3108
    %v3157 = vpack.c.b16 %v3113, %v3109
    %v3158 = vpack.c.b16 %v3114, %v3110
    %v3159 = vpack.c.b16 %v3119, %v3115
    %v3160 = vpack.c.b16 %v3120, %v3116
    %v3161 = vpack.c.b16 %v3121, %v3117
    %v3162 = vpack.c.b16 %v3122, %v3118
    %v3163 = vpack.c.b16 %v3127, %v3123
    %v3164 = vpack.c.b16 %v3128, %v3124
    %v3165 = vpack.c.b16 %v3129, %v3125
    %v3166 = vpack.c.b16 %v3130, %v3126
    %v3167 = vpack.c.b16 %v3135, %v3131
    %v3168 = vpack.c.b16 %v3136, %v3132
    %v3169 = vpack.c.b16 %v3137, %v3133
    %v3170 = vpack.c.b16 %v3138, %v3134
    %3203 = vmatprep.subr.bf16.mxu0 %v3140
    %3204 = vmatpush1.bf16.msra.mxu0 %v3139
    %3205 = vmatprep.subr.bf16.mxu0 %v3144
    %3206 = vmatpush1.bf16.msra.mxu0 %v3143
    %3207 = vmatprep.subr.bf16.mxu0 %v3148
    %3208 = vmatpush1.bf16.msra.mxu0 %v3147
    %3209 = vmatprep.subr.bf16.mxu0 %v3152
    %3210 = vmatpush1.bf16.msra.mxu0 %v3151
    %3211 = vmatprep.subr.bf16.mxu0 %v3156
    %3212 = vmatpush1.bf16.msra.mxu0 %v3155
    %3213 = vmatprep.subr.bf16.mxu0 %v3160
    %3214 = vmatpush1.bf16.msra.mxu0 %v3159
    %3215 = vmatprep.subr.bf16.mxu0 %v3164
    %3216 = vmatpush1.bf16.msra.mxu0 %v3163
    %3217 = vmatprep.subr.bf16.mxu0 %v3168
    %3218 = vmatpush1.bf16.msra.mxu0 %v3167
    %3219 = vmatprep.subr.bf16.mxu0 0
    %3220 = vmatpush1.bf16.msra.mxu0 0
    %3221 = vmatprep.subr.bf16.mxu0 0
    %3222 = vmatpush1.bf16.msra.mxu0 0
    %3223 = vmatprep.subr.bf16.mxu0 0
    %3224 = vmatpush1.bf16.msra.mxu0 0
    %3225 = vmatprep.subr.bf16.mxu0 0
    %3226 = vmatpush1.bf16.msra.mxu0 0
    %3227 = vmatprep.subr.bf16.mxu0 0
    %3228 = vmatpush1.bf16.msra.mxu0 0
    %3229 = vmatprep.subr.bf16.mxu0 0
    %3230 = vmatpush1.bf16.msra.mxu0 0
    %3231 = vmatprep.subr.bf16.mxu0 0
    %3232 = vmatpush1.bf16.msra.mxu0 0
    %3233 = vmatprep.subr.bf16.mxu0 0
    %3234 = vmatpush1.bf16.msra.mxu0 0
    %3235 = vmatprep.mubr.bf16.mxu0 0
    %3236 = vmatmul.mubr.bf16.gmra.mrb[0].mxu0 %v3010
    %v3237 = vpop.f32.mrb[0].mxu0
    %v3238 = vadd.f32 0.0, %v3237
    %v3239 = vpop.f32.mrb[0].mxu0
    %v3240 = vadd.f32 0.0, %v3239
    %v3241 = vpop.f32.mrb[0].mxu0
    %v3242 = vpop.f32.mrb[0].mxu0
    %3243 = vdwg.mxu0
    %3244 = vmatprep.subr.bf16.mxu0 %v3142
    %3245 = vmatpush1.bf16.msra.mxu0 %v3141
    %3246 = vmatprep.subr.bf16.mxu0 %v3146
    %3247 = vmatpush1.bf16.msra.mxu0 %v3145
    %3248 = vmatprep.subr.bf16.mxu0 %v3150
    %3249 = vmatpush1.bf16.msra.mxu0 %v3149
    %3250 = vmatprep.subr.bf16.mxu0 %v3154
    %3251 = vmatpush1.bf16.msra.mxu0 %v3153
    %3252 = vmatprep.subr.bf16.mxu0 %v3158
    %3253 = vmatpush1.bf16.msra.mxu0 %v3157
    %3254 = vmatprep.subr.bf16.mxu0 %v3162
    %3255 = vmatpush1.bf16.msra.mxu0 %v3161
    %3256 = vmatprep.subr.bf16.mxu0 %v3166
    %3257 = vmatpush1.bf16.msra.mxu0 %v3165
    %3258 = vmatprep.subr.bf16.mxu0 %v3170
    %3259 = vmatpush1.bf16.msra.mxu0 %v3169
    %3260 = vmatprep.subr.bf16.mxu0 0
    %3261 = vmatpush1.bf16.msra.mxu0 0
    %3262 = vmatprep.subr.bf16.mxu0 0
    %3263 = vmatpush1.bf16.msra.mxu0 0
    %3264 = vmatprep.subr.bf16.mxu0 0
    %3265 = vmatpush1.bf16.msra.mxu0 0
    %3266 = vmatprep.subr.bf16.mxu0 0
    %3267 = vmatpush1.bf16.msra.mxu0 0
    %3268 = vmatprep.subr.bf16.mxu0 0
    %3269 = vmatpush1.bf16.msra.mxu0 0
    %3270 = vmatprep.subr.bf16.mxu0 0
    %3271 = vmatpush1.bf16.msra.mxu0 0
    %3272 = vmatprep.subr.bf16.mxu0 0
    %3273 = vmatpush1.bf16.msra.mxu0 0
    %3274 = vmatprep.subr.bf16.mxu0 0
    %3275 = vmatpush1.bf16.msra.mxu0 0
    %3276 = vmatprep.mubr.bf16.mxu0 0
    %3277 = vmatmul.mubr.bf16.gmra.mrb[0].mxu0 %v3010
    %v3278 = vpop.f32.mrb[0].mxu0
    %v3279 = vadd.f32 0.0, %v3278
    %v3280 = vpop.f32.mrb[0].mxu0
    %v3281 = vadd.f32 0.0, %v3280
    %v3282 = vpop.f32.mrb[0].mxu0
    %v3283 = vpop.f32.mrb[0].mxu0
    %3284 = vdwg.mxu0
    %v3285 = vadd.f32 %v3006, %v3238
    %v3286 = vadd.f32 %v3007, %v3240
    %v3287 = vadd.f32 %v3008, %v3279
    %v3288 = vadd.f32 %v3009, %v3281
    %v3289 = vxor.u32 %v3285, 2147483648
    %v3290 = vxor.u32 %v3286, 2147483648
    %v3291 = vxor.u32 %v3287, 2147483648
    %v3292 = vmul.f32 %v3289, 1.442695
    %v3293 = vpow.pop %v3292
    %v3294 = vmul.f32 %v3290, 1.442695
    %v3295 = vpow.pop %v3294
    %v3296 = vmul.f32 %v3291, 1.442695
    %v3297 = vpow.pop %v3296
    %v3298 = vadd.f32 %v3293, 1.0
    %v3299 = vadd.f32 %v3295, 1.0
    %v3300 = vadd.f32 %v3297, 1.0
    %v3301 = vrcp.pop %v3298
    %v3302 = vmul.f32 1.0, %v3301
    %v3303 = vrcp.pop %v3299
    %v3304 = vmul.f32 1.0, %v3303
    %v3305 = vrcp.pop %v3300
    %v3306 = vmul.f32 1.0, %v3305
    %v3307 = vtanh.pop %v3288
    %v3308 = vmul.f32 %v3304, %v2998
    %v3309 = vmul.f32 %v3302, %v3307
    %v3310 = vadd.f32 %v3308, %v3309
    %v3311 = vtanh.pop %v3310
    %v3312 = vmul.f32 %v3306, %v3311
    %s3313 = scalar_lea.vmem [#allocation9], 64
    %3314 = vst [vmem:[%s3313] sm:$0xff] %v3312
    // Predicated region
    $region30: #{tpu_custom_call.1} parent=1 // pred_check
      _
    $region31: #{tpu_custom_call.1} parent=1 // pred_check_branch
      %3316 = sbr.rel (0) target = $region33
    $region32: #{tpu_custom_call.1} parent=1 // pred_region
      %s3318 = ssub.s32 1152, 1152
      %3319 = vsyncadd [#allocation5], %s3318
      %s3320 = sshll.u32 [#allocation9], 4
      %s3321 = int_to_ptr.vmem [resolvable:$true] %s3320
      %3326 = dma.vmem_to_hbm [thread:$0]  %s3321, 1152, %s4, [#allocation5], 128, 128, 8
    $region33: #{tpu_custom_call.1} parent=1 // pred_fallthru
      _
    // Predicated region
    $region34: #{tpu_custom_call.1} parent=1 // pred_check
      _
    $region35: #{tpu_custom_call.1} parent=1 // pred_check_branch
      %3328 = sbr.rel (0) target = $region37
    $region36: #{tpu_custom_call.1} parent=1 // pred_region
      %3329 = dma.done [#allocation5], 1152
    $region37: #{tpu_custom_call.1} parent=1 // pred_fallthru
      _
    %3330 = vsyncpa [#allocation4], 1
    %3331 = vsyncpa [#allocation7], 1
    %3332 = vsyncpa [#allocation5], 1

</llo_original>
